<compile_context>
chip_gen: v6e
topology: v6e:2x2x1
jax: 0.10.0
libtpu: 0.0.40
codegen_flags: <defaults>
</compile_context>

<pallas_src>
import functools

import jax
import jax.numpy as jnp
from jax.experimental import pallas as pl
from jax.experimental.pallas import tpu as pltpu

IN_FEATURES = 196608   # = 3 * 256 * 256, fixed by the module definition
OUT_FEATURES = 10


def _linear_kernel(x_ref, w_ref, o_ref):
    """One K-tile of one K-split of o = x @ W.T (bias added in wrapper).

    x_ref: (B, tk)  lane-dense activation slab
    w_ref: (N, tk)  lane-dense weight slab (PyTorch (out, in) layout)
    o_ref: (B, N)   per-split partial, resident across the k reduction axis
    """
    k = pl.program_id(1)

    @pl.when(k == 0)
    def _():
        o_ref[...] = jnp.zeros_like(o_ref)

    x = x_ref[...]                      # (B, tk)
    w = w_ref[...]                      # (N, tk)
    # VPU elementwise multiply + XLU reduction over the lane (K) axis.
    o_ref[...] += jnp.sum(x[:, None, :] * w[None, :, :], axis=-1)


@functools.partial(jax.jit, static_argnames=("tk", "num_splits"))
def mydata_forward(x, w, b, *, tk=24576, num_splits=2):
    """x: (B, K) f32, w: (N, K) f32 (PyTorch layout), b: (N,) f32 -> (B, N) f32."""
    B, K = x.shape
    N, Kw = w.shape
    assert K == Kw
    assert K % (tk * num_splits) == 0, "tk * num_splits must divide K (196608)"
    steps_per_split = K // (tk * num_splits)

    partials = pl.pallas_call(
        _linear_kernel,
        out_shape=jax.ShapeDtypeStruct((num_splits, B, N), jnp.float32),
        grid_spec=pltpu.PrefetchScalarGridSpec(
            num_scalar_prefetch=0,
            grid=(num_splits, steps_per_split),
            in_specs=[
                # activation slab: full batch rows, one lane-dense K slab
                pl.BlockSpec((B, tk),
                             lambda s, k: (0, s * steps_per_split + k)),
                # weight slab: all N=10 output rows, one lane-dense K slab
                pl.BlockSpec((N, tk),
                             lambda s, k: (0, s * steps_per_split + k)),
            ],
            # one resident partial per K-split (leading dim squeezed away)
            out_specs=pl.BlockSpec((None, B, N), lambda s, k: (s, 0, 0)),
        ),
        compiler_params=pltpu.CompilerParams(
            # split axis can be sharded over v7x's 2 TensorCores; k is the
            # sequential reduction axis.
            dimension_semantics=("parallel", "arbitrary"),
        ),
    )(x, w)

    # Tiny epilogue on a (B, 10) array: combine per-split partials, add bias.
    return partials.sum(axis=0) + b[None, :]


def reference_forward(x, w, b):
    # torch.nn.Linear: y = x @ W.T + b with W in (out, in) layout
    return x @ w.T + b


if __name__ == "__main__":
    key = jax.random.PRNGKey(0)
    k_x, k_w, k_b = jax.random.split(key, 3)

    batch = 2
    # Deterministic synthetic parameters (PyTorch Linear-like uniform init scale).
    bound = 1.0 / (IN_FEATURES ** 0.5)
    x = jax.random.normal(k_x, (batch, IN_FEATURES), dtype=jnp.float32)
    # PyTorch-native (out_features, in_features) layout — no transpose needed.
    w = jax.random.uniform(
        k_w, (OUT_FEATURES, IN_FEATURES), minval=-bound, maxval=bound,
        dtype=jnp.float32,
    )
    b = jax.random.uniform(
        k_b, (OUT_FEATURES,), minval=-bound, maxval=bound, dtype=jnp.float32
    )

    out = mydata_forward(x, w, b)
    out = jax.block_until_ready(out)

    ref = reference_forward(x, w, b)
    assert out.shape == (batch, OUT_FEATURES)
    assert jnp.allclose(out, ref, atol=1e-3, rtol=1e-3), "mismatch vs reference"

    print("KERNEL_OK")
</pallas_src>

<mosaic_0001>
module attributes {stable_mosaic.version = 11 : i64} {
  func.func @_linear_kernel(%arg0: i32, %arg1: i32, %arg2: memref<2x24576xf32, #tpu.memory_space<vmem>>, %arg3: memref<10x24576xf32, #tpu.memory_space<vmem>>, %arg4: memref<1x2x10xf32, #tpu.memory_space<vmem>>) attributes {dimension_semantics = [#tpu.dimension_semantics<parallel>, #tpu.dimension_semantics<arbitrary>], iteration_bounds = array<i64: 2, 4>, scalar_prefetch = 0 : i64, scratch_operands = 0 : i64, tpu.core_type = #tpu.core_type<tc>, window_params = [{transform_indices = @transform_0, window_bounds = array<i64: 2, 24576>}, {transform_indices = @transform_1, window_bounds = array<i64: 10, 24576>}, {transform_indices = @transform_2, window_bounds = array<i64: 1, 2, 10>}]} {
    %c0_i32 = arith.constant 0 : i32
    %0 = arith.cmpi eq, %arg1, %c0_i32 : i32
    %1 = arith.extui %0 : i1 to i32
    %c0_i32_0 = arith.constant 0 : i32
    %2 = arith.cmpi ne, %1, %c0_i32_0 : i32
    scf.if %2 {
      %cst_10 = arith.constant 0.000000e+00 : f32
      %17 = vector.broadcast %cst_10 : f32 to vector<2x10xf32>
      %c0_11 = arith.constant 0 : index
      %c0_12 = arith.constant 0 : index
      %c0_13 = arith.constant 0 : index
      %18 = vector.load %arg4[%c0_11, %c0_12, %c0_13] : memref<1x2x10xf32, #tpu.memory_space<vmem>>, vector<1x2x10xf32>
      %19 = vector.shape_cast %18 : vector<1x2x10xf32> to vector<2x10xf32>
      %20 = vector.shape_cast %17 : vector<2x10xf32> to vector<1x2x10xf32>
      tpu.vector_store %arg4[%c0_11, %c0_12, %c0_13], %20 {strides = array<i32>} : memref<1x2x10xf32, #tpu.memory_space<vmem>>, vector<1x2x10xf32>,
    } else {
    }
    %c0 = arith.constant 0 : index
    %c0_1 = arith.constant 0 : index
    %3 = vector.load %arg2[%c0, %c0_1] : memref<2x24576xf32, #tpu.memory_space<vmem>>, vector<2x24576xf32>
    %c0_2 = arith.constant 0 : index
    %c0_3 = arith.constant 0 : index
    %4 = vector.load %arg3[%c0_2, %c0_3] : memref<10x24576xf32, #tpu.memory_space<vmem>>, vector<10x24576xf32>
    %c0_4 = arith.constant 0 : index
    %c0_5 = arith.constant 0 : index
    %c0_6 = arith.constant 0 : index
    %5 = vector.load %arg4[%c0_4, %c0_5, %c0_6] : memref<1x2x10xf32, #tpu.memory_space<vmem>>, vector<1x2x10xf32>
    %6 = vector.shape_cast %5 : vector<1x2x10xf32> to vector<2x10xf32>
    %7 = vector.shape_cast %3 : vector<2x24576xf32> to vector<2x1x24576xf32>
    %8 = vector.shape_cast %4 : vector<10x24576xf32> to vector<1x10x24576xf32>
    %9 = vector.broadcast %7 : vector<2x1x24576xf32> to vector<2x10x24576xf32>
    %10 = vector.broadcast %8 : vector<1x10x24576xf32> to vector<2x10x24576xf32>
    %11 = arith.mulf %9, %10 : vector<2x10x24576xf32>
    %cst = arith.constant dense<0.000000e+00> : vector<2x10xf32>
    %12 = vector.multi_reduction <add>, %11, %cst [2] : vector<2x10x24576xf32> to vector<2x10xf32>
    %13 = arith.addf %6, %12 : vector<2x10xf32>
    %c0_7 = arith.constant 0 : index
    %c0_8 = arith.constant 0 : index
    %c0_9 = arith.constant 0 : index
    %14 = vector.load %arg4[%c0_7, %c0_8, %c0_9] : memref<1x2x10xf32, #tpu.memory_space<vmem>>, vector<1x2x10xf32>
    %15 = vector.shape_cast %14 : vector<1x2x10xf32> to vector<2x10xf32>
    %16 = vector.shape_cast %13 : vector<2x10xf32> to vector<1x2x10xf32>
    tpu.vector_store %arg4[%c0_7, %c0_8, %c0_9], %16 {strides = array<i32>} : memref<1x2x10xf32, #tpu.memory_space<vmem>>, vector<1x2x10xf32>,
    return
  }
  func.func @transform_0(%arg0: i32, %arg1: i32) -> (i32, i32) {
    %c4_i32 = arith.constant 4 : i32
    %0 = arith.muli %arg0, %c4_i32 : i32
    %1 = arith.addi %0, %arg1 : i32
    %c0_i32 = arith.constant 0 : i32
    %c0_i32_0 = arith.constant 0 : i32
    return %c0_i32, %1 : i32, i32
  }
  func.func @transform_1(%arg0: i32, %arg1: i32) -> (i32, i32) {
    %c4_i32 = arith.constant 4 : i32
    %0 = arith.muli %arg0, %c4_i32 : i32
    %1 = arith.addi %0, %arg1 : i32
    %c0_i32 = arith.constant 0 : i32
    %c0_i32_0 = arith.constant 0 : i32
    return %c0_i32, %1 : i32, i32
  }
  func.func @transform_2(%arg0: i32, %arg1: i32) -> (i32, i32, i32) {
    %c0_i32 = arith.constant 0 : i32
    %c0_i32_0 = arith.constant 0 : i32
    %c0_i32_1 = arith.constant 0 : i32
    return %arg0, %c0_i32, %c0_i32_0 : i32, i32, i32
  }
}

</mosaic_0001>

<llo_original>
// kernel: mydata_forward.1
$region0: #{mydata_forward.1}
  #allocation0 [shape = 'u32[]', space=smem, size = 0x4, offset = 0x4, fixed_abs, tag = 'smem constant byte address 0x4 - core index']
  #allocation1 [shape = 'u32[144,128]{1,0:T(1,128)}', space=vmem, size = 0x12000, scoped, tag = 'internal scratch']
  %s0 = inlined_call_operand.hbm [shape: f32[2,196608], index: 0, kind: input, shape index: {}]
  %s1 = inlined_call_operand.hbm [shape: f32[10,196608], index: 1, kind: input, shape index: {}]
  %s2 = inlined_call_operand.vmem [shape: f32[2,2,10], index: 2, kind: output, shape index: {}]
  %s3 = sld [smem:[#allocation0]]
  $region53: #{mydata_forward.1} parent=0
    _
  %s5 = ssub.s32 1, %s3
  %s6 = scalar_select 0, %s5, %s3
  $region1: #{mydata_forward.1} parent=0
    #allocation2 [shape = 'u8[393216]{0}', space=vmem, size = 0x60000, scoped, tag = 'input window, operand 0']
    #allocation3 [shape = 's32[2]{0}', space=sflag, size = 0x8, scoped, tag = 'scoped memory for mydata_forward.1']
    #allocation4 [shape = 'u8[3145728]{0}', space=vmem, size = 0x300000, scoped, tag = 'input window, operand 1']
    #allocation5 [shape = 's32[2]{0}', space=sflag, size = 0x8, scoped, tag = 'scoped memory for mydata_forward.1']
    %7 = vsyncpa [#allocation3], 0
    %s8 = scalar_lea.sflag [#allocation3], 1
    %9 = vsyncpa %s8, 0
    %10 = vsyncpa [#allocation5], 0
    %s11 = scalar_lea.sflag [#allocation5], 1
    %12 = vsyncpa %s11, 0
    loop: start=0, step=1, limit=10
    $region2: #{mydata_forward.1} parent=1 // loop_pre_header
      _
    $region3: #{mydata_forward.1} parent=1 // loop_header
      %s14 = sphi 0, %s18
      %p15 = scmp.ge.s32.totalorder %s14, 10
      %s21 = sphi 0, %s33
      %s22 = sphi 0, %s29
      %s23 = sphi 0, %s21
      %s24 = sphi 0, %s22
      %s25 = sphi 0, %s23
      %s26 = sphi 0, %s24
      %s40 = sphi 0, %s42
      %s43 = sphi 0, %s40
      %s44 = sphi 0, %s43
      %s60 = sphi 0, %s44
      %s70 = sphi 0, %s72
      %s73 = sphi 0, %s70
      %s74 = sphi 0, %s73
      %s90 = sphi 0, %s74
      %s96 = sphi 0, %s98
      %s99 = sphi 0, %s96
      %s100 = sphi 0, %s99
      %s116 = sphi 0, %s100
    $region4: #{mydata_forward.1} parent=1 // loop_header_branch
      %17 = sbr.rel (%p15) target = $region8
    $region5: #{mydata_forward.1} parent=1 // loop_body
      %s19 = ssub.s32 %s14, 1
      %s20 = ssub.s32 %s14, 2
      %s27 = sadd.s32 1, %s22
      %p28 = scmp.ge.s32.totalorder %s27, 4
      %s29 = scalar_select %p28, 0, %s27
      %s30 = sadd.s32 1, %s21
      %s31 = scalar_select %p28, %s30, %s21
      %p32 = scmp.ge.s32.totalorder %s31, 2
      %s33 = scalar_select %p32, 0, %s31
      %s34 = smul.u32 %s21, 4
      %s35 = sadd.s32 %s34, %s22
      %s36 = smul.u32 %s33, 4
      %s37 = sadd.s32 %s36, %s29
      %s38 = ssub.s32 %s35, %s37
      %p39 = scmp.eq.s32.totalorder %s38, 0
      %s41 = sadd.s32 %s40, 1
      %s42 = scalar_select %p39, %s40, %s41
      %p45 = pneg %p39
      %p46 = scmp.eq.s32.totalorder %s14, 7
      %p47 = por %p45, %p46
      %p48 = scmp.ne.s32.totalorder %s40, %s43
      %p49 = scmp.eq.s32.totalorder %s14, 0
      %p50 = por %p48, %p49
      %p51 = scmp.ne.s32.totalorder %s40, %s43
      %p52 = scmp.eq.s32.totalorder %s19, 7
      %p53 = por %p51, %p52
      %p54 = scmp.ne.s32.totalorder %s43, %s44
      %p55 = scmp.eq.s32.totalorder %s19, 0
      %p56 = por %p54, %p55
      %p57 = scmp.ne.s32.totalorder %s43, %s44
      %p58 = scmp.eq.s32.totalorder %s20, 7
      %p59 = por %p57, %p58
      %p61 = scmp.ne.s32.totalorder %s44, %s60
      %p62 = scmp.eq.s32.totalorder %s20, 0
      %p63 = por %p61, %p62
      %s64 = smul.u32 %s21, 4
      %s65 = sadd.s32 %s64, %s22
      %s66 = smul.u32 %s33, 4
      %s67 = sadd.s32 %s66, %s29
      %s68 = ssub.s32 %s65, %s67
      %p69 = scmp.eq.s32.totalorder %s68, 0
      %s71 = sadd.s32 %s70, 1
      %s72 = scalar_select %p69, %s70, %s71
      %p75 = pneg %p69
      %p76 = scmp.eq.s32.totalorder %s14, 7
      %p77 = por %p75, %p76
      %p78 = scmp.ne.s32.totalorder %s70, %s73
      %p79 = scmp.eq.s32.totalorder %s14, 0
      %p80 = por %p78, %p79
      %p81 = scmp.ne.s32.totalorder %s70, %s73
      %p82 = scmp.eq.s32.totalorder %s19, 7
      %p83 = por %p81, %p82
      %p84 = scmp.ne.s32.totalorder %s73, %s74
      %p85 = scmp.eq.s32.totalorder %s19, 0
      %p86 = por %p84, %p85
      %p87 = scmp.ne.s32.totalorder %s73, %s74
      %p88 = scmp.eq.s32.totalorder %s20, 7
      %p89 = por %p87, %p88
      %p91 = scmp.ne.s32.totalorder %s74, %s90
      %p92 = scmp.eq.s32.totalorder %s20, 0
      %p93 = por %p91, %p92
      %s94 = ssub.s32 %s21, %s33
      %p95 = scmp.eq.s32.totalorder %s94, 0
      %s97 = sadd.s32 %s96, 1
      %s98 = scalar_select %p95, %s96, %s97
      %p101 = pneg %p95
      %p102 = scmp.eq.s32.totalorder %s14, 7
      %p103 = por %p101, %p102
      %p104 = scmp.ne.s32.totalorder %s96, %s99
      %p105 = scmp.eq.s32.totalorder %s14, 0
      %p106 = por %p104, %p105
      %p107 = scmp.ne.s32.totalorder %s96, %s99
      %p108 = scmp.eq.s32.totalorder %s19, 7
      %p109 = por %p107, %p108
      %p110 = scmp.ne.s32.totalorder %s99, %s100
      %p111 = scmp.eq.s32.totalorder %s19, 0
      %p112 = por %p110, %p111
      %p113 = scmp.ne.s32.totalorder %s99, %s100
      %p114 = scmp.eq.s32.totalorder %s20, 7
      %p115 = por %p113, %p114
      %p117 = scmp.ne.s32.totalorder %s100, %s116
      %p118 = scmp.eq.s32.totalorder %s20, 0
      %p119 = por %p117, %p118
      %p120 = scmp.le.s32.totalorder 1, %s14
      %p121 = scmp.lt.s32.totalorder %s14, 9
      %p122 = pnand %p120, %p121
      %p123 = pneg %p122
      // Predicated region
      $region9: #{mydata_forward.1} parent=5 // pred_check
        _
      $region10: #{mydata_forward.1} parent=5 // pred_check_branch
        %125 = sbr.rel (%p122) target = $region12
      $region11: #{mydata_forward.1} parent=5 // pred_region
        %s126 = ssub.s32 %s14, 1
      $region12: #{mydata_forward.1} parent=5 // pred_fallthru
        _
      %p127 = scmp.lt.s32.totalorder %s14, 8
      // Predicated region
      $region13: #{mydata_forward.1} parent=5 // pred_check
        %p128 = pneg %p127
      $region14: #{mydata_forward.1} parent=5 // pred_check_branch
        %130 = sbr.rel (%p128) target = $region16
      $region15: #{mydata_forward.1} parent=5 // pred_region
        // Predicated region
        $region17: #{mydata_forward.1} parent=15 // pred_check
          %p131 = pneg %p50
        $region18: #{mydata_forward.1} parent=15 // pred_check_branch
          %133 = sbr.rel (%p131) target = $region20
        $region19: #{mydata_forward.1} parent=15 // pred_region
          %s134 = sand.u32 %s40, 1
          %s135 = scalar_lea.sflag [#allocation3], %s134
          %s136 = sand.u32 %s40, 1
          %s137 = smul.addr %s136, 384
          %s138 = scalar_lea.vmem [#allocation2], %s137
          %s139 = smul.u32 %s21, 4
          %s140 = sadd.s32 %s139, %s22
          %s141 = smul.u32 192, %s140
          %s143 = ssub.s32 6144, 6144
          %144 = vsyncadd %s135, %s143
          %s145 = smul.addr %s141, 32
          %s146 = scalar_lea.hbm %s0, %s145
          %s148 = sshll.u32 %s138, 4
          %s149 = int_to_ptr.vmem [resolvable:$true] %s148
          %151 = dma.hbm_to_vmem [thread:$0]  %s146, 6144, %s149, %s135
        $region20: #{mydata_forward.1} parent=15 // pred_fallthru
          _
        // Predicated region
        $region21: #{mydata_forward.1} parent=15 // pred_check
          %p152 = pneg %p80
        $region22: #{mydata_forward.1} parent=15 // pred_check_branch
          %154 = sbr.rel (%p152) target = $region24
        $region23: #{mydata_forward.1} parent=15 // pred_region
          %s155 = sand.u32 %s70, 1
          %s156 = scalar_lea.sflag [#allocation5], %s155
          %s157 = sand.u32 %s70, 1
          %s158 = smul.addr %s157, 3072
          %s159 = scalar_lea.vmem [#allocation4], %s158
          %s160 = smul.u32 %s21, 4
          %s161 = sadd.s32 %s160, %s22
          %s162 = smul.u32 192, %s161
          %s164 = ssub.s32 49152, 49152
          %165 = vsyncadd %s156, %s164
          %s166 = smul.addr %s162, 128
          %s167 = scalar_lea.hbm %s1, %s166
          %s168 = sshll.u32 %s159, 4
          %s169 = int_to_ptr.vmem [resolvable:$true] %s168
          %174 = dma.hbm_to_vmem [thread:$0]  %s167, 49152, %s169, %s156, 196608, 24576, 1536
        $region24: #{mydata_forward.1} parent=15 // pred_fallthru
          _
      $region16: #{mydata_forward.1} parent=5 // pred_fallthru
        _
      %p175 = scmp.le.s32.totalorder 1, %s14
      %p176 = scmp.lt.s32.totalorder %s14, 9
      %p177 = pnand %p175, %p176
      %p178 = pneg %p177
      // Predicated region
      $region25: #{mydata_forward.1} parent=5 // pred_check
        _
      $region26: #{mydata_forward.1} parent=5 // pred_check_branch
        %180 = sbr.rel (%p177) target = $region28
      $region27: #{mydata_forward.1} parent=5 // pred_region
        %s181 = ssub.s32 %s14, 1
        %s182 = sand.u32 %s43, 1
        %s183 = scalar_lea.sflag [#allocation3], %s182
        %s184 = sand.u32 %s43, 1
        %s185 = smul.addr %s184, 384
        %s186 = scalar_lea.vmem [#allocation2], %s185
        // Predicated region
        $region29: #{mydata_forward.1} parent=27 // pred_check
          %p187 = pneg %p56
        $region30: #{mydata_forward.1} parent=27 // pred_check_branch
          %189 = sbr.rel (%p187) target = $region32
        $region31: #{mydata_forward.1} parent=27 // pred_region
          %190 = dma.done %s183, 6144
        $region32: #{mydata_forward.1} parent=27 // pred_fallthru
          _
        %s191 = sand.u32 %s73, 1
        %s192 = scalar_lea.sflag [#allocation5], %s191
        %s193 = sand.u32 %s73, 1
        %s194 = smul.addr %s193, 3072
        %s195 = scalar_lea.vmem [#allocation4], %s194
        // Predicated region
        $region33: #{mydata_forward.1} parent=27 // pred_check
          %p196 = pneg %p86
        $region34: #{mydata_forward.1} parent=27 // pred_check_branch
          %198 = sbr.rel (%p196) target = $region36
        $region35: #{mydata_forward.1} parent=27 // pred_region
          %199 = dma.done %s192, 49152
        $region36: #{mydata_forward.1} parent=27 // pred_fallthru
          _
        %s200 = sand.u32 %s43, 1
        %s201 = scalar_lea.sflag [#allocation3], %s200
        %s202 = sand.u32 %s43, 1
        %s203 = smul.addr %s202, 384
        %s204 = scalar_lea.vmem [#allocation2], %s203
        %p205 = pneg %p56
        %p206 = pneg %p53
        %s207 = sand.u32 %s73, 1
        %s208 = scalar_lea.sflag [#allocation5], %s207
        %s209 = sand.u32 %s73, 1
        %s210 = smul.addr %s209, 3072
        %s211 = scalar_lea.vmem [#allocation4], %s210
        %p212 = pneg %p86
        %p213 = pneg %p83
        %p214 = pneg %p112
        %p215 = pneg %p109
        %p216 = scmp.lt.s32.totalorder %s23, 1
        %s217 = scalar_select %p216, %s23, 1
        %s218 = smul.addr %s217, 2
        %s219 = scalar_lea.vmem %s2, %s218
        %s220 = smul.u32 %s23, 4
        %s221 = sadd.s32 %s220, %s24
        %s222 = smul.u32 192, %s221
        %s223 = smul.u32 %s23, 4
        %s224 = sadd.s32 %s223, %s24
        %s225 = smul.u32 192, %s224
        %p226 = scmp.lt.s32.totalorder %s23, 1
        %s227 = scalar_select %p226, %s23, 1
        %s228 = smul.addr %s227, 2
        %s229 = scalar_lea.vmem %s2, %s228
        %p230 = scmp.eq.s32.totalorder %s24, 0
        // Predicated region
        $region37: #{mydata_forward.1} parent=27 // pred_check
          %p231 = pneg %p230
        $region38: #{mydata_forward.1} parent=27 // pred_check_branch
          %233 = sbr.rel (%p231) target = $region40
        $region39: #{mydata_forward.1} parent=27 // pred_region
          %vm234 = vcmask 74752
          %235 = vst.msk [vmem:[%s229] sm:$0x3] %vm234, 0.0
        $region40: #{mydata_forward.1} parent=27 // pred_fallthru
          _
        %v236 = vld [vmem:[%s186] sm:$0xff]
        %v237 = vld [vmem:[%s186 + $0x8] sm:$0xff]
        %v238 = vld [vmem:[%s186 + $0x10] sm:$0xff]
        %v239 = vld [vmem:[%s186 + $0x18] sm:$0xff]
        %v240 = vld [vmem:[%s186 + $0x20] sm:$0xff]
        %v241 = vld [vmem:[%s186 + $0x28] sm:$0xff]
        %v242 = vld [vmem:[%s186 + $0x30] sm:$0xff]
        %v243 = vld [vmem:[%s186 + $0x38] sm:$0xff]
        %v244 = vld [vmem:[%s186 + $0x40] sm:$0xff]
        %v245 = vld [vmem:[%s186 + $0x48] sm:$0xff]
        %v246 = vld [vmem:[%s186 + $0x50] sm:$0xff]
        %v247 = vld [vmem:[%s186 + $0x58] sm:$0xff]
        %v248 = vld [vmem:[%s186 + $0x60] sm:$0xff]
        %v249 = vld [vmem:[%s186 + $0x68] sm:$0xff]
        %v250 = vld [vmem:[%s186 + $0x70] sm:$0xff]
        %v251 = vld [vmem:[%s186 + $0x78] sm:$0xff]
        %v252 = vld [vmem:[%s186 + $0x80] sm:$0xff]
        %v253 = vld [vmem:[%s186 + $0x88] sm:$0xff]
        %v254 = vld [vmem:[%s186 + $0x90] sm:$0xff]
        %v255 = vld [vmem:[%s186 + $0x98] sm:$0xff]
        %v256 = vld [vmem:[%s186 + $0xa0] sm:$0xff]
        %v257 = vld [vmem:[%s186 + $0xa8] sm:$0xff]
        %v258 = vld [vmem:[%s186 + $0xb0] sm:$0xff]
        %v259 = vld [vmem:[%s186 + $0xb8] sm:$0xff]
        %v260 = vld [vmem:[%s186 + $0xc0] sm:$0xff]
        %v261 = vld [vmem:[%s186 + $0xc8] sm:$0xff]
        %v262 = vld [vmem:[%s186 + $0xd0] sm:$0xff]
        %v263 = vld [vmem:[%s186 + $0xd8] sm:$0xff]
        %v264 = vld [vmem:[%s186 + $0xe0] sm:$0xff]
        %v265 = vld [vmem:[%s186 + $0xe8] sm:$0xff]
        %v266 = vld [vmem:[%s186 + $0xf0] sm:$0xff]
        %v267 = vld [vmem:[%s186 + $0xf8] sm:$0xff]
        %v268 = vld [vmem:[%s186 + $0x100] sm:$0xff]
        %v269 = vld [vmem:[%s186 + $0x108] sm:$0xff]
        %v270 = vld [vmem:[%s186 + $0x110] sm:$0xff]
        %v271 = vld [vmem:[%s186 + $0x118] sm:$0xff]
        %v272 = vld [vmem:[%s186 + $0x120] sm:$0xff]
        %v273 = vld [vmem:[%s186 + $0x128] sm:$0xff]
        %v274 = vld [vmem:[%s186 + $0x130] sm:$0xff]
        %v275 = vld [vmem:[%s186 + $0x138] sm:$0xff]
        %v276 = vld [vmem:[%s186 + $0x140] sm:$0xff]
        %v277 = vld [vmem:[%s186 + $0x148] sm:$0xff]
        %v278 = vld [vmem:[%s186 + $0x150] sm:$0xff]
        %v279 = vld [vmem:[%s186 + $0x158] sm:$0xff]
        %v280 = vld [vmem:[%s186 + $0x160] sm:$0xff]
        %v281 = vld [vmem:[%s186 + $0x168] sm:$0xff]
        %v282 = vld [vmem:[%s186 + $0x170] sm:$0xff]
        %v283 = vld [vmem:[%s186 + $0x178] sm:$0xff]
        %v284 = vld [vmem:[%s195] sm:$0xff]
        %v285 = vld [vmem:[%s195 + $0x8] sm:$0xff]
        %v286 = vld [vmem:[%s195 + $0x10] sm:$0xff]
        %v287 = vld [vmem:[%s195 + $0x18] sm:$0xff]
        %v288 = vld [vmem:[%s195 + $0x20] sm:$0xff]
        %v289 = vld [vmem:[%s195 + $0x28] sm:$0xff]
        %v290 = vld [vmem:[%s195 + $0x30] sm:$0xff]
        %v291 = vld [vmem:[%s195 + $0x38] sm:$0xff]
        %v292 = vld [vmem:[%s195 + $0x40] sm:$0xff]
        %v293 = vld [vmem:[%s195 + $0x48] sm:$0xff]
        %v294 = vld [vmem:[%s195 + $0x50] sm:$0xff]
        %v295 = vld [vmem:[%s195 + $0x58] sm:$0xff]
        %v296 = vld [vmem:[%s195 + $0x60] sm:$0xff]
        %v297 = vld [vmem:[%s195 + $0x68] sm:$0xff]
        %v298 = vld [vmem:[%s195 + $0x70] sm:$0xff]
        %v299 = vld [vmem:[%s195 + $0x78] sm:$0xff]
        %v300 = vld [vmem:[%s195 + $0x80] sm:$0xff]
        %v301 = vld [vmem:[%s195 + $0x88] sm:$0xff]
        %v302 = vld [vmem:[%s195 + $0x90] sm:$0xff]
        %v303 = vld [vmem:[%s195 + $0x98] sm:$0xff]
        %v304 = vld [vmem:[%s195 + $0xa0] sm:$0xff]
        %v305 = vld [vmem:[%s195 + $0xa8] sm:$0xff]
        %v306 = vld [vmem:[%s195 + $0xb0] sm:$0xff]
        %v307 = vld [vmem:[%s195 + $0xb8] sm:$0xff]
        %v308 = vld [vmem:[%s195 + $0xc0] sm:$0xff]
        %v309 = vld [vmem:[%s195 + $0xc8] sm:$0xff]
        %v310 = vld [vmem:[%s195 + $0xd0] sm:$0xff]
        %v311 = vld [vmem:[%s195 + $0xd8] sm:$0xff]
        %v312 = vld [vmem:[%s195 + $0xe0] sm:$0xff]
        %v313 = vld [vmem:[%s195 + $0xe8] sm:$0xff]
        %v314 = vld [vmem:[%s195 + $0xf0] sm:$0xff]
        %v315 = vld [vmem:[%s195 + $0xf8] sm:$0xff]
        %v316 = vld [vmem:[%s195 + $0x100] sm:$0xff]
        %v317 = vld [vmem:[%s195 + $0x108] sm:$0xff]
        %v318 = vld [vmem:[%s195 + $0x110] sm:$0xff]
        %v319 = vld [vmem:[%s195 + $0x118] sm:$0xff]
        %v320 = vld [vmem:[%s195 + $0x120] sm:$0xff]
        %v321 = vld [vmem:[%s195 + $0x128] sm:$0xff]
        %v322 = vld [vmem:[%s195 + $0x130] sm:$0xff]
        %v323 = vld [vmem:[%s195 + $0x138] sm:$0xff]
        %v324 = vld [vmem:[%s195 + $0x140] sm:$0xff]
        %v325 = vld [vmem:[%s195 + $0x148] sm:$0xff]
        %v326 = vld [vmem:[%s195 + $0x150] sm:$0xff]
        %v327 = vld [vmem:[%s195 + $0x158] sm:$0xff]
        %v328 = vld [vmem:[%s195 + $0x160] sm:$0xff]
        %v329 = vld [vmem:[%s195 + $0x168] sm:$0xff]
        %v330 = vld [vmem:[%s195 + $0x170] sm:$0xff]
        %v331 = vld [vmem:[%s195 + $0x178] sm:$0xff]
        %v332 = vld [vmem:[%s195 + $0x180] sm:$0xff]
        %v333 = vld [vmem:[%s195 + $0x188] sm:$0xff]
        %v334 = vld [vmem:[%s195 + $0x190] sm:$0xff]
        %v335 = vld [vmem:[%s195 + $0x198] sm:$0xff]
        %v336 = vld [vmem:[%s195 + $0x1a0] sm:$0xff]
        %v337 = vld [vmem:[%s195 + $0x1a8] sm:$0xff]
        %v338 = vld [vmem:[%s195 + $0x1b0] sm:$0xff]
        %v339 = vld [vmem:[%s195 + $0x1b8] sm:$0xff]
        %v340 = vld [vmem:[%s195 + $0x1c0] sm:$0xff]
        %v341 = vld [vmem:[%s195 + $0x1c8] sm:$0xff]
        %v342 = vld [vmem:[%s195 + $0x1d0] sm:$0xff]
        %v343 = vld [vmem:[%s195 + $0x1d8] sm:$0xff]
        %v344 = vld [vmem:[%s195 + $0x1e0] sm:$0xff]
        %v345 = vld [vmem:[%s195 + $0x1e8] sm:$0xff]
        %v346 = vld [vmem:[%s195 + $0x1f0] sm:$0xff]
        %v347 = vld [vmem:[%s195 + $0x1f8] sm:$0xff]
        %v348 = vld [vmem:[%s195 + $0x200] sm:$0xff]
        %v349 = vld [vmem:[%s195 + $0x208] sm:$0xff]
        %v350 = vld [vmem:[%s195 + $0x210] sm:$0xff]
        %v351 = vld [vmem:[%s195 + $0x218] sm:$0xff]
        %v352 = vld [vmem:[%s195 + $0x220] sm:$0xff]
        %v353 = vld [vmem:[%s195 + $0x228] sm:$0xff]
        %v354 = vld [vmem:[%s195 + $0x230] sm:$0xff]
        %v355 = vld [vmem:[%s195 + $0x238] sm:$0xff]
        %v356 = vld [vmem:[%s195 + $0x240] sm:$0xff]
        %v357 = vld [vmem:[%s195 + $0x248] sm:$0xff]
        %v358 = vld [vmem:[%s195 + $0x250] sm:$0xff]
        %v359 = vld [vmem:[%s195 + $0x258] sm:$0xff]
        %v360 = vld [vmem:[%s195 + $0x260] sm:$0xff]
        %v361 = vld [vmem:[%s195 + $0x268] sm:$0xff]
        %v362 = vld [vmem:[%s195 + $0x270] sm:$0xff]
        %v363 = vld [vmem:[%s195 + $0x278] sm:$0xff]
        %v364 = vld [vmem:[%s195 + $0x280] sm:$0xff]
        %v365 = vld [vmem:[%s195 + $0x288] sm:$0xff]
        %v366 = vld [vmem:[%s195 + $0x290] sm:$0xff]
        %v367 = vld [vmem:[%s195 + $0x298] sm:$0xff]
        %v368 = vld [vmem:[%s195 + $0x2a0] sm:$0xff]
        %v369 = vld [vmem:[%s195 + $0x2a8] sm:$0xff]
        %v370 = vld [vmem:[%s195 + $0x2b0] sm:$0xff]
        %v371 = vld [vmem:[%s195 + $0x2b8] sm:$0xff]
        %v372 = vld [vmem:[%s195 + $0x2c0] sm:$0xff]
        %v373 = vld [vmem:[%s195 + $0x2c8] sm:$0xff]
        %v374 = vld [vmem:[%s195 + $0x2d0] sm:$0xff]
        %v375 = vld [vmem:[%s195 + $0x2d8] sm:$0xff]
        %v376 = vld [vmem:[%s195 + $0x2e0] sm:$0xff]
        %v377 = vld [vmem:[%s195 + $0x2e8] sm:$0xff]
        %v378 = vld [vmem:[%s195 + $0x2f0] sm:$0xff]
        %v379 = vld [vmem:[%s195 + $0x2f8] sm:$0xff]
        %v380 = vld [vmem:[%s195 + $0x300] sm:$0xff]
        %v381 = vld [vmem:[%s195 + $0x308] sm:$0xff]
        %v382 = vld [vmem:[%s195 + $0x310] sm:$0xff]
        %v383 = vld [vmem:[%s195 + $0x318] sm:$0xff]
        %v384 = vld [vmem:[%s195 + $0x320] sm:$0xff]
        %v385 = vld [vmem:[%s195 + $0x328] sm:$0xff]
        %v386 = vld [vmem:[%s195 + $0x330] sm:$0xff]
        %v387 = vld [vmem:[%s195 + $0x338] sm:$0xff]
        %v388 = vld [vmem:[%s195 + $0x340] sm:$0xff]
        %v389 = vld [vmem:[%s195 + $0x348] sm:$0xff]
        %v390 = vld [vmem:[%s195 + $0x350] sm:$0xff]
        %v391 = vld [vmem:[%s195 + $0x358] sm:$0xff]
        %v392 = vld [vmem:[%s195 + $0x360] sm:$0xff]
        %v393 = vld [vmem:[%s195 + $0x368] sm:$0xff]
        %v394 = vld [vmem:[%s195 + $0x370] sm:$0xff]
        %v395 = vld [vmem:[%s195 + $0x378] sm:$0xff]
        %v396 = vld [vmem:[%s195 + $0x380] sm:$0xff]
        %v397 = vld [vmem:[%s195 + $0x388] sm:$0xff]
        %v398 = vld [vmem:[%s195 + $0x390] sm:$0xff]
        %v399 = vld [vmem:[%s195 + $0x398] sm:$0xff]
        %v400 = vld [vmem:[%s195 + $0x3a0] sm:$0xff]
        %v401 = vld [vmem:[%s195 + $0x3a8] sm:$0xff]
        %v402 = vld [vmem:[%s195 + $0x3b0] sm:$0xff]
        %v403 = vld [vmem:[%s195 + $0x3b8] sm:$0xff]
        %v404 = vld [vmem:[%s195 + $0x3c0] sm:$0xff]
        %v405 = vld [vmem:[%s195 + $0x3c8] sm:$0xff]
        %v406 = vld [vmem:[%s195 + $0x3d0] sm:$0xff]
        %v407 = vld [vmem:[%s195 + $0x3d8] sm:$0xff]
        %v408 = vld [vmem:[%s195 + $0x3e0] sm:$0xff]
        %v409 = vld [vmem:[%s195 + $0x3e8] sm:$0xff]
        %v410 = vld [vmem:[%s195 + $0x3f0] sm:$0xff]
        %v411 = vld [vmem:[%s195 + $0x3f8] sm:$0xff]
        %v412 = vld [vmem:[%s195 + $0x400] sm:$0xff]
        %v413 = vld [vmem:[%s195 + $0x408] sm:$0xff]
        %v414 = vld [vmem:[%s195 + $0x410] sm:$0xff]
        %v415 = vld [vmem:[%s195 + $0x418] sm:$0xff]
        %v416 = vld [vmem:[%s195 + $0x420] sm:$0xff]
        %v417 = vld [vmem:[%s195 + $0x428] sm:$0xff]
        %v418 = vld [vmem:[%s195 + $0x430] sm:$0xff]
        %v419 = vld [vmem:[%s195 + $0x438] sm:$0xff]
        %v420 = vld [vmem:[%s195 + $0x440] sm:$0xff]
        %v421 = vld [vmem:[%s195 + $0x448] sm:$0xff]
        %v422 = vld [vmem:[%s195 + $0x450] sm:$0xff]
        %v423 = vld [vmem:[%s195 + $0x458] sm:$0xff]
        %v424 = vld [vmem:[%s195 + $0x460] sm:$0xff]
        %v425 = vld [vmem:[%s195 + $0x468] sm:$0xff]
        %v426 = vld [vmem:[%s195 + $0x470] sm:$0xff]
        %v427 = vld [vmem:[%s195 + $0x478] sm:$0xff]
        %v428 = vld [vmem:[%s195 + $0x480] sm:$0xff]
        %v429 = vld [vmem:[%s195 + $0x488] sm:$0xff]
        %v430 = vld [vmem:[%s195 + $0x490] sm:$0xff]
        %v431 = vld [vmem:[%s195 + $0x498] sm:$0xff]
        %v432 = vld [vmem:[%s195 + $0x4a0] sm:$0xff]
        %v433 = vld [vmem:[%s195 + $0x4a8] sm:$0xff]
        %v434 = vld [vmem:[%s195 + $0x4b0] sm:$0xff]
        %v435 = vld [vmem:[%s195 + $0x4b8] sm:$0xff]
        %v436 = vld [vmem:[%s195 + $0x4c0] sm:$0xff]
        %v437 = vld [vmem:[%s195 + $0x4c8] sm:$0xff]
        %v438 = vld [vmem:[%s195 + $0x4d0] sm:$0xff]
        %v439 = vld [vmem:[%s195 + $0x4d8] sm:$0xff]
        %v440 = vld [vmem:[%s195 + $0x4e0] sm:$0xff]
        %v441 = vld [vmem:[%s195 + $0x4e8] sm:$0xff]
        %v442 = vld [vmem:[%s195 + $0x4f0] sm:$0xff]
        %v443 = vld [vmem:[%s195 + $0x4f8] sm:$0xff]
        %v444 = vld [vmem:[%s195 + $0x500] sm:$0xff]
        %v445 = vld [vmem:[%s195 + $0x508] sm:$0xff]
        %v446 = vld [vmem:[%s195 + $0x510] sm:$0xff]
        %v447 = vld [vmem:[%s195 + $0x518] sm:$0xff]
        %v448 = vld [vmem:[%s195 + $0x520] sm:$0xff]
        %v449 = vld [vmem:[%s195 + $0x528] sm:$0xff]
        %v450 = vld [vmem:[%s195 + $0x530] sm:$0xff]
        %v451 = vld [vmem:[%s195 + $0x538] sm:$0xff]
        %v452 = vld [vmem:[%s195 + $0x540] sm:$0xff]
        %v453 = vld [vmem:[%s195 + $0x548] sm:$0xff]
        %v454 = vld [vmem:[%s195 + $0x550] sm:$0xff]
        %v455 = vld [vmem:[%s195 + $0x558] sm:$0xff]
        %v456 = vld [vmem:[%s195 + $0x560] sm:$0xff]
        %v457 = vld [vmem:[%s195 + $0x568] sm:$0xff]
        %v458 = vld [vmem:[%s195 + $0x570] sm:$0xff]
        %v459 = vld [vmem:[%s195 + $0x578] sm:$0xff]
        %v460 = vld [vmem:[%s195 + $0x580] sm:$0xff]
        %v461 = vld [vmem:[%s195 + $0x588] sm:$0xff]
        %v462 = vld [vmem:[%s195 + $0x590] sm:$0xff]
        %v463 = vld [vmem:[%s195 + $0x598] sm:$0xff]
        %v464 = vld [vmem:[%s195 + $0x5a0] sm:$0xff]
        %v465 = vld [vmem:[%s195 + $0x5a8] sm:$0xff]
        %v466 = vld [vmem:[%s195 + $0x5b0] sm:$0xff]
        %v467 = vld [vmem:[%s195 + $0x5b8] sm:$0xff]
        %v468 = vld [vmem:[%s195 + $0x5c0] sm:$0xff]
        %v469 = vld [vmem:[%s195 + $0x5c8] sm:$0xff]
        %v470 = vld [vmem:[%s195 + $0x5d0] sm:$0xff]
        %v471 = vld [vmem:[%s195 + $0x5d8] sm:$0xff]
        %v472 = vld [vmem:[%s195 + $0x5e0] sm:$0xff]
        %v473 = vld [vmem:[%s195 + $0x5e8] sm:$0xff]
        %v474 = vld [vmem:[%s195 + $0x5f0] sm:$0xff]
        %v475 = vld [vmem:[%s195 + $0x5f8] sm:$0xff]
        %v476 = vld [vmem:[%s195 + $0x600] sm:$0x3]
        %v477 = vld [vmem:[%s195 + $0x608] sm:$0x3]
        %v478 = vld [vmem:[%s195 + $0x610] sm:$0x3]
        %v479 = vld [vmem:[%s195 + $0x618] sm:$0x3]
        %v480 = vld [vmem:[%s195 + $0x620] sm:$0x3]
        %v481 = vld [vmem:[%s195 + $0x628] sm:$0x3]
        %v482 = vld [vmem:[%s195 + $0x630] sm:$0x3]
        %v483 = vld [vmem:[%s195 + $0x638] sm:$0x3]
        %v484 = vld [vmem:[%s195 + $0x640] sm:$0x3]
        %v485 = vld [vmem:[%s195 + $0x648] sm:$0x3]
        %v486 = vld [vmem:[%s195 + $0x650] sm:$0x3]
        %v487 = vld [vmem:[%s195 + $0x658] sm:$0x3]
        %v488 = vld [vmem:[%s195 + $0x660] sm:$0x3]
        %v489 = vld [vmem:[%s195 + $0x668] sm:$0x3]
        %v490 = vld [vmem:[%s195 + $0x670] sm:$0x3]
        %v491 = vld [vmem:[%s195 + $0x678] sm:$0x3]
        %v492 = vld [vmem:[%s195 + $0x680] sm:$0x3]
        %v493 = vld [vmem:[%s195 + $0x688] sm:$0x3]
        %v494 = vld [vmem:[%s195 + $0x690] sm:$0x3]
        %v495 = vld [vmem:[%s195 + $0x698] sm:$0x3]
        %v496 = vld [vmem:[%s195 + $0x6a0] sm:$0x3]
        %v497 = vld [vmem:[%s195 + $0x6a8] sm:$0x3]
        %v498 = vld [vmem:[%s195 + $0x6b0] sm:$0x3]
        %v499 = vld [vmem:[%s195 + $0x6b8] sm:$0x3]
        %v500 = vld [vmem:[%s195 + $0x6c0] sm:$0x3]
        %v501 = vld [vmem:[%s195 + $0x6c8] sm:$0x3]
        %v502 = vld [vmem:[%s195 + $0x6d0] sm:$0x3]
        %v503 = vld [vmem:[%s195 + $0x6d8] sm:$0x3]
        %v504 = vld [vmem:[%s195 + $0x6e0] sm:$0x3]
        %v505 = vld [vmem:[%s195 + $0x6e8] sm:$0x3]
        %v506 = vld [vmem:[%s195 + $0x6f0] sm:$0x3]
        %v507 = vld [vmem:[%s195 + $0x6f8] sm:$0x3]
        %v508 = vld [vmem:[%s195 + $0x700] sm:$0x3]
        %v509 = vld [vmem:[%s195 + $0x708] sm:$0x3]
        %v510 = vld [vmem:[%s195 + $0x710] sm:$0x3]
        %v511 = vld [vmem:[%s195 + $0x718] sm:$0x3]
        %v512 = vld [vmem:[%s195 + $0x720] sm:$0x3]
        %v513 = vld [vmem:[%s195 + $0x728] sm:$0x3]
        %v514 = vld [vmem:[%s195 + $0x730] sm:$0x3]
        %v515 = vld [vmem:[%s195 + $0x738] sm:$0x3]
        %v516 = vld [vmem:[%s195 + $0x740] sm:$0x3]
        %v517 = vld [vmem:[%s195 + $0x748] sm:$0x3]
        %v518 = vld [vmem:[%s195 + $0x750] sm:$0x3]
        %v519 = vld [vmem:[%s195 + $0x758] sm:$0x3]
        %v520 = vld [vmem:[%s195 + $0x760] sm:$0x3]
        %v521 = vld [vmem:[%s195 + $0x768] sm:$0x3]
        %v522 = vld [vmem:[%s195 + $0x770] sm:$0x3]
        %v523 = vld [vmem:[%s195 + $0x778] sm:$0x3]
        %v524 = vld [vmem:[%s195 + $0x780] sm:$0x3]
        %v525 = vld [vmem:[%s195 + $0x788] sm:$0x3]
        %v526 = vld [vmem:[%s195 + $0x790] sm:$0x3]
        %v527 = vld [vmem:[%s195 + $0x798] sm:$0x3]
        %v528 = vld [vmem:[%s195 + $0x7a0] sm:$0x3]
        %v529 = vld [vmem:[%s195 + $0x7a8] sm:$0x3]
        %v530 = vld [vmem:[%s195 + $0x7b0] sm:$0x3]
        %v531 = vld [vmem:[%s195 + $0x7b8] sm:$0x3]
        %v532 = vld [vmem:[%s195 + $0x7c0] sm:$0x3]
        %v533 = vld [vmem:[%s195 + $0x7c8] sm:$0x3]
        %v534 = vld [vmem:[%s195 + $0x7d0] sm:$0x3]
        %v535 = vld [vmem:[%s195 + $0x7d8] sm:$0x3]
        %v536 = vld [vmem:[%s195 + $0x7e0] sm:$0x3]
        %v537 = vld [vmem:[%s195 + $0x7e8] sm:$0x3]
        %v538 = vld [vmem:[%s195 + $0x7f0] sm:$0x3]
        %v539 = vld [vmem:[%s195 + $0x7f8] sm:$0x3]
        %v540 = vld [vmem:[%s195 + $0x800] sm:$0x3]
        %v541 = vld [vmem:[%s195 + $0x808] sm:$0x3]
        %v542 = vld [vmem:[%s195 + $0x810] sm:$0x3]
        %v543 = vld [vmem:[%s195 + $0x818] sm:$0x3]
        %v544 = vld [vmem:[%s195 + $0x820] sm:$0x3]
        %v545 = vld [vmem:[%s195 + $0x828] sm:$0x3]
        %v546 = vld [vmem:[%s195 + $0x830] sm:$0x3]
        %v547 = vld [vmem:[%s195 + $0x838] sm:$0x3]
        %v548 = vld [vmem:[%s195 + $0x840] sm:$0x3]
        %v549 = vld [vmem:[%s195 + $0x848] sm:$0x3]
        %v550 = vld [vmem:[%s195 + $0x850] sm:$0x3]
        %v551 = vld [vmem:[%s195 + $0x858] sm:$0x3]
        %v552 = vld [vmem:[%s195 + $0x860] sm:$0x3]
        %v553 = vld [vmem:[%s195 + $0x868] sm:$0x3]
        %v554 = vld [vmem:[%s195 + $0x870] sm:$0x3]
        %v555 = vld [vmem:[%s195 + $0x878] sm:$0x3]
        %v556 = vld [vmem:[%s195 + $0x880] sm:$0x3]
        %v557 = vld [vmem:[%s195 + $0x888] sm:$0x3]
        %v558 = vld [vmem:[%s195 + $0x890] sm:$0x3]
        %v559 = vld [vmem:[%s195 + $0x898] sm:$0x3]
        %v560 = vld [vmem:[%s195 + $0x8a0] sm:$0x3]
        %v561 = vld [vmem:[%s195 + $0x8a8] sm:$0x3]
        %v562 = vld [vmem:[%s195 + $0x8b0] sm:$0x3]
        %v563 = vld [vmem:[%s195 + $0x8b8] sm:$0x3]
        %v564 = vld [vmem:[%s195 + $0x8c0] sm:$0x3]
        %v565 = vld [vmem:[%s195 + $0x8c8] sm:$0x3]
        %v566 = vld [vmem:[%s195 + $0x8d0] sm:$0x3]
        %v567 = vld [vmem:[%s195 + $0x8d8] sm:$0x3]
        %v568 = vld [vmem:[%s195 + $0x8e0] sm:$0x3]
        %v569 = vld [vmem:[%s195 + $0x8e8] sm:$0x3]
        %v570 = vld [vmem:[%s195 + $0x8f0] sm:$0x3]
        %v571 = vld [vmem:[%s195 + $0x8f8] sm:$0x3]
        %v572 = vld [vmem:[%s195 + $0x900] sm:$0x3]
        %v573 = vld [vmem:[%s195 + $0x908] sm:$0x3]
        %v574 = vld [vmem:[%s195 + $0x910] sm:$0x3]
        %v575 = vld [vmem:[%s195 + $0x918] sm:$0x3]
        %v576 = vld [vmem:[%s195 + $0x920] sm:$0x3]
        %v577 = vld [vmem:[%s195 + $0x928] sm:$0x3]
        %v578 = vld [vmem:[%s195 + $0x930] sm:$0x3]
        %v579 = vld [vmem:[%s195 + $0x938] sm:$0x3]
        %v580 = vld [vmem:[%s195 + $0x940] sm:$0x3]
        %v581 = vld [vmem:[%s195 + $0x948] sm:$0x3]
        %v582 = vld [vmem:[%s195 + $0x950] sm:$0x3]
        %v583 = vld [vmem:[%s195 + $0x958] sm:$0x3]
        %v584 = vld [vmem:[%s195 + $0x960] sm:$0x3]
        %v585 = vld [vmem:[%s195 + $0x968] sm:$0x3]
        %v586 = vld [vmem:[%s195 + $0x970] sm:$0x3]
        %v587 = vld [vmem:[%s195 + $0x978] sm:$0x3]
        %v588 = vld [vmem:[%s195 + $0x980] sm:$0x3]
        %v589 = vld [vmem:[%s195 + $0x988] sm:$0x3]
        %v590 = vld [vmem:[%s195 + $0x990] sm:$0x3]
        %v591 = vld [vmem:[%s195 + $0x998] sm:$0x3]
        %v592 = vld [vmem:[%s195 + $0x9a0] sm:$0x3]
        %v593 = vld [vmem:[%s195 + $0x9a8] sm:$0x3]
        %v594 = vld [vmem:[%s195 + $0x9b0] sm:$0x3]
        %v595 = vld [vmem:[%s195 + $0x9b8] sm:$0x3]
        %v596 = vld [vmem:[%s195 + $0x9c0] sm:$0x3]
        %v597 = vld [vmem:[%s195 + $0x9c8] sm:$0x3]
        %v598 = vld [vmem:[%s195 + $0x9d0] sm:$0x3]
        %v599 = vld [vmem:[%s195 + $0x9d8] sm:$0x3]
        %v600 = vld [vmem:[%s195 + $0x9e0] sm:$0x3]
        %v601 = vld [vmem:[%s195 + $0x9e8] sm:$0x3]
        %v602 = vld [vmem:[%s195 + $0x9f0] sm:$0x3]
        %v603 = vld [vmem:[%s195 + $0x9f8] sm:$0x3]
        %v604 = vld [vmem:[%s195 + $0xa00] sm:$0x3]
        %v605 = vld [vmem:[%s195 + $0xa08] sm:$0x3]
        %v606 = vld [vmem:[%s195 + $0xa10] sm:$0x3]
        %v607 = vld [vmem:[%s195 + $0xa18] sm:$0x3]
        %v608 = vld [vmem:[%s195 + $0xa20] sm:$0x3]
        %v609 = vld [vmem:[%s195 + $0xa28] sm:$0x3]
        %v610 = vld [vmem:[%s195 + $0xa30] sm:$0x3]
        %v611 = vld [vmem:[%s195 + $0xa38] sm:$0x3]
        %v612 = vld [vmem:[%s195 + $0xa40] sm:$0x3]
        %v613 = vld [vmem:[%s195 + $0xa48] sm:$0x3]
        %v614 = vld [vmem:[%s195 + $0xa50] sm:$0x3]
        %v615 = vld [vmem:[%s195 + $0xa58] sm:$0x3]
        %v616 = vld [vmem:[%s195 + $0xa60] sm:$0x3]
        %v617 = vld [vmem:[%s195 + $0xa68] sm:$0x3]
        %v618 = vld [vmem:[%s195 + $0xa70] sm:$0x3]
        %v619 = vld [vmem:[%s195 + $0xa78] sm:$0x3]
        %v620 = vld [vmem:[%s195 + $0xa80] sm:$0x3]
        %v621 = vld [vmem:[%s195 + $0xa88] sm:$0x3]
        %v622 = vld [vmem:[%s195 + $0xa90] sm:$0x3]
        %v623 = vld [vmem:[%s195 + $0xa98] sm:$0x3]
        %v624 = vld [vmem:[%s195 + $0xaa0] sm:$0x3]
        %v625 = vld [vmem:[%s195 + $0xaa8] sm:$0x3]
        %v626 = vld [vmem:[%s195 + $0xab0] sm:$0x3]
        %v627 = vld [vmem:[%s195 + $0xab8] sm:$0x3]
        %v628 = vld [vmem:[%s195 + $0xac0] sm:$0x3]
        %v629 = vld [vmem:[%s195 + $0xac8] sm:$0x3]
        %v630 = vld [vmem:[%s195 + $0xad0] sm:$0x3]
        %v631 = vld [vmem:[%s195 + $0xad8] sm:$0x3]
        %v632 = vld [vmem:[%s195 + $0xae0] sm:$0x3]
        %v633 = vld [vmem:[%s195 + $0xae8] sm:$0x3]
        %v634 = vld [vmem:[%s195 + $0xaf0] sm:$0x3]
        %v635 = vld [vmem:[%s195 + $0xaf8] sm:$0x3]
        %v636 = vld [vmem:[%s195 + $0xb00] sm:$0x3]
        %v637 = vld [vmem:[%s195 + $0xb08] sm:$0x3]
        %v638 = vld [vmem:[%s195 + $0xb10] sm:$0x3]
        %v639 = vld [vmem:[%s195 + $0xb18] sm:$0x3]
        %v640 = vld [vmem:[%s195 + $0xb20] sm:$0x3]
        %v641 = vld [vmem:[%s195 + $0xb28] sm:$0x3]
        %v642 = vld [vmem:[%s195 + $0xb30] sm:$0x3]
        %v643 = vld [vmem:[%s195 + $0xb38] sm:$0x3]
        %v644 = vld [vmem:[%s195 + $0xb40] sm:$0x3]
        %v645 = vld [vmem:[%s195 + $0xb48] sm:$0x3]
        %v646 = vld [vmem:[%s195 + $0xb50] sm:$0x3]
        %v647 = vld [vmem:[%s195 + $0xb58] sm:$0x3]
        %v648 = vld [vmem:[%s195 + $0xb60] sm:$0x3]
        %v649 = vld [vmem:[%s195 + $0xb68] sm:$0x3]
        %v650 = vld [vmem:[%s195 + $0xb70] sm:$0x3]
        %v651 = vld [vmem:[%s195 + $0xb78] sm:$0x3]
        %v652 = vld [vmem:[%s195 + $0xb80] sm:$0x3]
        %v653 = vld [vmem:[%s195 + $0xb88] sm:$0x3]
        %v654 = vld [vmem:[%s195 + $0xb90] sm:$0x3]
        %v655 = vld [vmem:[%s195 + $0xb98] sm:$0x3]
        %v656 = vld [vmem:[%s195 + $0xba0] sm:$0x3]
        %v657 = vld [vmem:[%s195 + $0xba8] sm:$0x3]
        %v658 = vld [vmem:[%s195 + $0xbb0] sm:$0x3]
        %v659 = vld [vmem:[%s195 + $0xbb8] sm:$0x3]
        %v660 = vld [vmem:[%s195 + $0xbc0] sm:$0x3]
        %v661 = vld [vmem:[%s195 + $0xbc8] sm:$0x3]
        %v662 = vld [vmem:[%s195 + $0xbd0] sm:$0x3]
        %v663 = vld [vmem:[%s195 + $0xbd8] sm:$0x3]
        %v664 = vld [vmem:[%s195 + $0xbe0] sm:$0x3]
        %v665 = vld [vmem:[%s195 + $0xbe8] sm:$0x3]
        %v666 = vld [vmem:[%s195 + $0xbf0] sm:$0x3]
        %v667 = vld [vmem:[%s195 + $0xbf8] sm:$0x3]
        %v668 = vld [vmem:[%s229] sm:$0x3]
        %v718 = vunpack.c.l.s4 1966171168
        %v719 = vunpack.c.0.s8 %v718
        %v720 = vlaneseq
        %v721 = vshrl.u32 %v720, 7
        %v722 = vsub.s32 %v719, %v721
        %v723 = vrot.slane %v236, %v722
        %v725 = vunpack.c.l.s4 1966171168
        %v726 = vunpack.c.0.s8 %v725
        %v727 = vlaneseq
        %v728 = vshrl.u32 %v727, 7
        %v729 = vsub.s32 %v726, %v728
        %v730 = vrot.slane %v237, %v729
        %v731 = vcombine.low %v723, %v730
        %v732 = vcombine.high %v723, %v730
        %v734 = vunpack.c.l.s4 1966171168
        %v735 = vunpack.c.0.s8 %v734
        %v736 = vlaneseq
        %v737 = vshrl.u32 %v736, 7
        %v738 = vsub.s32 %v735, %v737
        %v739 = vrot.slane %v238, %v738
        %v741 = vunpack.c.l.s4 1966171168
        %v742 = vunpack.c.0.s8 %v741
        %v743 = vlaneseq
        %v744 = vshrl.u32 %v743, 7
        %v745 = vsub.s32 %v742, %v744
        %v746 = vrot.slane %v239, %v745
        %v747 = vcombine.low %v739, %v746
        %v748 = vcombine.high %v739, %v746
        %v750 = vunpack.c.l.s4 1966171168
        %v751 = vunpack.c.0.s8 %v750
        %v752 = vlaneseq
        %v753 = vshrl.u32 %v752, 7
        %v754 = vsub.s32 %v751, %v753
        %v755 = vrot.slane %v240, %v754
        %v757 = vunpack.c.l.s4 1966171168
        %v758 = vunpack.c.0.s8 %v757
        %v759 = vlaneseq
        %v760 = vshrl.u32 %v759, 7
        %v761 = vsub.s32 %v758, %v760
        %v762 = vrot.slane %v241, %v761
        %v763 = vcombine.low %v755, %v762
        %v764 = vcombine.high %v755, %v762
        %v766 = vunpack.c.l.s4 1966171168
        %v767 = vunpack.c.0.s8 %v766
        %v768 = vlaneseq
        %v769 = vshrl.u32 %v768, 7
        %v770 = vsub.s32 %v767, %v769
        %v771 = vrot.slane %v242, %v770
        %v773 = vunpack.c.l.s4 1966171168
        %v774 = vunpack.c.0.s8 %v773
        %v775 = vlaneseq
        %v776 = vshrl.u32 %v775, 7
        %v777 = vsub.s32 %v774, %v776
        %v778 = vrot.slane %v243, %v777
        %v779 = vcombine.low %v771, %v778
        %v780 = vcombine.high %v771, %v778
        %v782 = vunpack.c.l.s4 1966171168
        %v783 = vunpack.c.0.s8 %v782
        %v784 = vlaneseq
        %v785 = vshrl.u32 %v784, 7
        %v786 = vsub.s32 %v783, %v785
        %v787 = vrot.slane %v244, %v786
        %v789 = vunpack.c.l.s4 1966171168
        %v790 = vunpack.c.0.s8 %v789
        %v791 = vlaneseq
        %v792 = vshrl.u32 %v791, 7
        %v793 = vsub.s32 %v790, %v792
        %v794 = vrot.slane %v245, %v793
        %v795 = vcombine.low %v787, %v794
        %v796 = vcombine.high %v787, %v794
        %v798 = vunpack.c.l.s4 1966171168
        %v799 = vunpack.c.0.s8 %v798
        %v800 = vlaneseq
        %v801 = vshrl.u32 %v800, 7
        %v802 = vsub.s32 %v799, %v801
        %v803 = vrot.slane %v246, %v802
        %v805 = vunpack.c.l.s4 1966171168
        %v806 = vunpack.c.0.s8 %v805
        %v807 = vlaneseq
        %v808 = vshrl.u32 %v807, 7
        %v809 = vsub.s32 %v806, %v808
        %v810 = vrot.slane %v247, %v809
        %v811 = vcombine.low %v803, %v810
        %v812 = vcombine.high %v803, %v810
        %v814 = vunpack.c.l.s4 1966171168
        %v815 = vunpack.c.0.s8 %v814
        %v816 = vlaneseq
        %v817 = vshrl.u32 %v816, 7
        %v818 = vsub.s32 %v815, %v817
        %v819 = vrot.slane %v248, %v818
        %v821 = vunpack.c.l.s4 1966171168
        %v822 = vunpack.c.0.s8 %v821
        %v823 = vlaneseq
        %v824 = vshrl.u32 %v823, 7
        %v825 = vsub.s32 %v822, %v824
        %v826 = vrot.slane %v249, %v825
        %v827 = vcombine.low %v819, %v826
        %v828 = vcombine.high %v819, %v826
        %v830 = vunpack.c.l.s4 1966171168
        %v831 = vunpack.c.0.s8 %v830
        %v832 = vlaneseq
        %v833 = vshrl.u32 %v832, 7
        %v834 = vsub.s32 %v831, %v833
        %v835 = vrot.slane %v250, %v834
        %v837 = vunpack.c.l.s4 1966171168
        %v838 = vunpack.c.0.s8 %v837
        %v839 = vlaneseq
        %v840 = vshrl.u32 %v839, 7
        %v841 = vsub.s32 %v838, %v840
        %v842 = vrot.slane %v251, %v841
        %v843 = vcombine.low %v835, %v842
        %v844 = vcombine.high %v835, %v842
        %v846 = vunpack.c.l.s4 1966171168
        %v847 = vunpack.c.0.s8 %v846
        %v848 = vlaneseq
        %v849 = vshrl.u32 %v848, 7
        %v850 = vsub.s32 %v847, %v849
        %v851 = vrot.slane %v252, %v850
        %v853 = vunpack.c.l.s4 1966171168
        %v854 = vunpack.c.0.s8 %v853
        %v855 = vlaneseq
        %v856 = vshrl.u32 %v855, 7
        %v857 = vsub.s32 %v854, %v856
        %v858 = vrot.slane %v253, %v857
        %v859 = vcombine.low %v851, %v858
        %v860 = vcombine.high %v851, %v858
        %v862 = vunpack.c.l.s4 1966171168
        %v863 = vunpack.c.0.s8 %v862
        %v864 = vlaneseq
        %v865 = vshrl.u32 %v864, 7
        %v866 = vsub.s32 %v863, %v865
        %v867 = vrot.slane %v254, %v866
        %v869 = vunpack.c.l.s4 1966171168
        %v870 = vunpack.c.0.s8 %v869
        %v871 = vlaneseq
        %v872 = vshrl.u32 %v871, 7
        %v873 = vsub.s32 %v870, %v872
        %v874 = vrot.slane %v255, %v873
        %v875 = vcombine.low %v867, %v874
        %v876 = vcombine.high %v867, %v874
        %v878 = vunpack.c.l.s4 1966171168
        %v879 = vunpack.c.0.s8 %v878
        %v880 = vlaneseq
        %v881 = vshrl.u32 %v880, 7
        %v882 = vsub.s32 %v879, %v881
        %v883 = vrot.slane %v256, %v882
        %v885 = vunpack.c.l.s4 1966171168
        %v886 = vunpack.c.0.s8 %v885
        %v887 = vlaneseq
        %v888 = vshrl.u32 %v887, 7
        %v889 = vsub.s32 %v886, %v888
        %v890 = vrot.slane %v257, %v889
        %v891 = vcombine.low %v883, %v890
        %v892 = vcombine.high %v883, %v890
        %v894 = vunpack.c.l.s4 1966171168
        %v895 = vunpack.c.0.s8 %v894
        %v896 = vlaneseq
        %v897 = vshrl.u32 %v896, 7
        %v898 = vsub.s32 %v895, %v897
        %v899 = vrot.slane %v258, %v898
        %v901 = vunpack.c.l.s4 1966171168
        %v902 = vunpack.c.0.s8 %v901
        %v903 = vlaneseq
        %v904 = vshrl.u32 %v903, 7
        %v905 = vsub.s32 %v902, %v904
        %v906 = vrot.slane %v259, %v905
        %v907 = vcombine.low %v899, %v906
        %v908 = vcombine.high %v899, %v906
        %v910 = vunpack.c.l.s4 1966171168
        %v911 = vunpack.c.0.s8 %v910
        %v912 = vlaneseq
        %v913 = vshrl.u32 %v912, 7
        %v914 = vsub.s32 %v911, %v913
        %v915 = vrot.slane %v260, %v914
        %v917 = vunpack.c.l.s4 1966171168
        %v918 = vunpack.c.0.s8 %v917
        %v919 = vlaneseq
        %v920 = vshrl.u32 %v919, 7
        %v921 = vsub.s32 %v918, %v920
        %v922 = vrot.slane %v261, %v921
        %v923 = vcombine.low %v915, %v922
        %v924 = vcombine.high %v915, %v922
        %v926 = vunpack.c.l.s4 1966171168
        %v927 = vunpack.c.0.s8 %v926
        %v928 = vlaneseq
        %v929 = vshrl.u32 %v928, 7
        %v930 = vsub.s32 %v927, %v929
        %v931 = vrot.slane %v262, %v930
        %v933 = vunpack.c.l.s4 1966171168
        %v934 = vunpack.c.0.s8 %v933
        %v935 = vlaneseq
        %v936 = vshrl.u32 %v935, 7
        %v937 = vsub.s32 %v934, %v936
        %v938 = vrot.slane %v263, %v937
        %v939 = vcombine.low %v931, %v938
        %v940 = vcombine.high %v931, %v938
        %v942 = vunpack.c.l.s4 1966171168
        %v943 = vunpack.c.0.s8 %v942
        %v944 = vlaneseq
        %v945 = vshrl.u32 %v944, 7
        %v946 = vsub.s32 %v943, %v945
        %v947 = vrot.slane %v264, %v946
        %v949 = vunpack.c.l.s4 1966171168
        %v950 = vunpack.c.0.s8 %v949
        %v951 = vlaneseq
        %v952 = vshrl.u32 %v951, 7
        %v953 = vsub.s32 %v950, %v952
        %v954 = vrot.slane %v265, %v953
        %v955 = vcombine.low %v947, %v954
        %v956 = vcombine.high %v947, %v954
        %v958 = vunpack.c.l.s4 1966171168
        %v959 = vunpack.c.0.s8 %v958
        %v960 = vlaneseq
        %v961 = vshrl.u32 %v960, 7
        %v962 = vsub.s32 %v959, %v961
        %v963 = vrot.slane %v266, %v962
        %v965 = vunpack.c.l.s4 1966171168
        %v966 = vunpack.c.0.s8 %v965
        %v967 = vlaneseq
        %v968 = vshrl.u32 %v967, 7
        %v969 = vsub.s32 %v966, %v968
        %v970 = vrot.slane %v267, %v969
        %v971 = vcombine.low %v963, %v970
        %v972 = vcombine.high %v963, %v970
        %v974 = vunpack.c.l.s4 1966171168
        %v975 = vunpack.c.0.s8 %v974
        %v976 = vlaneseq
        %v977 = vshrl.u32 %v976, 7
        %v978 = vsub.s32 %v975, %v977
        %v979 = vrot.slane %v268, %v978
        %v981 = vunpack.c.l.s4 1966171168
        %v982 = vunpack.c.0.s8 %v981
        %v983 = vlaneseq
        %v984 = vshrl.u32 %v983, 7
        %v985 = vsub.s32 %v982, %v984
        %v986 = vrot.slane %v269, %v985
        %v987 = vcombine.low %v979, %v986
        %v988 = vcombine.high %v979, %v986
        %v990 = vunpack.c.l.s4 1966171168
        %v991 = vunpack.c.0.s8 %v990
        %v992 = vlaneseq
        %v993 = vshrl.u32 %v992, 7
        %v994 = vsub.s32 %v991, %v993
        %v995 = vrot.slane %v270, %v994
        %v997 = vunpack.c.l.s4 1966171168
        %v998 = vunpack.c.0.s8 %v997
        %v999 = vlaneseq
        %v1000 = vshrl.u32 %v999, 7
        %v1001 = vsub.s32 %v998, %v1000
        %v1002 = vrot.slane %v271, %v1001
        %v1003 = vcombine.low %v995, %v1002
        %v1004 = vcombine.high %v995, %v1002
        %v1006 = vunpack.c.l.s4 1966171168
        %v1007 = vunpack.c.0.s8 %v1006
        %v1008 = vlaneseq
        %v1009 = vshrl.u32 %v1008, 7
        %v1010 = vsub.s32 %v1007, %v1009
        %v1011 = vrot.slane %v272, %v1010
        %v1013 = vunpack.c.l.s4 1966171168
        %v1014 = vunpack.c.0.s8 %v1013
        %v1015 = vlaneseq
        %v1016 = vshrl.u32 %v1015, 7
        %v1017 = vsub.s32 %v1014, %v1016
        %v1018 = vrot.slane %v273, %v1017
        %v1019 = vcombine.low %v1011, %v1018
        %v1020 = vcombine.high %v1011, %v1018
        %v1022 = vunpack.c.l.s4 1966171168
        %v1023 = vunpack.c.0.s8 %v1022
        %v1024 = vlaneseq
        %v1025 = vshrl.u32 %v1024, 7
        %v1026 = vsub.s32 %v1023, %v1025
        %v1027 = vrot.slane %v274, %v1026
        %v1029 = vunpack.c.l.s4 1966171168
        %v1030 = vunpack.c.0.s8 %v1029
        %v1031 = vlaneseq
        %v1032 = vshrl.u32 %v1031, 7
        %v1033 = vsub.s32 %v1030, %v1032
        %v1034 = vrot.slane %v275, %v1033
        %v1035 = vcombine.low %v1027, %v1034
        %v1036 = vcombine.high %v1027, %v1034
        %v1038 = vunpack.c.l.s4 1966171168
        %v1039 = vunpack.c.0.s8 %v1038
        %v1040 = vlaneseq
        %v1041 = vshrl.u32 %v1040, 7
        %v1042 = vsub.s32 %v1039, %v1041
        %v1043 = vrot.slane %v276, %v1042
        %v1045 = vunpack.c.l.s4 1966171168
        %v1046 = vunpack.c.0.s8 %v1045
        %v1047 = vlaneseq
        %v1048 = vshrl.u32 %v1047, 7
        %v1049 = vsub.s32 %v1046, %v1048
        %v1050 = vrot.slane %v277, %v1049
        %v1051 = vcombine.low %v1043, %v1050
        %v1052 = vcombine.high %v1043, %v1050
        %v1054 = vunpack.c.l.s4 1966171168
        %v1055 = vunpack.c.0.s8 %v1054
        %v1056 = vlaneseq
        %v1057 = vshrl.u32 %v1056, 7
        %v1058 = vsub.s32 %v1055, %v1057
        %v1059 = vrot.slane %v278, %v1058
        %v1061 = vunpack.c.l.s4 1966171168
        %v1062 = vunpack.c.0.s8 %v1061
        %v1063 = vlaneseq
        %v1064 = vshrl.u32 %v1063, 7
        %v1065 = vsub.s32 %v1062, %v1064
        %v1066 = vrot.slane %v279, %v1065
        %v1067 = vcombine.low %v1059, %v1066
        %v1068 = vcombine.high %v1059, %v1066
        %v1070 = vunpack.c.l.s4 1966171168
        %v1071 = vunpack.c.0.s8 %v1070
        %v1072 = vlaneseq
        %v1073 = vshrl.u32 %v1072, 7
        %v1074 = vsub.s32 %v1071, %v1073
        %v1075 = vrot.slane %v280, %v1074
        %v1077 = vunpack.c.l.s4 1966171168
        %v1078 = vunpack.c.0.s8 %v1077
        %v1079 = vlaneseq
        %v1080 = vshrl.u32 %v1079, 7
        %v1081 = vsub.s32 %v1078, %v1080
        %v1082 = vrot.slane %v281, %v1081
        %v1083 = vcombine.low %v1075, %v1082
        %v1084 = vcombine.high %v1075, %v1082
        %v1086 = vunpack.c.l.s4 1966171168
        %v1087 = vunpack.c.0.s8 %v1086
        %v1088 = vlaneseq
        %v1089 = vshrl.u32 %v1088, 7
        %v1090 = vsub.s32 %v1087, %v1089
        %v1091 = vrot.slane %v282, %v1090
        %v1093 = vunpack.c.l.s4 1966171168
        %v1094 = vunpack.c.0.s8 %v1093
        %v1095 = vlaneseq
        %v1096 = vshrl.u32 %v1095, 7
        %v1097 = vsub.s32 %v1094, %v1096
        %v1098 = vrot.slane %v283, %v1097
        %v1099 = vcombine.low %v1091, %v1098
        %v1100 = vcombine.high %v1091, %v1098
        %v1101 = vlaneseq
        %v1102 = vshrl.u32 %v1101, 7
        %v1103 = vsub.s32 0, %v1102
        %v1104 = vrot.slane %v731, %v1103
        %v1105 = vlaneseq
        %v1106 = vshrl.u32 %v1105, 7
        %v1107 = vsub.s32 1, %v1106
        %v1108 = vrot.slane %v731, %v1107
        %v1109 = vlaneseq
        %v1110 = vshrl.u32 %v1109, 7
        %v1111 = vsub.s32 2, %v1110
        %v1112 = vrot.slane %v731, %v1111
        %v1113 = vlaneseq
        %v1114 = vshrl.u32 %v1113, 7
        %v1115 = vsub.s32 3, %v1114
        %v1116 = vrot.slane %v731, %v1115
        %v1117 = vlaneseq
        %v1118 = vshrl.u32 %v1117, 7
        %v1119 = vsub.s32 4, %v1118
        %v1120 = vrot.slane %v731, %v1119
        %v1121 = vlaneseq
        %v1122 = vshrl.u32 %v1121, 7
        %v1123 = vsub.s32 5, %v1122
        %v1124 = vrot.slane %v731, %v1123
        %v1125 = vlaneseq
        %v1126 = vshrl.u32 %v1125, 7
        %v1127 = vsub.s32 6, %v1126
        %v1128 = vrot.slane %v731, %v1127
        %v1129 = vlaneseq
        %v1130 = vshrl.u32 %v1129, 7
        %v1131 = vsub.s32 7, %v1130
        %v1132 = vrot.slane %v731, %v1131
        %v1133 = vlaneseq
        %v1134 = vshrl.u32 %v1133, 7
        %v1135 = vsub.s32 0, %v1134
        %v1136 = vrot.slane %v747, %v1135
        %v1137 = vlaneseq
        %v1138 = vshrl.u32 %v1137, 7
        %v1139 = vsub.s32 1, %v1138
        %v1140 = vrot.slane %v747, %v1139
        %v1141 = vlaneseq
        %v1142 = vshrl.u32 %v1141, 7
        %v1143 = vsub.s32 2, %v1142
        %v1144 = vrot.slane %v747, %v1143
        %v1145 = vlaneseq
        %v1146 = vshrl.u32 %v1145, 7
        %v1147 = vsub.s32 3, %v1146
        %v1148 = vrot.slane %v747, %v1147
        %v1149 = vlaneseq
        %v1150 = vshrl.u32 %v1149, 7
        %v1151 = vsub.s32 4, %v1150
        %v1152 = vrot.slane %v747, %v1151
        %v1153 = vlaneseq
        %v1154 = vshrl.u32 %v1153, 7
        %v1155 = vsub.s32 5, %v1154
        %v1156 = vrot.slane %v747, %v1155
        %v1157 = vlaneseq
        %v1158 = vshrl.u32 %v1157, 7
        %v1159 = vsub.s32 6, %v1158
        %v1160 = vrot.slane %v747, %v1159
        %v1161 = vlaneseq
        %v1162 = vshrl.u32 %v1161, 7
        %v1163 = vsub.s32 7, %v1162
        %v1164 = vrot.slane %v747, %v1163
        %v1165 = vlaneseq
        %v1166 = vshrl.u32 %v1165, 7
        %v1167 = vsub.s32 0, %v1166
        %v1168 = vrot.slane %v763, %v1167
        %v1169 = vlaneseq
        %v1170 = vshrl.u32 %v1169, 7
        %v1171 = vsub.s32 1, %v1170
        %v1172 = vrot.slane %v763, %v1171
        %v1173 = vlaneseq
        %v1174 = vshrl.u32 %v1173, 7
        %v1175 = vsub.s32 2, %v1174
        %v1176 = vrot.slane %v763, %v1175
        %v1177 = vlaneseq
        %v1178 = vshrl.u32 %v1177, 7
        %v1179 = vsub.s32 3, %v1178
        %v1180 = vrot.slane %v763, %v1179
        %v1181 = vlaneseq
        %v1182 = vshrl.u32 %v1181, 7
        %v1183 = vsub.s32 4, %v1182
        %v1184 = vrot.slane %v763, %v1183
        %v1185 = vlaneseq
        %v1186 = vshrl.u32 %v1185, 7
        %v1187 = vsub.s32 5, %v1186
        %v1188 = vrot.slane %v763, %v1187
        %v1189 = vlaneseq
        %v1190 = vshrl.u32 %v1189, 7
        %v1191 = vsub.s32 6, %v1190
        %v1192 = vrot.slane %v763, %v1191
        %v1193 = vlaneseq
        %v1194 = vshrl.u32 %v1193, 7
        %v1195 = vsub.s32 7, %v1194
        %v1196 = vrot.slane %v763, %v1195
        %v1197 = vlaneseq
        %v1198 = vshrl.u32 %v1197, 7
        %v1199 = vsub.s32 0, %v1198
        %v1200 = vrot.slane %v779, %v1199
        %v1201 = vlaneseq
        %v1202 = vshrl.u32 %v1201, 7
        %v1203 = vsub.s32 1, %v1202
        %v1204 = vrot.slane %v779, %v1203
        %v1205 = vlaneseq
        %v1206 = vshrl.u32 %v1205, 7
        %v1207 = vsub.s32 2, %v1206
        %v1208 = vrot.slane %v779, %v1207
        %v1209 = vlaneseq
        %v1210 = vshrl.u32 %v1209, 7
        %v1211 = vsub.s32 3, %v1210
        %v1212 = vrot.slane %v779, %v1211
        %v1213 = vlaneseq
        %v1214 = vshrl.u32 %v1213, 7
        %v1215 = vsub.s32 4, %v1214
        %v1216 = vrot.slane %v779, %v1215
        %v1217 = vlaneseq
        %v1218 = vshrl.u32 %v1217, 7
        %v1219 = vsub.s32 5, %v1218
        %v1220 = vrot.slane %v779, %v1219
        %v1221 = vlaneseq
        %v1222 = vshrl.u32 %v1221, 7
        %v1223 = vsub.s32 6, %v1222
        %v1224 = vrot.slane %v779, %v1223
        %v1225 = vlaneseq
        %v1226 = vshrl.u32 %v1225, 7
        %v1227 = vsub.s32 7, %v1226
        %v1228 = vrot.slane %v779, %v1227
        %v1229 = vlaneseq
        %v1230 = vshrl.u32 %v1229, 7
        %v1231 = vsub.s32 0, %v1230
        %v1232 = vrot.slane %v795, %v1231
        %v1233 = vlaneseq
        %v1234 = vshrl.u32 %v1233, 7
        %v1235 = vsub.s32 1, %v1234
        %v1236 = vrot.slane %v795, %v1235
        %v1237 = vlaneseq
        %v1238 = vshrl.u32 %v1237, 7
        %v1239 = vsub.s32 2, %v1238
        %v1240 = vrot.slane %v795, %v1239
        %v1241 = vlaneseq
        %v1242 = vshrl.u32 %v1241, 7
        %v1243 = vsub.s32 3, %v1242
        %v1244 = vrot.slane %v795, %v1243
        %v1245 = vlaneseq
        %v1246 = vshrl.u32 %v1245, 7
        %v1247 = vsub.s32 4, %v1246
        %v1248 = vrot.slane %v795, %v1247
        %v1249 = vlaneseq
        %v1250 = vshrl.u32 %v1249, 7
        %v1251 = vsub.s32 5, %v1250
        %v1252 = vrot.slane %v795, %v1251
        %v1253 = vlaneseq
        %v1254 = vshrl.u32 %v1253, 7
        %v1255 = vsub.s32 6, %v1254
        %v1256 = vrot.slane %v795, %v1255
        %v1257 = vlaneseq
        %v1258 = vshrl.u32 %v1257, 7
        %v1259 = vsub.s32 7, %v1258
        %v1260 = vrot.slane %v795, %v1259
        %v1261 = vlaneseq
        %v1262 = vshrl.u32 %v1261, 7
        %v1263 = vsub.s32 0, %v1262
        %v1264 = vrot.slane %v811, %v1263
        %v1265 = vlaneseq
        %v1266 = vshrl.u32 %v1265, 7
        %v1267 = vsub.s32 1, %v1266
        %v1268 = vrot.slane %v811, %v1267
        %v1269 = vlaneseq
        %v1270 = vshrl.u32 %v1269, 7
        %v1271 = vsub.s32 2, %v1270
        %v1272 = vrot.slane %v811, %v1271
        %v1273 = vlaneseq
        %v1274 = vshrl.u32 %v1273, 7
        %v1275 = vsub.s32 3, %v1274
        %v1276 = vrot.slane %v811, %v1275
        %v1277 = vlaneseq
        %v1278 = vshrl.u32 %v1277, 7
        %v1279 = vsub.s32 4, %v1278
        %v1280 = vrot.slane %v811, %v1279
        %v1281 = vlaneseq
        %v1282 = vshrl.u32 %v1281, 7
        %v1283 = vsub.s32 5, %v1282
        %v1284 = vrot.slane %v811, %v1283
        %v1285 = vlaneseq
        %v1286 = vshrl.u32 %v1285, 7
        %v1287 = vsub.s32 6, %v1286
        %v1288 = vrot.slane %v811, %v1287
        %v1289 = vlaneseq
        %v1290 = vshrl.u32 %v1289, 7
        %v1291 = vsub.s32 7, %v1290
        %v1292 = vrot.slane %v811, %v1291
        %v1293 = vlaneseq
        %v1294 = vshrl.u32 %v1293, 7
        %v1295 = vsub.s32 0, %v1294
        %v1296 = vrot.slane %v827, %v1295
        %v1297 = vlaneseq
        %v1298 = vshrl.u32 %v1297, 7
        %v1299 = vsub.s32 1, %v1298
        %v1300 = vrot.slane %v827, %v1299
        %v1301 = vlaneseq
        %v1302 = vshrl.u32 %v1301, 7
        %v1303 = vsub.s32 2, %v1302
        %v1304 = vrot.slane %v827, %v1303
        %v1305 = vlaneseq
        %v1306 = vshrl.u32 %v1305, 7
        %v1307 = vsub.s32 3, %v1306
        %v1308 = vrot.slane %v827, %v1307
        %v1309 = vlaneseq
        %v1310 = vshrl.u32 %v1309, 7
        %v1311 = vsub.s32 4, %v1310
        %v1312 = vrot.slane %v827, %v1311
        %v1313 = vlaneseq
        %v1314 = vshrl.u32 %v1313, 7
        %v1315 = vsub.s32 5, %v1314
        %v1316 = vrot.slane %v827, %v1315
        %v1317 = vlaneseq
        %v1318 = vshrl.u32 %v1317, 7
        %v1319 = vsub.s32 6, %v1318
        %v1320 = vrot.slane %v827, %v1319
        %v1321 = vlaneseq
        %v1322 = vshrl.u32 %v1321, 7
        %v1323 = vsub.s32 7, %v1322
        %v1324 = vrot.slane %v827, %v1323
        %v1325 = vlaneseq
        %v1326 = vshrl.u32 %v1325, 7
        %v1327 = vsub.s32 0, %v1326
        %v1328 = vrot.slane %v843, %v1327
        %v1329 = vlaneseq
        %v1330 = vshrl.u32 %v1329, 7
        %v1331 = vsub.s32 1, %v1330
        %v1332 = vrot.slane %v843, %v1331
        %v1333 = vlaneseq
        %v1334 = vshrl.u32 %v1333, 7
        %v1335 = vsub.s32 2, %v1334
        %v1336 = vrot.slane %v843, %v1335
        %v1337 = vlaneseq
        %v1338 = vshrl.u32 %v1337, 7
        %v1339 = vsub.s32 3, %v1338
        %v1340 = vrot.slane %v843, %v1339
        %v1341 = vlaneseq
        %v1342 = vshrl.u32 %v1341, 7
        %v1343 = vsub.s32 4, %v1342
        %v1344 = vrot.slane %v843, %v1343
        %v1345 = vlaneseq
        %v1346 = vshrl.u32 %v1345, 7
        %v1347 = vsub.s32 5, %v1346
        %v1348 = vrot.slane %v843, %v1347
        %v1349 = vlaneseq
        %v1350 = vshrl.u32 %v1349, 7
        %v1351 = vsub.s32 6, %v1350
        %v1352 = vrot.slane %v843, %v1351
        %v1353 = vlaneseq
        %v1354 = vshrl.u32 %v1353, 7
        %v1355 = vsub.s32 7, %v1354
        %v1356 = vrot.slane %v843, %v1355
        %v1357 = vlaneseq
        %v1358 = vshrl.u32 %v1357, 7
        %v1359 = vsub.s32 0, %v1358
        %v1360 = vrot.slane %v859, %v1359
        %v1361 = vlaneseq
        %v1362 = vshrl.u32 %v1361, 7
        %v1363 = vsub.s32 1, %v1362
        %v1364 = vrot.slane %v859, %v1363
        %v1365 = vlaneseq
        %v1366 = vshrl.u32 %v1365, 7
        %v1367 = vsub.s32 2, %v1366
        %v1368 = vrot.slane %v859, %v1367
        %v1369 = vlaneseq
        %v1370 = vshrl.u32 %v1369, 7
        %v1371 = vsub.s32 3, %v1370
        %v1372 = vrot.slane %v859, %v1371
        %v1373 = vlaneseq
        %v1374 = vshrl.u32 %v1373, 7
        %v1375 = vsub.s32 4, %v1374
        %v1376 = vrot.slane %v859, %v1375
        %v1377 = vlaneseq
        %v1378 = vshrl.u32 %v1377, 7
        %v1379 = vsub.s32 5, %v1378
        %v1380 = vrot.slane %v859, %v1379
        %v1381 = vlaneseq
        %v1382 = vshrl.u32 %v1381, 7
        %v1383 = vsub.s32 6, %v1382
        %v1384 = vrot.slane %v859, %v1383
        %v1385 = vlaneseq
        %v1386 = vshrl.u32 %v1385, 7
        %v1387 = vsub.s32 7, %v1386
        %v1388 = vrot.slane %v859, %v1387
        %v1389 = vlaneseq
        %v1390 = vshrl.u32 %v1389, 7
        %v1391 = vsub.s32 0, %v1390
        %v1392 = vrot.slane %v875, %v1391
        %v1393 = vlaneseq
        %v1394 = vshrl.u32 %v1393, 7
        %v1395 = vsub.s32 1, %v1394
        %v1396 = vrot.slane %v875, %v1395
        %v1397 = vlaneseq
        %v1398 = vshrl.u32 %v1397, 7
        %v1399 = vsub.s32 2, %v1398
        %v1400 = vrot.slane %v875, %v1399
        %v1401 = vlaneseq
        %v1402 = vshrl.u32 %v1401, 7
        %v1403 = vsub.s32 3, %v1402
        %v1404 = vrot.slane %v875, %v1403
        %v1405 = vlaneseq
        %v1406 = vshrl.u32 %v1405, 7
        %v1407 = vsub.s32 4, %v1406
        %v1408 = vrot.slane %v875, %v1407
        %v1409 = vlaneseq
        %v1410 = vshrl.u32 %v1409, 7
        %v1411 = vsub.s32 5, %v1410
        %v1412 = vrot.slane %v875, %v1411
        %v1413 = vlaneseq
        %v1414 = vshrl.u32 %v1413, 7
        %v1415 = vsub.s32 6, %v1414
        %v1416 = vrot.slane %v875, %v1415
        %v1417 = vlaneseq
        %v1418 = vshrl.u32 %v1417, 7
        %v1419 = vsub.s32 7, %v1418
        %v1420 = vrot.slane %v875, %v1419
        %v1421 = vlaneseq
        %v1422 = vshrl.u32 %v1421, 7
        %v1423 = vsub.s32 0, %v1422
        %v1424 = vrot.slane %v891, %v1423
        %v1425 = vlaneseq
        %v1426 = vshrl.u32 %v1425, 7
        %v1427 = vsub.s32 1, %v1426
        %v1428 = vrot.slane %v891, %v1427
        %v1429 = vlaneseq
        %v1430 = vshrl.u32 %v1429, 7
        %v1431 = vsub.s32 2, %v1430
        %v1432 = vrot.slane %v891, %v1431
        %v1433 = vlaneseq
        %v1434 = vshrl.u32 %v1433, 7
        %v1435 = vsub.s32 3, %v1434
        %v1436 = vrot.slane %v891, %v1435
        %v1437 = vlaneseq
        %v1438 = vshrl.u32 %v1437, 7
        %v1439 = vsub.s32 4, %v1438
        %v1440 = vrot.slane %v891, %v1439
        %v1441 = vlaneseq
        %v1442 = vshrl.u32 %v1441, 7
        %v1443 = vsub.s32 5, %v1442
        %v1444 = vrot.slane %v891, %v1443
        %v1445 = vlaneseq
        %v1446 = vshrl.u32 %v1445, 7
        %v1447 = vsub.s32 6, %v1446
        %v1448 = vrot.slane %v891, %v1447
        %v1449 = vlaneseq
        %v1450 = vshrl.u32 %v1449, 7
        %v1451 = vsub.s32 7, %v1450
        %v1452 = vrot.slane %v891, %v1451
        %v1453 = vlaneseq
        %v1454 = vshrl.u32 %v1453, 7
        %v1455 = vsub.s32 0, %v1454
        %v1456 = vrot.slane %v907, %v1455
        %v1457 = vlaneseq
        %v1458 = vshrl.u32 %v1457, 7
        %v1459 = vsub.s32 1, %v1458
        %v1460 = vrot.slane %v907, %v1459
        %v1461 = vlaneseq
        %v1462 = vshrl.u32 %v1461, 7
        %v1463 = vsub.s32 2, %v1462
        %v1464 = vrot.slane %v907, %v1463
        %v1465 = vlaneseq
        %v1466 = vshrl.u32 %v1465, 7
        %v1467 = vsub.s32 3, %v1466
        %v1468 = vrot.slane %v907, %v1467
        %v1469 = vlaneseq
        %v1470 = vshrl.u32 %v1469, 7
        %v1471 = vsub.s32 4, %v1470
        %v1472 = vrot.slane %v907, %v1471
        %v1473 = vlaneseq
        %v1474 = vshrl.u32 %v1473, 7
        %v1475 = vsub.s32 5, %v1474
        %v1476 = vrot.slane %v907, %v1475
        %v1477 = vlaneseq
        %v1478 = vshrl.u32 %v1477, 7
        %v1479 = vsub.s32 6, %v1478
        %v1480 = vrot.slane %v907, %v1479
        %v1481 = vlaneseq
        %v1482 = vshrl.u32 %v1481, 7
        %v1483 = vsub.s32 7, %v1482
        %v1484 = vrot.slane %v907, %v1483
        %v1485 = vlaneseq
        %v1486 = vshrl.u32 %v1485, 7
        %v1487 = vsub.s32 0, %v1486
        %v1488 = vrot.slane %v923, %v1487
        %v1489 = vlaneseq
        %v1490 = vshrl.u32 %v1489, 7
        %v1491 = vsub.s32 1, %v1490
        %v1492 = vrot.slane %v923, %v1491
        %v1493 = vlaneseq
        %v1494 = vshrl.u32 %v1493, 7
        %v1495 = vsub.s32 2, %v1494
        %v1496 = vrot.slane %v923, %v1495
        %v1497 = vlaneseq
        %v1498 = vshrl.u32 %v1497, 7
        %v1499 = vsub.s32 3, %v1498
        %v1500 = vrot.slane %v923, %v1499
        %v1501 = vlaneseq
        %v1502 = vshrl.u32 %v1501, 7
        %v1503 = vsub.s32 4, %v1502
        %v1504 = vrot.slane %v923, %v1503
        %v1505 = vlaneseq
        %v1506 = vshrl.u32 %v1505, 7
        %v1507 = vsub.s32 5, %v1506
        %v1508 = vrot.slane %v923, %v1507
        %v1509 = vlaneseq
        %v1510 = vshrl.u32 %v1509, 7
        %v1511 = vsub.s32 6, %v1510
        %v1512 = vrot.slane %v923, %v1511
        %v1513 = vlaneseq
        %v1514 = vshrl.u32 %v1513, 7
        %v1515 = vsub.s32 7, %v1514
        %v1516 = vrot.slane %v923, %v1515
        %v1517 = vlaneseq
        %v1518 = vshrl.u32 %v1517, 7
        %v1519 = vsub.s32 0, %v1518
        %v1520 = vrot.slane %v939, %v1519
        %v1521 = vlaneseq
        %v1522 = vshrl.u32 %v1521, 7
        %v1523 = vsub.s32 1, %v1522
        %v1524 = vrot.slane %v939, %v1523
        %v1525 = vlaneseq
        %v1526 = vshrl.u32 %v1525, 7
        %v1527 = vsub.s32 2, %v1526
        %v1528 = vrot.slane %v939, %v1527
        %v1529 = vlaneseq
        %v1530 = vshrl.u32 %v1529, 7
        %v1531 = vsub.s32 3, %v1530
        %v1532 = vrot.slane %v939, %v1531
        %v1533 = vlaneseq
        %v1534 = vshrl.u32 %v1533, 7
        %v1535 = vsub.s32 4, %v1534
        %v1536 = vrot.slane %v939, %v1535
        %v1537 = vlaneseq
        %v1538 = vshrl.u32 %v1537, 7
        %v1539 = vsub.s32 5, %v1538
        %v1540 = vrot.slane %v939, %v1539
        %v1541 = vlaneseq
        %v1542 = vshrl.u32 %v1541, 7
        %v1543 = vsub.s32 6, %v1542
        %v1544 = vrot.slane %v939, %v1543
        %v1545 = vlaneseq
        %v1546 = vshrl.u32 %v1545, 7
        %v1547 = vsub.s32 7, %v1546
        %v1548 = vrot.slane %v939, %v1547
        %v1549 = vlaneseq
        %v1550 = vshrl.u32 %v1549, 7
        %v1551 = vsub.s32 0, %v1550
        %v1552 = vrot.slane %v955, %v1551
        %v1553 = vlaneseq
        %v1554 = vshrl.u32 %v1553, 7
        %v1555 = vsub.s32 1, %v1554
        %v1556 = vrot.slane %v955, %v1555
        %v1557 = vlaneseq
        %v1558 = vshrl.u32 %v1557, 7
        %v1559 = vsub.s32 2, %v1558
        %v1560 = vrot.slane %v955, %v1559
        %v1561 = vlaneseq
        %v1562 = vshrl.u32 %v1561, 7
        %v1563 = vsub.s32 3, %v1562
        %v1564 = vrot.slane %v955, %v1563
        %v1565 = vlaneseq
        %v1566 = vshrl.u32 %v1565, 7
        %v1567 = vsub.s32 4, %v1566
        %v1568 = vrot.slane %v955, %v1567
        %v1569 = vlaneseq
        %v1570 = vshrl.u32 %v1569, 7
        %v1571 = vsub.s32 5, %v1570
        %v1572 = vrot.slane %v955, %v1571
        %v1573 = vlaneseq
        %v1574 = vshrl.u32 %v1573, 7
        %v1575 = vsub.s32 6, %v1574
        %v1576 = vrot.slane %v955, %v1575
        %v1577 = vlaneseq
        %v1578 = vshrl.u32 %v1577, 7
        %v1579 = vsub.s32 7, %v1578
        %v1580 = vrot.slane %v955, %v1579
        %v1581 = vlaneseq
        %v1582 = vshrl.u32 %v1581, 7
        %v1583 = vsub.s32 0, %v1582
        %v1584 = vrot.slane %v971, %v1583
        %v1585 = vlaneseq
        %v1586 = vshrl.u32 %v1585, 7
        %v1587 = vsub.s32 1, %v1586
        %v1588 = vrot.slane %v971, %v1587
        %v1589 = vlaneseq
        %v1590 = vshrl.u32 %v1589, 7
        %v1591 = vsub.s32 2, %v1590
        %v1592 = vrot.slane %v971, %v1591
        %v1593 = vlaneseq
        %v1594 = vshrl.u32 %v1593, 7
        %v1595 = vsub.s32 3, %v1594
        %v1596 = vrot.slane %v971, %v1595
        %v1597 = vlaneseq
        %v1598 = vshrl.u32 %v1597, 7
        %v1599 = vsub.s32 4, %v1598
        %v1600 = vrot.slane %v971, %v1599
        %v1601 = vlaneseq
        %v1602 = vshrl.u32 %v1601, 7
        %v1603 = vsub.s32 5, %v1602
        %v1604 = vrot.slane %v971, %v1603
        %v1605 = vlaneseq
        %v1606 = vshrl.u32 %v1605, 7
        %v1607 = vsub.s32 6, %v1606
        %v1608 = vrot.slane %v971, %v1607
        %v1609 = vlaneseq
        %v1610 = vshrl.u32 %v1609, 7
        %v1611 = vsub.s32 7, %v1610
        %v1612 = vrot.slane %v971, %v1611
        %v1613 = vlaneseq
        %v1614 = vshrl.u32 %v1613, 7
        %v1615 = vsub.s32 0, %v1614
        %v1616 = vrot.slane %v987, %v1615
        %v1617 = vlaneseq
        %v1618 = vshrl.u32 %v1617, 7
        %v1619 = vsub.s32 1, %v1618
        %v1620 = vrot.slane %v987, %v1619
        %v1621 = vlaneseq
        %v1622 = vshrl.u32 %v1621, 7
        %v1623 = vsub.s32 2, %v1622
        %v1624 = vrot.slane %v987, %v1623
        %v1625 = vlaneseq
        %v1626 = vshrl.u32 %v1625, 7
        %v1627 = vsub.s32 3, %v1626
        %v1628 = vrot.slane %v987, %v1627
        %v1629 = vlaneseq
        %v1630 = vshrl.u32 %v1629, 7
        %v1631 = vsub.s32 4, %v1630
        %v1632 = vrot.slane %v987, %v1631
        %v1633 = vlaneseq
        %v1634 = vshrl.u32 %v1633, 7
        %v1635 = vsub.s32 5, %v1634
        %v1636 = vrot.slane %v987, %v1635
        %v1637 = vlaneseq
        %v1638 = vshrl.u32 %v1637, 7
        %v1639 = vsub.s32 6, %v1638
        %v1640 = vrot.slane %v987, %v1639
        %v1641 = vlaneseq
        %v1642 = vshrl.u32 %v1641, 7
        %v1643 = vsub.s32 7, %v1642
        %v1644 = vrot.slane %v987, %v1643
        %v1645 = vlaneseq
        %v1646 = vshrl.u32 %v1645, 7
        %v1647 = vsub.s32 0, %v1646
        %v1648 = vrot.slane %v1003, %v1647
        %v1649 = vlaneseq
        %v1650 = vshrl.u32 %v1649, 7
        %v1651 = vsub.s32 1, %v1650
        %v1652 = vrot.slane %v1003, %v1651
        %v1653 = vlaneseq
        %v1654 = vshrl.u32 %v1653, 7
        %v1655 = vsub.s32 2, %v1654
        %v1656 = vrot.slane %v1003, %v1655
        %v1657 = vlaneseq
        %v1658 = vshrl.u32 %v1657, 7
        %v1659 = vsub.s32 3, %v1658
        %v1660 = vrot.slane %v1003, %v1659
        %v1661 = vlaneseq
        %v1662 = vshrl.u32 %v1661, 7
        %v1663 = vsub.s32 4, %v1662
        %v1664 = vrot.slane %v1003, %v1663
        %v1665 = vlaneseq
        %v1666 = vshrl.u32 %v1665, 7
        %v1667 = vsub.s32 5, %v1666
        %v1668 = vrot.slane %v1003, %v1667
        %v1669 = vlaneseq
        %v1670 = vshrl.u32 %v1669, 7
        %v1671 = vsub.s32 6, %v1670
        %v1672 = vrot.slane %v1003, %v1671
        %v1673 = vlaneseq
        %v1674 = vshrl.u32 %v1673, 7
        %v1675 = vsub.s32 7, %v1674
        %v1676 = vrot.slane %v1003, %v1675
        %v1677 = vlaneseq
        %v1678 = vshrl.u32 %v1677, 7
        %v1679 = vsub.s32 0, %v1678
        %v1680 = vrot.slane %v1019, %v1679
        %v1681 = vlaneseq
        %v1682 = vshrl.u32 %v1681, 7
        %v1683 = vsub.s32 1, %v1682
        %v1684 = vrot.slane %v1019, %v1683
        %v1685 = vlaneseq
        %v1686 = vshrl.u32 %v1685, 7
        %v1687 = vsub.s32 2, %v1686
        %v1688 = vrot.slane %v1019, %v1687
        %v1689 = vlaneseq
        %v1690 = vshrl.u32 %v1689, 7
        %v1691 = vsub.s32 3, %v1690
        %v1692 = vrot.slane %v1019, %v1691
        %v1693 = vlaneseq
        %v1694 = vshrl.u32 %v1693, 7
        %v1695 = vsub.s32 4, %v1694
        %v1696 = vrot.slane %v1019, %v1695
        %v1697 = vlaneseq
        %v1698 = vshrl.u32 %v1697, 7
        %v1699 = vsub.s32 5, %v1698
        %v1700 = vrot.slane %v1019, %v1699
        %v1701 = vlaneseq
        %v1702 = vshrl.u32 %v1701, 7
        %v1703 = vsub.s32 6, %v1702
        %v1704 = vrot.slane %v1019, %v1703
        %v1705 = vlaneseq
        %v1706 = vshrl.u32 %v1705, 7
        %v1707 = vsub.s32 7, %v1706
        %v1708 = vrot.slane %v1019, %v1707
        %v1709 = vlaneseq
        %v1710 = vshrl.u32 %v1709, 7
        %v1711 = vsub.s32 0, %v1710
        %v1712 = vrot.slane %v1035, %v1711
        %v1713 = vlaneseq
        %v1714 = vshrl.u32 %v1713, 7
        %v1715 = vsub.s32 1, %v1714
        %v1716 = vrot.slane %v1035, %v1715
        %v1717 = vlaneseq
        %v1718 = vshrl.u32 %v1717, 7
        %v1719 = vsub.s32 2, %v1718
        %v1720 = vrot.slane %v1035, %v1719
        %v1721 = vlaneseq
        %v1722 = vshrl.u32 %v1721, 7
        %v1723 = vsub.s32 3, %v1722
        %v1724 = vrot.slane %v1035, %v1723
        %v1725 = vlaneseq
        %v1726 = vshrl.u32 %v1725, 7
        %v1727 = vsub.s32 4, %v1726
        %v1728 = vrot.slane %v1035, %v1727
        %v1729 = vlaneseq
        %v1730 = vshrl.u32 %v1729, 7
        %v1731 = vsub.s32 5, %v1730
        %v1732 = vrot.slane %v1035, %v1731
        %v1733 = vlaneseq
        %v1734 = vshrl.u32 %v1733, 7
        %v1735 = vsub.s32 6, %v1734
        %v1736 = vrot.slane %v1035, %v1735
        %v1737 = vlaneseq
        %v1738 = vshrl.u32 %v1737, 7
        %v1739 = vsub.s32 7, %v1738
        %v1740 = vrot.slane %v1035, %v1739
        %v1741 = vlaneseq
        %v1742 = vshrl.u32 %v1741, 7
        %v1743 = vsub.s32 0, %v1742
        %v1744 = vrot.slane %v1051, %v1743
        %v1745 = vlaneseq
        %v1746 = vshrl.u32 %v1745, 7
        %v1747 = vsub.s32 1, %v1746
        %v1748 = vrot.slane %v1051, %v1747
        %v1749 = vlaneseq
        %v1750 = vshrl.u32 %v1749, 7
        %v1751 = vsub.s32 2, %v1750
        %v1752 = vrot.slane %v1051, %v1751
        %v1753 = vlaneseq
        %v1754 = vshrl.u32 %v1753, 7
        %v1755 = vsub.s32 3, %v1754
        %v1756 = vrot.slane %v1051, %v1755
        %v1757 = vlaneseq
        %v1758 = vshrl.u32 %v1757, 7
        %v1759 = vsub.s32 4, %v1758
        %v1760 = vrot.slane %v1051, %v1759
        %v1761 = vlaneseq
        %v1762 = vshrl.u32 %v1761, 7
        %v1763 = vsub.s32 5, %v1762
        %v1764 = vrot.slane %v1051, %v1763
        %v1765 = vlaneseq
        %v1766 = vshrl.u32 %v1765, 7
        %v1767 = vsub.s32 6, %v1766
        %v1768 = vrot.slane %v1051, %v1767
        %v1769 = vlaneseq
        %v1770 = vshrl.u32 %v1769, 7
        %v1771 = vsub.s32 7, %v1770
        %v1772 = vrot.slane %v1051, %v1771
        %v1773 = vlaneseq
        %v1774 = vshrl.u32 %v1773, 7
        %v1775 = vsub.s32 0, %v1774
        %v1776 = vrot.slane %v1067, %v1775
        %v1777 = vlaneseq
        %v1778 = vshrl.u32 %v1777, 7
        %v1779 = vsub.s32 1, %v1778
        %v1780 = vrot.slane %v1067, %v1779
        %v1781 = vlaneseq
        %v1782 = vshrl.u32 %v1781, 7
        %v1783 = vsub.s32 2, %v1782
        %v1784 = vrot.slane %v1067, %v1783
        %v1785 = vlaneseq
        %v1786 = vshrl.u32 %v1785, 7
        %v1787 = vsub.s32 3, %v1786
        %v1788 = vrot.slane %v1067, %v1787
        %v1789 = vlaneseq
        %v1790 = vshrl.u32 %v1789, 7
        %v1791 = vsub.s32 4, %v1790
        %v1792 = vrot.slane %v1067, %v1791
        %v1793 = vlaneseq
        %v1794 = vshrl.u32 %v1793, 7
        %v1795 = vsub.s32 5, %v1794
        %v1796 = vrot.slane %v1067, %v1795
        %v1797 = vlaneseq
        %v1798 = vshrl.u32 %v1797, 7
        %v1799 = vsub.s32 6, %v1798
        %v1800 = vrot.slane %v1067, %v1799
        %v1801 = vlaneseq
        %v1802 = vshrl.u32 %v1801, 7
        %v1803 = vsub.s32 7, %v1802
        %v1804 = vrot.slane %v1067, %v1803
        %v1805 = vlaneseq
        %v1806 = vshrl.u32 %v1805, 7
        %v1807 = vsub.s32 0, %v1806
        %v1808 = vrot.slane %v1083, %v1807
        %v1809 = vlaneseq
        %v1810 = vshrl.u32 %v1809, 7
        %v1811 = vsub.s32 1, %v1810
        %v1812 = vrot.slane %v1083, %v1811
        %v1813 = vlaneseq
        %v1814 = vshrl.u32 %v1813, 7
        %v1815 = vsub.s32 2, %v1814
        %v1816 = vrot.slane %v1083, %v1815
        %v1817 = vlaneseq
        %v1818 = vshrl.u32 %v1817, 7
        %v1819 = vsub.s32 3, %v1818
        %v1820 = vrot.slane %v1083, %v1819
        %v1821 = vlaneseq
        %v1822 = vshrl.u32 %v1821, 7
        %v1823 = vsub.s32 4, %v1822
        %v1824 = vrot.slane %v1083, %v1823
        %v1825 = vlaneseq
        %v1826 = vshrl.u32 %v1825, 7
        %v1827 = vsub.s32 5, %v1826
        %v1828 = vrot.slane %v1083, %v1827
        %v1829 = vlaneseq
        %v1830 = vshrl.u32 %v1829, 7
        %v1831 = vsub.s32 6, %v1830
        %v1832 = vrot.slane %v1083, %v1831
        %v1833 = vlaneseq
        %v1834 = vshrl.u32 %v1833, 7
        %v1835 = vsub.s32 7, %v1834
        %v1836 = vrot.slane %v1083, %v1835
        %v1837 = vlaneseq
        %v1838 = vshrl.u32 %v1837, 7
        %v1839 = vsub.s32 0, %v1838
        %v1840 = vrot.slane %v1099, %v1839
        %v1841 = vlaneseq
        %v1842 = vshrl.u32 %v1841, 7
        %v1843 = vsub.s32 1, %v1842
        %v1844 = vrot.slane %v1099, %v1843
        %v1845 = vlaneseq
        %v1846 = vshrl.u32 %v1845, 7
        %v1847 = vsub.s32 2, %v1846
        %v1848 = vrot.slane %v1099, %v1847
        %v1849 = vlaneseq
        %v1850 = vshrl.u32 %v1849, 7
        %v1851 = vsub.s32 3, %v1850
        %v1852 = vrot.slane %v1099, %v1851
        %v1853 = vlaneseq
        %v1854 = vshrl.u32 %v1853, 7
        %v1855 = vsub.s32 4, %v1854
        %v1856 = vrot.slane %v1099, %v1855
        %v1857 = vlaneseq
        %v1858 = vshrl.u32 %v1857, 7
        %v1859 = vsub.s32 5, %v1858
        %v1860 = vrot.slane %v1099, %v1859
        %v1861 = vlaneseq
        %v1862 = vshrl.u32 %v1861, 7
        %v1863 = vsub.s32 6, %v1862
        %v1864 = vrot.slane %v1099, %v1863
        %v1865 = vlaneseq
        %v1866 = vshrl.u32 %v1865, 7
        %v1867 = vsub.s32 7, %v1866
        %v1868 = vrot.slane %v1099, %v1867
        %v1869 = vlaneseq
        %v1870 = vshrl.u32 %v1869, 7
        %v1871 = vsub.s32 0, %v1870
        %v1872 = vrot.slane %v732, %v1871
        %v1873 = vlaneseq
        %v1874 = vshrl.u32 %v1873, 7
        %v1875 = vsub.s32 1, %v1874
        %v1876 = vrot.slane %v732, %v1875
        %v1877 = vlaneseq
        %v1878 = vshrl.u32 %v1877, 7
        %v1879 = vsub.s32 2, %v1878
        %v1880 = vrot.slane %v732, %v1879
        %v1881 = vlaneseq
        %v1882 = vshrl.u32 %v1881, 7
        %v1883 = vsub.s32 3, %v1882
        %v1884 = vrot.slane %v732, %v1883
        %v1885 = vlaneseq
        %v1886 = vshrl.u32 %v1885, 7
        %v1887 = vsub.s32 4, %v1886
        %v1888 = vrot.slane %v732, %v1887
        %v1889 = vlaneseq
        %v1890 = vshrl.u32 %v1889, 7
        %v1891 = vsub.s32 5, %v1890
        %v1892 = vrot.slane %v732, %v1891
        %v1893 = vlaneseq
        %v1894 = vshrl.u32 %v1893, 7
        %v1895 = vsub.s32 6, %v1894
        %v1896 = vrot.slane %v732, %v1895
        %v1897 = vlaneseq
        %v1898 = vshrl.u32 %v1897, 7
        %v1899 = vsub.s32 7, %v1898
        %v1900 = vrot.slane %v732, %v1899
        %v1901 = vlaneseq
        %v1902 = vshrl.u32 %v1901, 7
        %v1903 = vsub.s32 0, %v1902
        %v1904 = vrot.slane %v748, %v1903
        %v1905 = vlaneseq
        %v1906 = vshrl.u32 %v1905, 7
        %v1907 = vsub.s32 1, %v1906
        %v1908 = vrot.slane %v748, %v1907
        %v1909 = vlaneseq
        %v1910 = vshrl.u32 %v1909, 7
        %v1911 = vsub.s32 2, %v1910
        %v1912 = vrot.slane %v748, %v1911
        %v1913 = vlaneseq
        %v1914 = vshrl.u32 %v1913, 7
        %v1915 = vsub.s32 3, %v1914
        %v1916 = vrot.slane %v748, %v1915
        %v1917 = vlaneseq
        %v1918 = vshrl.u32 %v1917, 7
        %v1919 = vsub.s32 4, %v1918
        %v1920 = vrot.slane %v748, %v1919
        %v1921 = vlaneseq
        %v1922 = vshrl.u32 %v1921, 7
        %v1923 = vsub.s32 5, %v1922
        %v1924 = vrot.slane %v748, %v1923
        %v1925 = vlaneseq
        %v1926 = vshrl.u32 %v1925, 7
        %v1927 = vsub.s32 6, %v1926
        %v1928 = vrot.slane %v748, %v1927
        %v1929 = vlaneseq
        %v1930 = vshrl.u32 %v1929, 7
        %v1931 = vsub.s32 7, %v1930
        %v1932 = vrot.slane %v748, %v1931
        %v1933 = vlaneseq
        %v1934 = vshrl.u32 %v1933, 7
        %v1935 = vsub.s32 0, %v1934
        %v1936 = vrot.slane %v764, %v1935
        %v1937 = vlaneseq
        %v1938 = vshrl.u32 %v1937, 7
        %v1939 = vsub.s32 1, %v1938
        %v1940 = vrot.slane %v764, %v1939
        %v1941 = vlaneseq
        %v1942 = vshrl.u32 %v1941, 7
        %v1943 = vsub.s32 2, %v1942
        %v1944 = vrot.slane %v764, %v1943
        %v1945 = vlaneseq
        %v1946 = vshrl.u32 %v1945, 7
        %v1947 = vsub.s32 3, %v1946
        %v1948 = vrot.slane %v764, %v1947
        %v1949 = vlaneseq
        %v1950 = vshrl.u32 %v1949, 7
        %v1951 = vsub.s32 4, %v1950
        %v1952 = vrot.slane %v764, %v1951
        %v1953 = vlaneseq
        %v1954 = vshrl.u32 %v1953, 7
        %v1955 = vsub.s32 5, %v1954
        %v1956 = vrot.slane %v764, %v1955
        %v1957 = vlaneseq
        %v1958 = vshrl.u32 %v1957, 7
        %v1959 = vsub.s32 6, %v1958
        %v1960 = vrot.slane %v764, %v1959
        %v1961 = vlaneseq
        %v1962 = vshrl.u32 %v1961, 7
        %v1963 = vsub.s32 7, %v1962
        %v1964 = vrot.slane %v764, %v1963
        %v1965 = vlaneseq
        %v1966 = vshrl.u32 %v1965, 7
        %v1967 = vsub.s32 0, %v1966
        %v1968 = vrot.slane %v780, %v1967
        %v1969 = vlaneseq
        %v1970 = vshrl.u32 %v1969, 7
        %v1971 = vsub.s32 1, %v1970
        %v1972 = vrot.slane %v780, %v1971
        %v1973 = vlaneseq
        %v1974 = vshrl.u32 %v1973, 7
        %v1975 = vsub.s32 2, %v1974
        %v1976 = vrot.slane %v780, %v1975
        %v1977 = vlaneseq
        %v1978 = vshrl.u32 %v1977, 7
        %v1979 = vsub.s32 3, %v1978
        %v1980 = vrot.slane %v780, %v1979
        %v1981 = vlaneseq
        %v1982 = vshrl.u32 %v1981, 7
        %v1983 = vsub.s32 4, %v1982
        %v1984 = vrot.slane %v780, %v1983
        %v1985 = vlaneseq
        %v1986 = vshrl.u32 %v1985, 7
        %v1987 = vsub.s32 5, %v1986
        %v1988 = vrot.slane %v780, %v1987
        %v1989 = vlaneseq
        %v1990 = vshrl.u32 %v1989, 7
        %v1991 = vsub.s32 6, %v1990
        %v1992 = vrot.slane %v780, %v1991
        %v1993 = vlaneseq
        %v1994 = vshrl.u32 %v1993, 7
        %v1995 = vsub.s32 7, %v1994
        %v1996 = vrot.slane %v780, %v1995
        %v1997 = vlaneseq
        %v1998 = vshrl.u32 %v1997, 7
        %v1999 = vsub.s32 0, %v1998
        %v2000 = vrot.slane %v796, %v1999
        %v2001 = vlaneseq
        %v2002 = vshrl.u32 %v2001, 7
        %v2003 = vsub.s32 1, %v2002
        %v2004 = vrot.slane %v796, %v2003
        %v2005 = vlaneseq
        %v2006 = vshrl.u32 %v2005, 7
        %v2007 = vsub.s32 2, %v2006
        %v2008 = vrot.slane %v796, %v2007
        %v2009 = vlaneseq
        %v2010 = vshrl.u32 %v2009, 7
        %v2011 = vsub.s32 3, %v2010
        %v2012 = vrot.slane %v796, %v2011
        %v2013 = vlaneseq
        %v2014 = vshrl.u32 %v2013, 7
        %v2015 = vsub.s32 4, %v2014
        %v2016 = vrot.slane %v796, %v2015
        %v2017 = vlaneseq
        %v2018 = vshrl.u32 %v2017, 7
        %v2019 = vsub.s32 5, %v2018
        %v2020 = vrot.slane %v796, %v2019
        %v2021 = vlaneseq
        %v2022 = vshrl.u32 %v2021, 7
        %v2023 = vsub.s32 6, %v2022
        %v2024 = vrot.slane %v796, %v2023
        %v2025 = vlaneseq
        %v2026 = vshrl.u32 %v2025, 7
        %v2027 = vsub.s32 7, %v2026
        %v2028 = vrot.slane %v796, %v2027
        %v2029 = vlaneseq
        %v2030 = vshrl.u32 %v2029, 7
        %v2031 = vsub.s32 0, %v2030
        %v2032 = vrot.slane %v812, %v2031
        %v2033 = vlaneseq
        %v2034 = vshrl.u32 %v2033, 7
        %v2035 = vsub.s32 1, %v2034
        %v2036 = vrot.slane %v812, %v2035
        %v2037 = vlaneseq
        %v2038 = vshrl.u32 %v2037, 7
        %v2039 = vsub.s32 2, %v2038
        %v2040 = vrot.slane %v812, %v2039
        %v2041 = vlaneseq
        %v2042 = vshrl.u32 %v2041, 7
        %v2043 = vsub.s32 3, %v2042
        %v2044 = vrot.slane %v812, %v2043
        %v2045 = vlaneseq
        %v2046 = vshrl.u32 %v2045, 7
        %v2047 = vsub.s32 4, %v2046
        %v2048 = vrot.slane %v812, %v2047
        %v2049 = vlaneseq
        %v2050 = vshrl.u32 %v2049, 7
        %v2051 = vsub.s32 5, %v2050
        %v2052 = vrot.slane %v812, %v2051
        %v2053 = vlaneseq
        %v2054 = vshrl.u32 %v2053, 7
        %v2055 = vsub.s32 6, %v2054
        %v2056 = vrot.slane %v812, %v2055
        %v2057 = vlaneseq
        %v2058 = vshrl.u32 %v2057, 7
        %v2059 = vsub.s32 7, %v2058
        %v2060 = vrot.slane %v812, %v2059
        %v2061 = vlaneseq
        %v2062 = vshrl.u32 %v2061, 7
        %v2063 = vsub.s32 0, %v2062
        %v2064 = vrot.slane %v828, %v2063
        %v2065 = vlaneseq
        %v2066 = vshrl.u32 %v2065, 7
        %v2067 = vsub.s32 1, %v2066
        %v2068 = vrot.slane %v828, %v2067
        %v2069 = vlaneseq
        %v2070 = vshrl.u32 %v2069, 7
        %v2071 = vsub.s32 2, %v2070
        %v2072 = vrot.slane %v828, %v2071
        %v2073 = vlaneseq
        %v2074 = vshrl.u32 %v2073, 7
        %v2075 = vsub.s32 3, %v2074
        %v2076 = vrot.slane %v828, %v2075
        %v2077 = vlaneseq
        %v2078 = vshrl.u32 %v2077, 7
        %v2079 = vsub.s32 4, %v2078
        %v2080 = vrot.slane %v828, %v2079
        %v2081 = vlaneseq
        %v2082 = vshrl.u32 %v2081, 7
        %v2083 = vsub.s32 5, %v2082
        %v2084 = vrot.slane %v828, %v2083
        %v2085 = vlaneseq
        %v2086 = vshrl.u32 %v2085, 7
        %v2087 = vsub.s32 6, %v2086
        %v2088 = vrot.slane %v828, %v2087
        %v2089 = vlaneseq
        %v2090 = vshrl.u32 %v2089, 7
        %v2091 = vsub.s32 7, %v2090
        %v2092 = vrot.slane %v828, %v2091
        %v2093 = vlaneseq
        %v2094 = vshrl.u32 %v2093, 7
        %v2095 = vsub.s32 0, %v2094
        %v2096 = vrot.slane %v844, %v2095
        %v2097 = vlaneseq
        %v2098 = vshrl.u32 %v2097, 7
        %v2099 = vsub.s32 1, %v2098
        %v2100 = vrot.slane %v844, %v2099
        %v2101 = vlaneseq
        %v2102 = vshrl.u32 %v2101, 7
        %v2103 = vsub.s32 2, %v2102
        %v2104 = vrot.slane %v844, %v2103
        %v2105 = vlaneseq
        %v2106 = vshrl.u32 %v2105, 7
        %v2107 = vsub.s32 3, %v2106
        %v2108 = vrot.slane %v844, %v2107
        %v2109 = vlaneseq
        %v2110 = vshrl.u32 %v2109, 7
        %v2111 = vsub.s32 4, %v2110
        %v2112 = vrot.slane %v844, %v2111
        %v2113 = vlaneseq
        %v2114 = vshrl.u32 %v2113, 7
        %v2115 = vsub.s32 5, %v2114
        %v2116 = vrot.slane %v844, %v2115
        %v2117 = vlaneseq
        %v2118 = vshrl.u32 %v2117, 7
        %v2119 = vsub.s32 6, %v2118
        %v2120 = vrot.slane %v844, %v2119
        %v2121 = vlaneseq
        %v2122 = vshrl.u32 %v2121, 7
        %v2123 = vsub.s32 7, %v2122
        %v2124 = vrot.slane %v844, %v2123
        %v2125 = vlaneseq
        %v2126 = vshrl.u32 %v2125, 7
        %v2127 = vsub.s32 0, %v2126
        %v2128 = vrot.slane %v860, %v2127
        %v2129 = vlaneseq
        %v2130 = vshrl.u32 %v2129, 7
        %v2131 = vsub.s32 1, %v2130
        %v2132 = vrot.slane %v860, %v2131
        %v2133 = vlaneseq
        %v2134 = vshrl.u32 %v2133, 7
        %v2135 = vsub.s32 2, %v2134
        %v2136 = vrot.slane %v860, %v2135
        %v2137 = vlaneseq
        %v2138 = vshrl.u32 %v2137, 7
        %v2139 = vsub.s32 3, %v2138
        %v2140 = vrot.slane %v860, %v2139
        %v2141 = vlaneseq
        %v2142 = vshrl.u32 %v2141, 7
        %v2143 = vsub.s32 4, %v2142
        %v2144 = vrot.slane %v860, %v2143
        %v2145 = vlaneseq
        %v2146 = vshrl.u32 %v2145, 7
        %v2147 = vsub.s32 5, %v2146
        %v2148 = vrot.slane %v860, %v2147
        %v2149 = vlaneseq
        %v2150 = vshrl.u32 %v2149, 7
        %v2151 = vsub.s32 6, %v2150
        %v2152 = vrot.slane %v860, %v2151
        %v2153 = vlaneseq
        %v2154 = vshrl.u32 %v2153, 7
        %v2155 = vsub.s32 7, %v2154
        %v2156 = vrot.slane %v860, %v2155
        %v2157 = vlaneseq
        %v2158 = vshrl.u32 %v2157, 7
        %v2159 = vsub.s32 0, %v2158
        %v2160 = vrot.slane %v876, %v2159
        %v2161 = vlaneseq
        %v2162 = vshrl.u32 %v2161, 7
        %v2163 = vsub.s32 1, %v2162
        %v2164 = vrot.slane %v876, %v2163
        %v2165 = vlaneseq
        %v2166 = vshrl.u32 %v2165, 7
        %v2167 = vsub.s32 2, %v2166
        %v2168 = vrot.slane %v876, %v2167
        %v2169 = vlaneseq
        %v2170 = vshrl.u32 %v2169, 7
        %v2171 = vsub.s32 3, %v2170
        %v2172 = vrot.slane %v876, %v2171
        %v2173 = vlaneseq
        %v2174 = vshrl.u32 %v2173, 7
        %v2175 = vsub.s32 4, %v2174
        %v2176 = vrot.slane %v876, %v2175
        %v2177 = vlaneseq
        %v2178 = vshrl.u32 %v2177, 7
        %v2179 = vsub.s32 5, %v2178
        %v2180 = vrot.slane %v876, %v2179
        %v2181 = vlaneseq
        %v2182 = vshrl.u32 %v2181, 7
        %v2183 = vsub.s32 6, %v2182
        %v2184 = vrot.slane %v876, %v2183
        %v2185 = vlaneseq
        %v2186 = vshrl.u32 %v2185, 7
        %v2187 = vsub.s32 7, %v2186
        %v2188 = vrot.slane %v876, %v2187
        %v2189 = vlaneseq
        %v2190 = vshrl.u32 %v2189, 7
        %v2191 = vsub.s32 0, %v2190
        %v2192 = vrot.slane %v892, %v2191
        %v2193 = vlaneseq
        %v2194 = vshrl.u32 %v2193, 7
        %v2195 = vsub.s32 1, %v2194
        %v2196 = vrot.slane %v892, %v2195
        %v2197 = vlaneseq
        %v2198 = vshrl.u32 %v2197, 7
        %v2199 = vsub.s32 2, %v2198
        %v2200 = vrot.slane %v892, %v2199
        %v2201 = vlaneseq
        %v2202 = vshrl.u32 %v2201, 7
        %v2203 = vsub.s32 3, %v2202
        %v2204 = vrot.slane %v892, %v2203
        %v2205 = vlaneseq
        %v2206 = vshrl.u32 %v2205, 7
        %v2207 = vsub.s32 4, %v2206
        %v2208 = vrot.slane %v892, %v2207
        %v2209 = vlaneseq
        %v2210 = vshrl.u32 %v2209, 7
        %v2211 = vsub.s32 5, %v2210
        %v2212 = vrot.slane %v892, %v2211
        %v2213 = vlaneseq
        %v2214 = vshrl.u32 %v2213, 7
        %v2215 = vsub.s32 6, %v2214
        %v2216 = vrot.slane %v892, %v2215
        %v2217 = vlaneseq
        %v2218 = vshrl.u32 %v2217, 7
        %v2219 = vsub.s32 7, %v2218
        %v2220 = vrot.slane %v892, %v2219
        %v2221 = vlaneseq
        %v2222 = vshrl.u32 %v2221, 7
        %v2223 = vsub.s32 0, %v2222
        %v2224 = vrot.slane %v908, %v2223
        %v2225 = vlaneseq
        %v2226 = vshrl.u32 %v2225, 7
        %v2227 = vsub.s32 1, %v2226
        %v2228 = vrot.slane %v908, %v2227
        %v2229 = vlaneseq
        %v2230 = vshrl.u32 %v2229, 7
        %v2231 = vsub.s32 2, %v2230
        %v2232 = vrot.slane %v908, %v2231
        %v2233 = vlaneseq
        %v2234 = vshrl.u32 %v2233, 7
        %v2235 = vsub.s32 3, %v2234
        %v2236 = vrot.slane %v908, %v2235
        %v2237 = vlaneseq
        %v2238 = vshrl.u32 %v2237, 7
        %v2239 = vsub.s32 4, %v2238
        %v2240 = vrot.slane %v908, %v2239
        %v2241 = vlaneseq
        %v2242 = vshrl.u32 %v2241, 7
        %v2243 = vsub.s32 5, %v2242
        %v2244 = vrot.slane %v908, %v2243
        %v2245 = vlaneseq
        %v2246 = vshrl.u32 %v2245, 7
        %v2247 = vsub.s32 6, %v2246
        %v2248 = vrot.slane %v908, %v2247
        %v2249 = vlaneseq
        %v2250 = vshrl.u32 %v2249, 7
        %v2251 = vsub.s32 7, %v2250
        %v2252 = vrot.slane %v908, %v2251
        %v2253 = vlaneseq
        %v2254 = vshrl.u32 %v2253, 7
        %v2255 = vsub.s32 0, %v2254
        %v2256 = vrot.slane %v924, %v2255
        %v2257 = vlaneseq
        %v2258 = vshrl.u32 %v2257, 7
        %v2259 = vsub.s32 1, %v2258
        %v2260 = vrot.slane %v924, %v2259
        %v2261 = vlaneseq
        %v2262 = vshrl.u32 %v2261, 7
        %v2263 = vsub.s32 2, %v2262
        %v2264 = vrot.slane %v924, %v2263
        %v2265 = vlaneseq
        %v2266 = vshrl.u32 %v2265, 7
        %v2267 = vsub.s32 3, %v2266
        %v2268 = vrot.slane %v924, %v2267
        %v2269 = vlaneseq
        %v2270 = vshrl.u32 %v2269, 7
        %v2271 = vsub.s32 4, %v2270
        %v2272 = vrot.slane %v924, %v2271
        %v2273 = vlaneseq
        %v2274 = vshrl.u32 %v2273, 7
        %v2275 = vsub.s32 5, %v2274
        %v2276 = vrot.slane %v924, %v2275
        %v2277 = vlaneseq
        %v2278 = vshrl.u32 %v2277, 7
        %v2279 = vsub.s32 6, %v2278
        %v2280 = vrot.slane %v924, %v2279
        %v2281 = vlaneseq
        %v2282 = vshrl.u32 %v2281, 7
        %v2283 = vsub.s32 7, %v2282
        %v2284 = vrot.slane %v924, %v2283
        %v2285 = vlaneseq
        %v2286 = vshrl.u32 %v2285, 7
        %v2287 = vsub.s32 0, %v2286
        %v2288 = vrot.slane %v940, %v2287
        %v2289 = vlaneseq
        %v2290 = vshrl.u32 %v2289, 7
        %v2291 = vsub.s32 1, %v2290
        %v2292 = vrot.slane %v940, %v2291
        %v2293 = vlaneseq
        %v2294 = vshrl.u32 %v2293, 7
        %v2295 = vsub.s32 2, %v2294
        %v2296 = vrot.slane %v940, %v2295
        %v2297 = vlaneseq
        %v2298 = vshrl.u32 %v2297, 7
        %v2299 = vsub.s32 3, %v2298
        %v2300 = vrot.slane %v940, %v2299
        %v2301 = vlaneseq
        %v2302 = vshrl.u32 %v2301, 7
        %v2303 = vsub.s32 4, %v2302
        %v2304 = vrot.slane %v940, %v2303
        %v2305 = vlaneseq
        %v2306 = vshrl.u32 %v2305, 7
        %v2307 = vsub.s32 5, %v2306
        %v2308 = vrot.slane %v940, %v2307
        %v2309 = vlaneseq
        %v2310 = vshrl.u32 %v2309, 7
        %v2311 = vsub.s32 6, %v2310
        %v2312 = vrot.slane %v940, %v2311
        %v2313 = vlaneseq
        %v2314 = vshrl.u32 %v2313, 7
        %v2315 = vsub.s32 7, %v2314
        %v2316 = vrot.slane %v940, %v2315
        %v2317 = vlaneseq
        %v2318 = vshrl.u32 %v2317, 7
        %v2319 = vsub.s32 0, %v2318
        %v2320 = vrot.slane %v956, %v2319
        %v2321 = vlaneseq
        %v2322 = vshrl.u32 %v2321, 7
        %v2323 = vsub.s32 1, %v2322
        %v2324 = vrot.slane %v956, %v2323
        %v2325 = vlaneseq
        %v2326 = vshrl.u32 %v2325, 7
        %v2327 = vsub.s32 2, %v2326
        %v2328 = vrot.slane %v956, %v2327
        %v2329 = vlaneseq
        %v2330 = vshrl.u32 %v2329, 7
        %v2331 = vsub.s32 3, %v2330
        %v2332 = vrot.slane %v956, %v2331
        %v2333 = vlaneseq
        %v2334 = vshrl.u32 %v2333, 7
        %v2335 = vsub.s32 4, %v2334
        %v2336 = vrot.slane %v956, %v2335
        %v2337 = vlaneseq
        %v2338 = vshrl.u32 %v2337, 7
        %v2339 = vsub.s32 5, %v2338
        %v2340 = vrot.slane %v956, %v2339
        %v2341 = vlaneseq
        %v2342 = vshrl.u32 %v2341, 7
        %v2343 = vsub.s32 6, %v2342
        %v2344 = vrot.slane %v956, %v2343
        %v2345 = vlaneseq
        %v2346 = vshrl.u32 %v2345, 7
        %v2347 = vsub.s32 7, %v2346
        %v2348 = vrot.slane %v956, %v2347
        %v2349 = vlaneseq
        %v2350 = vshrl.u32 %v2349, 7
        %v2351 = vsub.s32 0, %v2350
        %v2352 = vrot.slane %v972, %v2351
        %v2353 = vlaneseq
        %v2354 = vshrl.u32 %v2353, 7
        %v2355 = vsub.s32 1, %v2354
        %v2356 = vrot.slane %v972, %v2355
        %v2357 = vlaneseq
        %v2358 = vshrl.u32 %v2357, 7
        %v2359 = vsub.s32 2, %v2358
        %v2360 = vrot.slane %v972, %v2359
        %v2361 = vlaneseq
        %v2362 = vshrl.u32 %v2361, 7
        %v2363 = vsub.s32 3, %v2362
        %v2364 = vrot.slane %v972, %v2363
        %v2365 = vlaneseq
        %v2366 = vshrl.u32 %v2365, 7
        %v2367 = vsub.s32 4, %v2366
        %v2368 = vrot.slane %v972, %v2367
        %v2369 = vlaneseq
        %v2370 = vshrl.u32 %v2369, 7
        %v2371 = vsub.s32 5, %v2370
        %v2372 = vrot.slane %v972, %v2371
        %v2373 = vlaneseq
        %v2374 = vshrl.u32 %v2373, 7
        %v2375 = vsub.s32 6, %v2374
        %v2376 = vrot.slane %v972, %v2375
        %v2377 = vlaneseq
        %v2378 = vshrl.u32 %v2377, 7
        %v2379 = vsub.s32 7, %v2378
        %v2380 = vrot.slane %v972, %v2379
        %v2381 = vlaneseq
        %v2382 = vshrl.u32 %v2381, 7
        %v2383 = vsub.s32 0, %v2382
        %v2384 = vrot.slane %v988, %v2383
        %v2385 = vlaneseq
        %v2386 = vshrl.u32 %v2385, 7
        %v2387 = vsub.s32 1, %v2386
        %v2388 = vrot.slane %v988, %v2387
        %v2389 = vlaneseq
        %v2390 = vshrl.u32 %v2389, 7
        %v2391 = vsub.s32 2, %v2390
        %v2392 = vrot.slane %v988, %v2391
        %v2393 = vlaneseq
        %v2394 = vshrl.u32 %v2393, 7
        %v2395 = vsub.s32 3, %v2394
        %v2396 = vrot.slane %v988, %v2395
        %v2397 = vlaneseq
        %v2398 = vshrl.u32 %v2397, 7
        %v2399 = vsub.s32 4, %v2398
        %v2400 = vrot.slane %v988, %v2399
        %v2401 = vlaneseq
        %v2402 = vshrl.u32 %v2401, 7
        %v2403 = vsub.s32 5, %v2402
        %v2404 = vrot.slane %v988, %v2403
        %v2405 = vlaneseq
        %v2406 = vshrl.u32 %v2405, 7
        %v2407 = vsub.s32 6, %v2406
        %v2408 = vrot.slane %v988, %v2407
        %v2409 = vlaneseq
        %v2410 = vshrl.u32 %v2409, 7
        %v2411 = vsub.s32 7, %v2410
        %v2412 = vrot.slane %v988, %v2411
        %v2413 = vlaneseq
        %v2414 = vshrl.u32 %v2413, 7
        %v2415 = vsub.s32 0, %v2414
        %v2416 = vrot.slane %v1004, %v2415
        %v2417 = vlaneseq
        %v2418 = vshrl.u32 %v2417, 7
        %v2419 = vsub.s32 1, %v2418
        %v2420 = vrot.slane %v1004, %v2419
        %v2421 = vlaneseq
        %v2422 = vshrl.u32 %v2421, 7
        %v2423 = vsub.s32 2, %v2422
        %v2424 = vrot.slane %v1004, %v2423
        %v2425 = vlaneseq
        %v2426 = vshrl.u32 %v2425, 7
        %v2427 = vsub.s32 3, %v2426
        %v2428 = vrot.slane %v1004, %v2427
        %v2429 = vlaneseq
        %v2430 = vshrl.u32 %v2429, 7
        %v2431 = vsub.s32 4, %v2430
        %v2432 = vrot.slane %v1004, %v2431
        %v2433 = vlaneseq
        %v2434 = vshrl.u32 %v2433, 7
        %v2435 = vsub.s32 5, %v2434
        %v2436 = vrot.slane %v1004, %v2435
        %v2437 = vlaneseq
        %v2438 = vshrl.u32 %v2437, 7
        %v2439 = vsub.s32 6, %v2438
        %v2440 = vrot.slane %v1004, %v2439
        %v2441 = vlaneseq
        %v2442 = vshrl.u32 %v2441, 7
        %v2443 = vsub.s32 7, %v2442
        %v2444 = vrot.slane %v1004, %v2443
        %v2445 = vlaneseq
        %v2446 = vshrl.u32 %v2445, 7
        %v2447 = vsub.s32 0, %v2446
        %v2448 = vrot.slane %v1020, %v2447
        %v2449 = vlaneseq
        %v2450 = vshrl.u32 %v2449, 7
        %v2451 = vsub.s32 1, %v2450
        %v2452 = vrot.slane %v1020, %v2451
        %v2453 = vlaneseq
        %v2454 = vshrl.u32 %v2453, 7
        %v2455 = vsub.s32 2, %v2454
        %v2456 = vrot.slane %v1020, %v2455
        %v2457 = vlaneseq
        %v2458 = vshrl.u32 %v2457, 7
        %v2459 = vsub.s32 3, %v2458
        %v2460 = vrot.slane %v1020, %v2459
        %v2461 = vlaneseq
        %v2462 = vshrl.u32 %v2461, 7
        %v2463 = vsub.s32 4, %v2462
        %v2464 = vrot.slane %v1020, %v2463
        %v2465 = vlaneseq
        %v2466 = vshrl.u32 %v2465, 7
        %v2467 = vsub.s32 5, %v2466
        %v2468 = vrot.slane %v1020, %v2467
        %v2469 = vlaneseq
        %v2470 = vshrl.u32 %v2469, 7
        %v2471 = vsub.s32 6, %v2470
        %v2472 = vrot.slane %v1020, %v2471
        %v2473 = vlaneseq
        %v2474 = vshrl.u32 %v2473, 7
        %v2475 = vsub.s32 7, %v2474
        %v2476 = vrot.slane %v1020, %v2475
        %v2477 = vlaneseq
        %v2478 = vshrl.u32 %v2477, 7
        %v2479 = vsub.s32 0, %v2478
        %v2480 = vrot.slane %v1036, %v2479
        %v2481 = vlaneseq
        %v2482 = vshrl.u32 %v2481, 7
        %v2483 = vsub.s32 1, %v2482
        %v2484 = vrot.slane %v1036, %v2483
        %v2485 = vlaneseq
        %v2486 = vshrl.u32 %v2485, 7
        %v2487 = vsub.s32 2, %v2486
        %v2488 = vrot.slane %v1036, %v2487
        %v2489 = vlaneseq
        %v2490 = vshrl.u32 %v2489, 7
        %v2491 = vsub.s32 3, %v2490
        %v2492 = vrot.slane %v1036, %v2491
        %v2493 = vlaneseq
        %v2494 = vshrl.u32 %v2493, 7
        %v2495 = vsub.s32 4, %v2494
        %v2496 = vrot.slane %v1036, %v2495
        %v2497 = vlaneseq
        %v2498 = vshrl.u32 %v2497, 7
        %v2499 = vsub.s32 5, %v2498
        %v2500 = vrot.slane %v1036, %v2499
        %v2501 = vlaneseq
        %v2502 = vshrl.u32 %v2501, 7
        %v2503 = vsub.s32 6, %v2502
        %v2504 = vrot.slane %v1036, %v2503
        %v2505 = vlaneseq
        %v2506 = vshrl.u32 %v2505, 7
        %v2507 = vsub.s32 7, %v2506
        %v2508 = vrot.slane %v1036, %v2507
        %v2509 = vlaneseq
        %v2510 = vshrl.u32 %v2509, 7
        %v2511 = vsub.s32 0, %v2510
        %v2512 = vrot.slane %v1052, %v2511
        %v2513 = vlaneseq
        %v2514 = vshrl.u32 %v2513, 7
        %v2515 = vsub.s32 1, %v2514
        %v2516 = vrot.slane %v1052, %v2515
        %v2517 = vlaneseq
        %v2518 = vshrl.u32 %v2517, 7
        %v2519 = vsub.s32 2, %v2518
        %v2520 = vrot.slane %v1052, %v2519
        %v2521 = vlaneseq
        %v2522 = vshrl.u32 %v2521, 7
        %v2523 = vsub.s32 3, %v2522
        %v2524 = vrot.slane %v1052, %v2523
        %v2525 = vlaneseq
        %v2526 = vshrl.u32 %v2525, 7
        %v2527 = vsub.s32 4, %v2526
        %v2528 = vrot.slane %v1052, %v2527
        %v2529 = vlaneseq
        %v2530 = vshrl.u32 %v2529, 7
        %v2531 = vsub.s32 5, %v2530
        %v2532 = vrot.slane %v1052, %v2531
        %v2533 = vlaneseq
        %v2534 = vshrl.u32 %v2533, 7
        %v2535 = vsub.s32 6, %v2534
        %v2536 = vrot.slane %v1052, %v2535
        %v2537 = vlaneseq
        %v2538 = vshrl.u32 %v2537, 7
        %v2539 = vsub.s32 7, %v2538
        %v2540 = vrot.slane %v1052, %v2539
        %v2541 = vlaneseq
        %v2542 = vshrl.u32 %v2541, 7
        %v2543 = vsub.s32 0, %v2542
        %v2544 = vrot.slane %v1068, %v2543
        %v2545 = vlaneseq
        %v2546 = vshrl.u32 %v2545, 7
        %v2547 = vsub.s32 1, %v2546
        %v2548 = vrot.slane %v1068, %v2547
        %v2549 = vlaneseq
        %v2550 = vshrl.u32 %v2549, 7
        %v2551 = vsub.s32 2, %v2550
        %v2552 = vrot.slane %v1068, %v2551
        %v2553 = vlaneseq
        %v2554 = vshrl.u32 %v2553, 7
        %v2555 = vsub.s32 3, %v2554
        %v2556 = vrot.slane %v1068, %v2555
        %v2557 = vlaneseq
        %v2558 = vshrl.u32 %v2557, 7
        %v2559 = vsub.s32 4, %v2558
        %v2560 = vrot.slane %v1068, %v2559
        %v2561 = vlaneseq
        %v2562 = vshrl.u32 %v2561, 7
        %v2563 = vsub.s32 5, %v2562
        %v2564 = vrot.slane %v1068, %v2563
        %v2565 = vlaneseq
        %v2566 = vshrl.u32 %v2565, 7
        %v2567 = vsub.s32 6, %v2566
        %v2568 = vrot.slane %v1068, %v2567
        %v2569 = vlaneseq
        %v2570 = vshrl.u32 %v2569, 7
        %v2571 = vsub.s32 7, %v2570
        %v2572 = vrot.slane %v1068, %v2571
        %v2573 = vlaneseq
        %v2574 = vshrl.u32 %v2573, 7
        %v2575 = vsub.s32 0, %v2574
        %v2576 = vrot.slane %v1084, %v2575
        %v2577 = vlaneseq
        %v2578 = vshrl.u32 %v2577, 7
        %v2579 = vsub.s32 1, %v2578
        %v2580 = vrot.slane %v1084, %v2579
        %v2581 = vlaneseq
        %v2582 = vshrl.u32 %v2581, 7
        %v2583 = vsub.s32 2, %v2582
        %v2584 = vrot.slane %v1084, %v2583
        %v2585 = vlaneseq
        %v2586 = vshrl.u32 %v2585, 7
        %v2587 = vsub.s32 3, %v2586
        %v2588 = vrot.slane %v1084, %v2587
        %v2589 = vlaneseq
        %v2590 = vshrl.u32 %v2589, 7
        %v2591 = vsub.s32 4, %v2590
        %v2592 = vrot.slane %v1084, %v2591
        %v2593 = vlaneseq
        %v2594 = vshrl.u32 %v2593, 7
        %v2595 = vsub.s32 5, %v2594
        %v2596 = vrot.slane %v1084, %v2595
        %v2597 = vlaneseq
        %v2598 = vshrl.u32 %v2597, 7
        %v2599 = vsub.s32 6, %v2598
        %v2600 = vrot.slane %v1084, %v2599
        %v2601 = vlaneseq
        %v2602 = vshrl.u32 %v2601, 7
        %v2603 = vsub.s32 7, %v2602
        %v2604 = vrot.slane %v1084, %v2603
        %v2605 = vlaneseq
        %v2606 = vshrl.u32 %v2605, 7
        %v2607 = vsub.s32 0, %v2606
        %v2608 = vrot.slane %v1100, %v2607
        %v2609 = vlaneseq
        %v2610 = vshrl.u32 %v2609, 7
        %v2611 = vsub.s32 1, %v2610
        %v2612 = vrot.slane %v1100, %v2611
        %v2613 = vlaneseq
        %v2614 = vshrl.u32 %v2613, 7
        %v2615 = vsub.s32 2, %v2614
        %v2616 = vrot.slane %v1100, %v2615
        %v2617 = vlaneseq
        %v2618 = vshrl.u32 %v2617, 7
        %v2619 = vsub.s32 3, %v2618
        %v2620 = vrot.slane %v1100, %v2619
        %v2621 = vlaneseq
        %v2622 = vshrl.u32 %v2621, 7
        %v2623 = vsub.s32 4, %v2622
        %v2624 = vrot.slane %v1100, %v2623
        %v2625 = vlaneseq
        %v2626 = vshrl.u32 %v2625, 7
        %v2627 = vsub.s32 5, %v2626
        %v2628 = vrot.slane %v1100, %v2627
        %v2629 = vlaneseq
        %v2630 = vshrl.u32 %v2629, 7
        %v2631 = vsub.s32 6, %v2630
        %v2632 = vrot.slane %v1100, %v2631
        %v2633 = vlaneseq
        %v2634 = vshrl.u32 %v2633, 7
        %v2635 = vsub.s32 7, %v2634
        %v2636 = vrot.slane %v1100, %v2635
        %v3021 = vmul.f32 %v1104, %v284
        %v3022 = vmul.f32 %v1108, %v285
        %v3023 = vmul.f32 %v1112, %v286
        %v3024 = vmul.f32 %v1116, %v287
        %v3025 = vmul.f32 %v1120, %v288
        %v3026 = vmul.f32 %v1124, %v289
        %v3027 = vmul.f32 %v1128, %v290
        %v3028 = vmul.f32 %v1132, %v291
        %v3029 = vmul.f32 %v1136, %v292
        %v3030 = vmul.f32 %v1140, %v293
        %v3031 = vmul.f32 %v1144, %v294
        %v3032 = vmul.f32 %v1148, %v295
        %v3033 = vmul.f32 %v1152, %v296
        %v3034 = vmul.f32 %v1156, %v297
        %v3035 = vmul.f32 %v1160, %v298
        %v3036 = vmul.f32 %v1164, %v299
        %v3037 = vmul.f32 %v1168, %v300
        %v3038 = vmul.f32 %v1172, %v301
        %v3039 = vmul.f32 %v1176, %v302
        %v3040 = vmul.f32 %v1180, %v303
        %v3041 = vmul.f32 %v1184, %v304
        %v3042 = vmul.f32 %v1188, %v305
        %v3043 = vmul.f32 %v1192, %v306
        %v3044 = vmul.f32 %v1196, %v307
        %v3045 = vmul.f32 %v1200, %v308
        %v3046 = vmul.f32 %v1204, %v309
        %v3047 = vmul.f32 %v1208, %v310
        %v3048 = vmul.f32 %v1212, %v311
        %v3049 = vmul.f32 %v1216, %v312
        %v3050 = vmul.f32 %v1220, %v313
        %v3051 = vmul.f32 %v1224, %v314
        %v3052 = vmul.f32 %v1228, %v315
        %v3053 = vmul.f32 %v1232, %v316
        %v3054 = vmul.f32 %v1236, %v317
        %v3055 = vmul.f32 %v1240, %v318
        %v3056 = vmul.f32 %v1244, %v319
        %v3057 = vmul.f32 %v1248, %v320
        %v3058 = vmul.f32 %v1252, %v321
        %v3059 = vmul.f32 %v1256, %v322
        %v3060 = vmul.f32 %v1260, %v323
        %v3061 = vmul.f32 %v1264, %v324
        %v3062 = vmul.f32 %v1268, %v325
        %v3063 = vmul.f32 %v1272, %v326
        %v3064 = vmul.f32 %v1276, %v327
        %v3065 = vmul.f32 %v1280, %v328
        %v3066 = vmul.f32 %v1284, %v329
        %v3067 = vmul.f32 %v1288, %v330
        %v3068 = vmul.f32 %v1292, %v331
        %v3069 = vmul.f32 %v1296, %v332
        %v3070 = vmul.f32 %v1300, %v333
        %v3071 = vmul.f32 %v1304, %v334
        %v3072 = vmul.f32 %v1308, %v335
        %v3073 = vmul.f32 %v1312, %v336
        %v3074 = vmul.f32 %v1316, %v337
        %v3075 = vmul.f32 %v1320, %v338
        %v3076 = vmul.f32 %v1324, %v339
        %v3077 = vmul.f32 %v1328, %v340
        %v3078 = vmul.f32 %v1332, %v341
        %v3079 = vmul.f32 %v1336, %v342
        %v3080 = vmul.f32 %v1340, %v343
        %v3081 = vmul.f32 %v1344, %v344
        %v3082 = vmul.f32 %v1348, %v345
        %v3083 = vmul.f32 %v1352, %v346
        %v3084 = vmul.f32 %v1356, %v347
        %v3085 = vmul.f32 %v1360, %v348
        %v3086 = vmul.f32 %v1364, %v349
        %v3087 = vmul.f32 %v1368, %v350
        %v3088 = vmul.f32 %v1372, %v351
        %v3089 = vmul.f32 %v1376, %v352
        %v3090 = vmul.f32 %v1380, %v353
        %v3091 = vmul.f32 %v1384, %v354
        %v3092 = vmul.f32 %v1388, %v355
        %v3093 = vmul.f32 %v1392, %v356
        %v3094 = vmul.f32 %v1396, %v357
        %v3095 = vmul.f32 %v1400, %v358
        %v3096 = vmul.f32 %v1404, %v359
        %v3097 = vmul.f32 %v1408, %v360
        %v3098 = vmul.f32 %v1412, %v361
        %v3099 = vmul.f32 %v1416, %v362
        %v3100 = vmul.f32 %v1420, %v363
        %v3101 = vmul.f32 %v1424, %v364
        %v3102 = vmul.f32 %v1428, %v365
        %v3103 = vmul.f32 %v1432, %v366
        %v3104 = vmul.f32 %v1436, %v367
        %v3105 = vmul.f32 %v1440, %v368
        %v3106 = vmul.f32 %v1444, %v369
        %v3107 = vmul.f32 %v1448, %v370
        %v3108 = vmul.f32 %v1452, %v371
        %v3109 = vmul.f32 %v1456, %v372
        %v3110 = vmul.f32 %v1460, %v373
        %v3111 = vmul.f32 %v1464, %v374
        %v3112 = vmul.f32 %v1468, %v375
        %v3113 = vmul.f32 %v1472, %v376
        %v3114 = vmul.f32 %v1476, %v377
        %v3115 = vmul.f32 %v1480, %v378
        %v3116 = vmul.f32 %v1484, %v379
        %v3117 = vmul.f32 %v1488, %v380
        %v3118 = vmul.f32 %v1492, %v381
        %v3119 = vmul.f32 %v1496, %v382
        %v3120 = vmul.f32 %v1500, %v383
        %v3121 = vmul.f32 %v1504, %v384
        %v3122 = vmul.f32 %v1508, %v385
        %v3123 = vmul.f32 %v1512, %v386
        %v3124 = vmul.f32 %v1516, %v387
        %v3125 = vmul.f32 %v1520, %v388
        %v3126 = vmul.f32 %v1524, %v389
        %v3127 = vmul.f32 %v1528, %v390
        %v3128 = vmul.f32 %v1532, %v391
        %v3129 = vmul.f32 %v1536, %v392
        %v3130 = vmul.f32 %v1540, %v393
        %v3131 = vmul.f32 %v1544, %v394
        %v3132 = vmul.f32 %v1548, %v395
        %v3133 = vmul.f32 %v1552, %v396
        %v3134 = vmul.f32 %v1556, %v397
        %v3135 = vmul.f32 %v1560, %v398
        %v3136 = vmul.f32 %v1564, %v399
        %v3137 = vmul.f32 %v1568, %v400
        %v3138 = vmul.f32 %v1572, %v401
        %v3139 = vmul.f32 %v1576, %v402
        %v3140 = vmul.f32 %v1580, %v403
        %v3141 = vmul.f32 %v1584, %v404
        %v3142 = vmul.f32 %v1588, %v405
        %v3143 = vmul.f32 %v1592, %v406
        %v3144 = vmul.f32 %v1596, %v407
        %v3145 = vmul.f32 %v1600, %v408
        %v3146 = vmul.f32 %v1604, %v409
        %v3147 = vmul.f32 %v1608, %v410
        %v3148 = vmul.f32 %v1612, %v411
        %v3149 = vmul.f32 %v1616, %v412
        %v3150 = vmul.f32 %v1620, %v413
        %v3151 = vmul.f32 %v1624, %v414
        %v3152 = vmul.f32 %v1628, %v415
        %v3153 = vmul.f32 %v1632, %v416
        %v3154 = vmul.f32 %v1636, %v417
        %v3155 = vmul.f32 %v1640, %v418
        %v3156 = vmul.f32 %v1644, %v419
        %v3157 = vmul.f32 %v1648, %v420
        %v3158 = vmul.f32 %v1652, %v421
        %v3159 = vmul.f32 %v1656, %v422
        %v3160 = vmul.f32 %v1660, %v423
        %v3161 = vmul.f32 %v1664, %v424
        %v3162 = vmul.f32 %v1668, %v425
        %v3163 = vmul.f32 %v1672, %v426
        %v3164 = vmul.f32 %v1676, %v427
        %v3165 = vmul.f32 %v1680, %v428
        %v3166 = vmul.f32 %v1684, %v429
        %v3167 = vmul.f32 %v1688, %v430
        %v3168 = vmul.f32 %v1692, %v431
        %v3169 = vmul.f32 %v1696, %v432
        %v3170 = vmul.f32 %v1700, %v433
        %v3171 = vmul.f32 %v1704, %v434
        %v3172 = vmul.f32 %v1708, %v435
        %v3173 = vmul.f32 %v1712, %v436
        %v3174 = vmul.f32 %v1716, %v437
        %v3175 = vmul.f32 %v1720, %v438
        %v3176 = vmul.f32 %v1724, %v439
        %v3177 = vmul.f32 %v1728, %v440
        %v3178 = vmul.f32 %v1732, %v441
        %v3179 = vmul.f32 %v1736, %v442
        %v3180 = vmul.f32 %v1740, %v443
        %v3181 = vmul.f32 %v1744, %v444
        %v3182 = vmul.f32 %v1748, %v445
        %v3183 = vmul.f32 %v1752, %v446
        %v3184 = vmul.f32 %v1756, %v447
        %v3185 = vmul.f32 %v1760, %v448
        %v3186 = vmul.f32 %v1764, %v449
        %v3187 = vmul.f32 %v1768, %v450
        %v3188 = vmul.f32 %v1772, %v451
        %v3189 = vmul.f32 %v1776, %v452
        %v3190 = vmul.f32 %v1780, %v453
        %v3191 = vmul.f32 %v1784, %v454
        %v3192 = vmul.f32 %v1788, %v455
        %v3193 = vmul.f32 %v1792, %v456
        %v3194 = vmul.f32 %v1796, %v457
        %v3195 = vmul.f32 %v1800, %v458
        %v3196 = vmul.f32 %v1804, %v459
        %v3197 = vmul.f32 %v1808, %v460
        %v3198 = vmul.f32 %v1812, %v461
        %v3199 = vmul.f32 %v1816, %v462
        %v3200 = vmul.f32 %v1820, %v463
        %v3201 = vmul.f32 %v1824, %v464
        %v3202 = vmul.f32 %v1828, %v465
        %v3203 = vmul.f32 %v1832, %v466
        %v3204 = vmul.f32 %v1836, %v467
        %v3205 = vmul.f32 %v1840, %v468
        %v3206 = vmul.f32 %v1844, %v469
        %v3207 = vmul.f32 %v1848, %v470
        %v3208 = vmul.f32 %v1852, %v471
        %v3209 = vmul.f32 %v1856, %v472
        %v3210 = vmul.f32 %v1860, %v473
        %v3211 = vmul.f32 %v1864, %v474
        %v3212 = vmul.f32 %v1868, %v475
        %v3213 = vmul.f32 %v1104, %v476
        %v3214 = vmul.f32 %v1108, %v477
        %v3215 = vmul.f32 %v1112, %v478
        %v3216 = vmul.f32 %v1116, %v479
        %v3217 = vmul.f32 %v1120, %v480
        %v3218 = vmul.f32 %v1124, %v481
        %v3219 = vmul.f32 %v1128, %v482
        %v3220 = vmul.f32 %v1132, %v483
        %v3221 = vmul.f32 %v1136, %v484
        %v3222 = vmul.f32 %v1140, %v485
        %v3223 = vmul.f32 %v1144, %v486
        %v3224 = vmul.f32 %v1148, %v487
        %v3225 = vmul.f32 %v1152, %v488
        %v3226 = vmul.f32 %v1156, %v489
        %v3227 = vmul.f32 %v1160, %v490
        %v3228 = vmul.f32 %v1164, %v491
        %v3229 = vmul.f32 %v1168, %v492
        %v3230 = vmul.f32 %v1172, %v493
        %v3231 = vmul.f32 %v1176, %v494
        %v3232 = vmul.f32 %v1180, %v495
        %v3233 = vmul.f32 %v1184, %v496
        %v3234 = vmul.f32 %v1188, %v497
        %v3235 = vmul.f32 %v1192, %v498
        %v3236 = vmul.f32 %v1196, %v499
        %v3237 = vmul.f32 %v1200, %v500
        %v3238 = vmul.f32 %v1204, %v501
        %v3239 = vmul.f32 %v1208, %v502
        %v3240 = vmul.f32 %v1212, %v503
        %v3241 = vmul.f32 %v1216, %v504
        %v3242 = vmul.f32 %v1220, %v505
        %v3243 = vmul.f32 %v1224, %v506
        %v3244 = vmul.f32 %v1228, %v507
        %v3245 = vmul.f32 %v1232, %v508
        %v3246 = vmul.f32 %v1236, %v509
        %v3247 = vmul.f32 %v1240, %v510
        %v3248 = vmul.f32 %v1244, %v511
        %v3249 = vmul.f32 %v1248, %v512
        %v3250 = vmul.f32 %v1252, %v513
        %v3251 = vmul.f32 %v1256, %v514
        %v3252 = vmul.f32 %v1260, %v515
        %v3253 = vmul.f32 %v1264, %v516
        %v3254 = vmul.f32 %v1268, %v517
        %v3255 = vmul.f32 %v1272, %v518
        %v3256 = vmul.f32 %v1276, %v519
        %v3257 = vmul.f32 %v1280, %v520
        %v3258 = vmul.f32 %v1284, %v521
        %v3259 = vmul.f32 %v1288, %v522
        %v3260 = vmul.f32 %v1292, %v523
        %v3261 = vmul.f32 %v1296, %v524
        %v3262 = vmul.f32 %v1300, %v525
        %v3263 = vmul.f32 %v1304, %v526
        %v3264 = vmul.f32 %v1308, %v527
        %v3265 = vmul.f32 %v1312, %v528
        %v3266 = vmul.f32 %v1316, %v529
        %v3267 = vmul.f32 %v1320, %v530
        %v3268 = vmul.f32 %v1324, %v531
        %v3269 = vmul.f32 %v1328, %v532
        %v3270 = vmul.f32 %v1332, %v533
        %v3271 = vmul.f32 %v1336, %v534
        %v3272 = vmul.f32 %v1340, %v535
        %v3273 = vmul.f32 %v1344, %v536
        %v3274 = vmul.f32 %v1348, %v537
        %v3275 = vmul.f32 %v1352, %v538
        %v3276 = vmul.f32 %v1356, %v539
        %v3277 = vmul.f32 %v1360, %v540
        %v3278 = vmul.f32 %v1364, %v541
        %v3279 = vmul.f32 %v1368, %v542
        %v3280 = vmul.f32 %v1372, %v543
        %v3281 = vmul.f32 %v1376, %v544
        %v3282 = vmul.f32 %v1380, %v545
        %v3283 = vmul.f32 %v1384, %v546
        %v3284 = vmul.f32 %v1388, %v547
        %v3285 = vmul.f32 %v1392, %v548
        %v3286 = vmul.f32 %v1396, %v549
        %v3287 = vmul.f32 %v1400, %v550
        %v3288 = vmul.f32 %v1404, %v551
        %v3289 = vmul.f32 %v1408, %v552
        %v3290 = vmul.f32 %v1412, %v553
        %v3291 = vmul.f32 %v1416, %v554
        %v3292 = vmul.f32 %v1420, %v555
        %v3293 = vmul.f32 %v1424, %v556
        %v3294 = vmul.f32 %v1428, %v557
        %v3295 = vmul.f32 %v1432, %v558
        %v3296 = vmul.f32 %v1436, %v559
        %v3297 = vmul.f32 %v1440, %v560
        %v3298 = vmul.f32 %v1444, %v561
        %v3299 = vmul.f32 %v1448, %v562
        %v3300 = vmul.f32 %v1452, %v563
        %v3301 = vmul.f32 %v1456, %v564
        %v3302 = vmul.f32 %v1460, %v565
        %v3303 = vmul.f32 %v1464, %v566
        %v3304 = vmul.f32 %v1468, %v567
        %v3305 = vmul.f32 %v1472, %v568
        %v3306 = vmul.f32 %v1476, %v569
        %v3307 = vmul.f32 %v1480, %v570
        %v3308 = vmul.f32 %v1484, %v571
        %v3309 = vmul.f32 %v1488, %v572
        %v3310 = vmul.f32 %v1492, %v573
        %v3311 = vmul.f32 %v1496, %v574
        %v3312 = vmul.f32 %v1500, %v575
        %v3313 = vmul.f32 %v1504, %v576
        %v3314 = vmul.f32 %v1508, %v577
        %v3315 = vmul.f32 %v1512, %v578
        %v3316 = vmul.f32 %v1516, %v579
        %v3317 = vmul.f32 %v1520, %v580
        %v3318 = vmul.f32 %v1524, %v581
        %v3319 = vmul.f32 %v1528, %v582
        %v3320 = vmul.f32 %v1532, %v583
        %v3321 = vmul.f32 %v1536, %v584
        %v3322 = vmul.f32 %v1540, %v585
        %v3323 = vmul.f32 %v1544, %v586
        %v3324 = vmul.f32 %v1548, %v587
        %v3325 = vmul.f32 %v1552, %v588
        %v3326 = vmul.f32 %v1556, %v589
        %v3327 = vmul.f32 %v1560, %v590
        %v3328 = vmul.f32 %v1564, %v591
        %v3329 = vmul.f32 %v1568, %v592
        %v3330 = vmul.f32 %v1572, %v593
        %v3331 = vmul.f32 %v1576, %v594
        %v3332 = vmul.f32 %v1580, %v595
        %v3333 = vmul.f32 %v1584, %v596
        %v3334 = vmul.f32 %v1588, %v597
        %v3335 = vmul.f32 %v1592, %v598
        %v3336 = vmul.f32 %v1596, %v599
        %v3337 = vmul.f32 %v1600, %v600
        %v3338 = vmul.f32 %v1604, %v601
        %v3339 = vmul.f32 %v1608, %v602
        %v3340 = vmul.f32 %v1612, %v603
        %v3341 = vmul.f32 %v1616, %v604
        %v3342 = vmul.f32 %v1620, %v605
        %v3343 = vmul.f32 %v1624, %v606
        %v3344 = vmul.f32 %v1628, %v607
        %v3345 = vmul.f32 %v1632, %v608
        %v3346 = vmul.f32 %v1636, %v609
        %v3347 = vmul.f32 %v1640, %v610
        %v3348 = vmul.f32 %v1644, %v611
        %v3349 = vmul.f32 %v1648, %v612
        %v3350 = vmul.f32 %v1652, %v613
        %v3351 = vmul.f32 %v1656, %v614
        %v3352 = vmul.f32 %v1660, %v615
        %v3353 = vmul.f32 %v1664, %v616
        %v3354 = vmul.f32 %v1668, %v617
        %v3355 = vmul.f32 %v1672, %v618
        %v3356 = vmul.f32 %v1676, %v619
        %v3357 = vmul.f32 %v1680, %v620
        %v3358 = vmul.f32 %v1684, %v621
        %v3359 = vmul.f32 %v1688, %v622
        %v3360 = vmul.f32 %v1692, %v623
        %v3361 = vmul.f32 %v1696, %v624
        %v3362 = vmul.f32 %v1700, %v625
        %v3363 = vmul.f32 %v1704, %v626
        %v3364 = vmul.f32 %v1708, %v627
        %v3365 = vmul.f32 %v1712, %v628
        %v3366 = vmul.f32 %v1716, %v629
        %v3367 = vmul.f32 %v1720, %v630
        %v3368 = vmul.f32 %v1724, %v631
        %v3369 = vmul.f32 %v1728, %v632
        %v3370 = vmul.f32 %v1732, %v633
        %v3371 = vmul.f32 %v1736, %v634
        %v3372 = vmul.f32 %v1740, %v635
        %v3373 = vmul.f32 %v1744, %v636
        %v3374 = vmul.f32 %v1748, %v637
        %v3375 = vmul.f32 %v1752, %v638
        %v3376 = vmul.f32 %v1756, %v639
        %v3377 = vmul.f32 %v1760, %v640
        %v3378 = vmul.f32 %v1764, %v641
        %v3379 = vmul.f32 %v1768, %v642
        %v3380 = vmul.f32 %v1772, %v643
        %v3381 = vmul.f32 %v1776, %v644
        %v3382 = vmul.f32 %v1780, %v645
        %v3383 = vmul.f32 %v1784, %v646
        %v3384 = vmul.f32 %v1788, %v647
        %v3385 = vmul.f32 %v1792, %v648
        %v3386 = vmul.f32 %v1796, %v649
        %v3387 = vmul.f32 %v1800, %v650
        %v3388 = vmul.f32 %v1804, %v651
        %v3389 = vmul.f32 %v1808, %v652
        %v3390 = vmul.f32 %v1812, %v653
        %v3391 = vmul.f32 %v1816, %v654
        %v3392 = vmul.f32 %v1820, %v655
        %v3393 = vmul.f32 %v1824, %v656
        %v3394 = vmul.f32 %v1828, %v657
        %v3395 = vmul.f32 %v1832, %v658
        %v3396 = vmul.f32 %v1836, %v659
        %v3397 = vmul.f32 %v1840, %v660
        %v3398 = vmul.f32 %v1844, %v661
        %v3399 = vmul.f32 %v1848, %v662
        %v3400 = vmul.f32 %v1852, %v663
        %v3401 = vmul.f32 %v1856, %v664
        %v3402 = vmul.f32 %v1860, %v665
        %v3403 = vmul.f32 %v1864, %v666
        %v3404 = vmul.f32 %v1868, %v667
        %v3405 = vmul.f32 %v1872, %v284
        %v3406 = vmul.f32 %v1876, %v285
        %v3407 = vmul.f32 %v1880, %v286
        %v3408 = vmul.f32 %v1884, %v287
        %v3409 = vmul.f32 %v1888, %v288
        %v3410 = vmul.f32 %v1892, %v289
        %v3411 = vmul.f32 %v1896, %v290
        %v3412 = vmul.f32 %v1900, %v291
        %v3413 = vmul.f32 %v1904, %v292
        %v3414 = vmul.f32 %v1908, %v293
        %v3415 = vmul.f32 %v1912, %v294
        %v3416 = vmul.f32 %v1916, %v295
        %v3417 = vmul.f32 %v1920, %v296
        %v3418 = vmul.f32 %v1924, %v297
        %v3419 = vmul.f32 %v1928, %v298
        %v3420 = vmul.f32 %v1932, %v299
        %v3421 = vmul.f32 %v1936, %v300
        %v3422 = vmul.f32 %v1940, %v301
        %v3423 = vmul.f32 %v1944, %v302
        %v3424 = vmul.f32 %v1948, %v303
        %v3425 = vmul.f32 %v1952, %v304
        %v3426 = vmul.f32 %v1956, %v305
        %v3427 = vmul.f32 %v1960, %v306
        %v3428 = vmul.f32 %v1964, %v307
        %v3429 = vmul.f32 %v1968, %v308
        %v3430 = vmul.f32 %v1972, %v309
        %v3431 = vmul.f32 %v1976, %v310
        %v3432 = vmul.f32 %v1980, %v311
        %v3433 = vmul.f32 %v1984, %v312
        %v3434 = vmul.f32 %v1988, %v313
        %v3435 = vmul.f32 %v1992, %v314
        %v3436 = vmul.f32 %v1996, %v315
        %v3437 = vmul.f32 %v2000, %v316
        %v3438 = vmul.f32 %v2004, %v317
        %v3439 = vmul.f32 %v2008, %v318
        %v3440 = vmul.f32 %v2012, %v319
        %v3441 = vmul.f32 %v2016, %v320
        %v3442 = vmul.f32 %v2020, %v321
        %v3443 = vmul.f32 %v2024, %v322
        %v3444 = vmul.f32 %v2028, %v323
        %v3445 = vmul.f32 %v2032, %v324
        %v3446 = vmul.f32 %v2036, %v325
        %v3447 = vmul.f32 %v2040, %v326
        %v3448 = vmul.f32 %v2044, %v327
        %v3449 = vmul.f32 %v2048, %v328
        %v3450 = vmul.f32 %v2052, %v329
        %v3451 = vmul.f32 %v2056, %v330
        %v3452 = vmul.f32 %v2060, %v331
        %v3453 = vmul.f32 %v2064, %v332
        %v3454 = vmul.f32 %v2068, %v333
        %v3455 = vmul.f32 %v2072, %v334
        %v3456 = vmul.f32 %v2076, %v335
        %v3457 = vmul.f32 %v2080, %v336
        %v3458 = vmul.f32 %v2084, %v337
        %v3459 = vmul.f32 %v2088, %v338
        %v3460 = vmul.f32 %v2092, %v339
        %v3461 = vmul.f32 %v2096, %v340
        %v3462 = vmul.f32 %v2100, %v341
        %v3463 = vmul.f32 %v2104, %v342
        %v3464 = vmul.f32 %v2108, %v343
        %v3465 = vmul.f32 %v2112, %v344
        %v3466 = vmul.f32 %v2116, %v345
        %v3467 = vmul.f32 %v2120, %v346
        %v3468 = vmul.f32 %v2124, %v347
        %v3469 = vmul.f32 %v2128, %v348
        %v3470 = vmul.f32 %v2132, %v349
        %v3471 = vmul.f32 %v2136, %v350
        %v3472 = vmul.f32 %v2140, %v351
        %v3473 = vmul.f32 %v2144, %v352
        %v3474 = vmul.f32 %v2148, %v353
        %v3475 = vmul.f32 %v2152, %v354
        %v3476 = vmul.f32 %v2156, %v355
        %v3477 = vmul.f32 %v2160, %v356
        %v3478 = vmul.f32 %v2164, %v357
        %v3479 = vmul.f32 %v2168, %v358
        %v3480 = vmul.f32 %v2172, %v359
        %v3481 = vmul.f32 %v2176, %v360
        %v3482 = vmul.f32 %v2180, %v361
        %v3483 = vmul.f32 %v2184, %v362
        %v3484 = vmul.f32 %v2188, %v363
        %v3485 = vmul.f32 %v2192, %v364
        %v3486 = vmul.f32 %v2196, %v365
        %v3487 = vmul.f32 %v2200, %v366
        %v3488 = vmul.f32 %v2204, %v367
        %v3489 = vmul.f32 %v2208, %v368
        %v3490 = vmul.f32 %v2212, %v369
        %v3491 = vmul.f32 %v2216, %v370
        %v3492 = vmul.f32 %v2220, %v371
        %v3493 = vmul.f32 %v2224, %v372
        %v3494 = vmul.f32 %v2228, %v373
        %v3495 = vmul.f32 %v2232, %v374
        %v3496 = vmul.f32 %v2236, %v375
        %v3497 = vmul.f32 %v2240, %v376
        %v3498 = vmul.f32 %v2244, %v377
        %v3499 = vmul.f32 %v2248, %v378
        %v3500 = vmul.f32 %v2252, %v379
        %v3501 = vmul.f32 %v2256, %v380
        %v3502 = vmul.f32 %v2260, %v381
        %v3503 = vmul.f32 %v2264, %v382
        %v3504 = vmul.f32 %v2268, %v383
        %v3505 = vmul.f32 %v2272, %v384
        %v3506 = vmul.f32 %v2276, %v385
        %v3507 = vmul.f32 %v2280, %v386
        %v3508 = vmul.f32 %v2284, %v387
        %v3509 = vmul.f32 %v2288, %v388
        %v3510 = vmul.f32 %v2292, %v389
        %v3511 = vmul.f32 %v2296, %v390
        %v3512 = vmul.f32 %v2300, %v391
        %v3513 = vmul.f32 %v2304, %v392
        %v3514 = vmul.f32 %v2308, %v393
        %v3515 = vmul.f32 %v2312, %v394
        %v3516 = vmul.f32 %v2316, %v395
        %v3517 = vmul.f32 %v2320, %v396
        %v3518 = vmul.f32 %v2324, %v397
        %v3519 = vmul.f32 %v2328, %v398
        %v3520 = vmul.f32 %v2332, %v399
        %v3521 = vmul.f32 %v2336, %v400
        %v3522 = vmul.f32 %v2340, %v401
        %v3523 = vmul.f32 %v2344, %v402
        %v3524 = vmul.f32 %v2348, %v403
        %v3525 = vmul.f32 %v2352, %v404
        %v3526 = vmul.f32 %v2356, %v405
        %v3527 = vmul.f32 %v2360, %v406
        %v3528 = vmul.f32 %v2364, %v407
        %v3529 = vmul.f32 %v2368, %v408
        %v3530 = vmul.f32 %v2372, %v409
        %v3531 = vmul.f32 %v2376, %v410
        %v3532 = vmul.f32 %v2380, %v411
        %v3533 = vmul.f32 %v2384, %v412
        %v3534 = vmul.f32 %v2388, %v413
        %v3535 = vmul.f32 %v2392, %v414
        %v3536 = vmul.f32 %v2396, %v415
        %v3537 = vmul.f32 %v2400, %v416
        %v3538 = vmul.f32 %v2404, %v417
        %v3539 = vmul.f32 %v2408, %v418
        %v3540 = vmul.f32 %v2412, %v419
        %v3541 = vmul.f32 %v2416, %v420
        %v3542 = vmul.f32 %v2420, %v421
        %v3543 = vmul.f32 %v2424, %v422
        %v3544 = vmul.f32 %v2428, %v423
        %v3545 = vmul.f32 %v2432, %v424
        %v3546 = vmul.f32 %v2436, %v425
        %v3547 = vmul.f32 %v2440, %v426
        %v3548 = vmul.f32 %v2444, %v427
        %v3549 = vmul.f32 %v2448, %v428
        %v3550 = vmul.f32 %v2452, %v429
        %v3551 = vmul.f32 %v2456, %v430
        %v3552 = vmul.f32 %v2460, %v431
        %v3553 = vmul.f32 %v2464, %v432
        %v3554 = vmul.f32 %v2468, %v433
        %v3555 = vmul.f32 %v2472, %v434
        %v3556 = vmul.f32 %v2476, %v435
        %v3557 = vmul.f32 %v2480, %v436
        %v3558 = vmul.f32 %v2484, %v437
        %v3559 = vmul.f32 %v2488, %v438
        %v3560 = vmul.f32 %v2492, %v439
        %v3561 = vmul.f32 %v2496, %v440
        %v3562 = vmul.f32 %v2500, %v441
        %v3563 = vmul.f32 %v2504, %v442
        %v3564 = vmul.f32 %v2508, %v443
        %v3565 = vmul.f32 %v2512, %v444
        %v3566 = vmul.f32 %v2516, %v445
        %v3567 = vmul.f32 %v2520, %v446
        %v3568 = vmul.f32 %v2524, %v447
        %v3569 = vmul.f32 %v2528, %v448
        %v3570 = vmul.f32 %v2532, %v449
        %v3571 = vmul.f32 %v2536, %v450
        %v3572 = vmul.f32 %v2540, %v451
        %v3573 = vmul.f32 %v2544, %v452
        %v3574 = vmul.f32 %v2548, %v453
        %v3575 = vmul.f32 %v2552, %v454
        %v3576 = vmul.f32 %v2556, %v455
        %v3577 = vmul.f32 %v2560, %v456
        %v3578 = vmul.f32 %v2564, %v457
        %v3579 = vmul.f32 %v2568, %v458
        %v3580 = vmul.f32 %v2572, %v459
        %v3581 = vmul.f32 %v2576, %v460
        %v3582 = vmul.f32 %v2580, %v461
        %v3583 = vmul.f32 %v2584, %v462
        %v3584 = vmul.f32 %v2588, %v463
        %v3585 = vmul.f32 %v2592, %v464
        %v3586 = vmul.f32 %v2596, %v465
        %v3587 = vmul.f32 %v2600, %v466
        %v3588 = vmul.f32 %v2604, %v467
        %v3589 = vmul.f32 %v2608, %v468
        %v3590 = vmul.f32 %v2612, %v469
        %v3591 = vmul.f32 %v2616, %v470
        %v3592 = vmul.f32 %v2620, %v471
        %v3593 = vmul.f32 %v2624, %v472
        %v3594 = vmul.f32 %v2628, %v473
        %v3595 = vmul.f32 %v2632, %v474
        %v3596 = vmul.f32 %v2636, %v475
        %v3597 = vmul.f32 %v1872, %v476
        %v3598 = vmul.f32 %v1876, %v477
        %v3599 = vmul.f32 %v1880, %v478
        %v3600 = vmul.f32 %v1884, %v479
        %v3601 = vmul.f32 %v1888, %v480
        %v3602 = vmul.f32 %v1892, %v481
        %v3603 = vmul.f32 %v1896, %v482
        %v3604 = vmul.f32 %v1900, %v483
        %v3605 = vmul.f32 %v1904, %v484
        %v3606 = vmul.f32 %v1908, %v485
        %v3607 = vmul.f32 %v1912, %v486
        %v3608 = vmul.f32 %v1916, %v487
        %v3609 = vmul.f32 %v1920, %v488
        %v3610 = vmul.f32 %v1924, %v489
        %v3611 = vmul.f32 %v1928, %v490
        %v3612 = vmul.f32 %v1932, %v491
        %v3613 = vmul.f32 %v1936, %v492
        %v3614 = vmul.f32 %v1940, %v493
        %v3615 = vmul.f32 %v1944, %v494
        %v3616 = vmul.f32 %v1948, %v495
        %v3617 = vmul.f32 %v1952, %v496
        %v3618 = vmul.f32 %v1956, %v497
        %v3619 = vmul.f32 %v1960, %v498
        %v3620 = vmul.f32 %v1964, %v499
        %v3621 = vmul.f32 %v1968, %v500
        %v3622 = vmul.f32 %v1972, %v501
        %v3623 = vmul.f32 %v1976, %v502
        %v3624 = vmul.f32 %v1980, %v503
        %v3625 = vmul.f32 %v1984, %v504
        %v3626 = vmul.f32 %v1988, %v505
        %v3627 = vmul.f32 %v1992, %v506
        %v3628 = vmul.f32 %v1996, %v507
        %v3629 = vmul.f32 %v2000, %v508
        %v3630 = vmul.f32 %v2004, %v509
        %v3631 = vmul.f32 %v2008, %v510
        %v3632 = vmul.f32 %v2012, %v511
        %v3633 = vmul.f32 %v2016, %v512
        %v3634 = vmul.f32 %v2020, %v513
        %v3635 = vmul.f32 %v2024, %v514
        %v3636 = vmul.f32 %v2028, %v515
        %v3637 = vmul.f32 %v2032, %v516
        %v3638 = vmul.f32 %v2036, %v517
        %v3639 = vmul.f32 %v2040, %v518
        %v3640 = vmul.f32 %v2044, %v519
        %v3641 = vmul.f32 %v2048, %v520
        %v3642 = vmul.f32 %v2052, %v521
        %v3643 = vmul.f32 %v2056, %v522
        %v3644 = vmul.f32 %v2060, %v523
        %v3645 = vmul.f32 %v2064, %v524
        %v3646 = vmul.f32 %v2068, %v525
        %v3647 = vmul.f32 %v2072, %v526
        %v3648 = vmul.f32 %v2076, %v527
        %v3649 = vmul.f32 %v2080, %v528
        %v3650 = vmul.f32 %v2084, %v529
        %v3651 = vmul.f32 %v2088, %v530
        %v3652 = vmul.f32 %v2092, %v531
        %v3653 = vmul.f32 %v2096, %v532
        %v3654 = vmul.f32 %v2100, %v533
        %v3655 = vmul.f32 %v2104, %v534
        %v3656 = vmul.f32 %v2108, %v535
        %v3657 = vmul.f32 %v2112, %v536
        %v3658 = vmul.f32 %v2116, %v537
        %v3659 = vmul.f32 %v2120, %v538
        %v3660 = vmul.f32 %v2124, %v539
        %v3661 = vmul.f32 %v2128, %v540
        %v3662 = vmul.f32 %v2132, %v541
        %v3663 = vmul.f32 %v2136, %v542
        %v3664 = vmul.f32 %v2140, %v543
        %v3665 = vmul.f32 %v2144, %v544
        %v3666 = vmul.f32 %v2148, %v545
        %v3667 = vmul.f32 %v2152, %v546
        %v3668 = vmul.f32 %v2156, %v547
        %v3669 = vmul.f32 %v2160, %v548
        %v3670 = vmul.f32 %v2164, %v549
        %v3671 = vmul.f32 %v2168, %v550
        %v3672 = vmul.f32 %v2172, %v551
        %v3673 = vmul.f32 %v2176, %v552
        %v3674 = vmul.f32 %v2180, %v553
        %v3675 = vmul.f32 %v2184, %v554
        %v3676 = vmul.f32 %v2188, %v555
        %v3677 = vmul.f32 %v2192, %v556
        %v3678 = vmul.f32 %v2196, %v557
        %v3679 = vmul.f32 %v2200, %v558
        %v3680 = vmul.f32 %v2204, %v559
        %v3681 = vmul.f32 %v2208, %v560
        %v3682 = vmul.f32 %v2212, %v561
        %v3683 = vmul.f32 %v2216, %v562
        %v3684 = vmul.f32 %v2220, %v563
        %v3685 = vmul.f32 %v2224, %v564
        %v3686 = vmul.f32 %v2228, %v565
        %v3687 = vmul.f32 %v2232, %v566
        %v3688 = vmul.f32 %v2236, %v567
        %v3689 = vmul.f32 %v2240, %v568
        %v3690 = vmul.f32 %v2244, %v569
        %v3691 = vmul.f32 %v2248, %v570
        %v3692 = vmul.f32 %v2252, %v571
        %v3693 = vmul.f32 %v2256, %v572
        %v3694 = vmul.f32 %v2260, %v573
        %v3695 = vmul.f32 %v2264, %v574
        %v3696 = vmul.f32 %v2268, %v575
        %v3697 = vmul.f32 %v2272, %v576
        %v3698 = vmul.f32 %v2276, %v577
        %v3699 = vmul.f32 %v2280, %v578
        %v3700 = vmul.f32 %v2284, %v579
        %v3701 = vmul.f32 %v2288, %v580
        %v3702 = vmul.f32 %v2292, %v581
        %v3703 = vmul.f32 %v2296, %v582
        %v3704 = vmul.f32 %v2300, %v583
        %v3705 = vmul.f32 %v2304, %v584
        %v3706 = vmul.f32 %v2308, %v585
        %v3707 = vmul.f32 %v2312, %v586
        %v3708 = vmul.f32 %v2316, %v587
        %v3709 = vmul.f32 %v2320, %v588
        %v3710 = vmul.f32 %v2324, %v589
        %v3711 = vmul.f32 %v2328, %v590
        %v3712 = vmul.f32 %v2332, %v591
        %v3713 = vmul.f32 %v2336, %v592
        %v3714 = vmul.f32 %v2340, %v593
        %v3715 = vmul.f32 %v2344, %v594
        %v3716 = vmul.f32 %v2348, %v595
        %v3717 = vmul.f32 %v2352, %v596
        %v3718 = vmul.f32 %v2356, %v597
        %v3719 = vmul.f32 %v2360, %v598
        %v3720 = vmul.f32 %v2364, %v599
        %v3721 = vmul.f32 %v2368, %v600
        %v3722 = vmul.f32 %v2372, %v601
        %v3723 = vmul.f32 %v2376, %v602
        %v3724 = vmul.f32 %v2380, %v603
        %v3725 = vmul.f32 %v2384, %v604
        %v3726 = vmul.f32 %v2388, %v605
        %v3727 = vmul.f32 %v2392, %v606
        %v3728 = vmul.f32 %v2396, %v607
        %v3729 = vmul.f32 %v2400, %v608
        %v3730 = vmul.f32 %v2404, %v609
        %v3731 = vmul.f32 %v2408, %v610
        %v3732 = vmul.f32 %v2412, %v611
        %v3733 = vmul.f32 %v2416, %v612
        %v3734 = vmul.f32 %v2420, %v613
        %v3735 = vmul.f32 %v2424, %v614
        %v3736 = vmul.f32 %v2428, %v615
        %v3737 = vmul.f32 %v2432, %v616
        %v3738 = vmul.f32 %v2436, %v617
        %v3739 = vmul.f32 %v2440, %v618
        %v3740 = vmul.f32 %v2444, %v619
        %v3741 = vmul.f32 %v2448, %v620
        %v3742 = vmul.f32 %v2452, %v621
        %v3743 = vmul.f32 %v2456, %v622
        %v3744 = vmul.f32 %v2460, %v623
        %v3745 = vmul.f32 %v2464, %v624
        %v3746 = vmul.f32 %v2468, %v625
        %v3747 = vmul.f32 %v2472, %v626
        %v3748 = vmul.f32 %v2476, %v627
        %v3749 = vmul.f32 %v2480, %v628
        %v3750 = vmul.f32 %v2484, %v629
        %v3751 = vmul.f32 %v2488, %v630
        %v3752 = vmul.f32 %v2492, %v631
        %v3753 = vmul.f32 %v2496, %v632
        %v3754 = vmul.f32 %v2500, %v633
        %v3755 = vmul.f32 %v2504, %v634
        %v3756 = vmul.f32 %v2508, %v635
        %v3757 = vmul.f32 %v2512, %v636
        %v3758 = vmul.f32 %v2516, %v637
        %v3759 = vmul.f32 %v2520, %v638
        %v3760 = vmul.f32 %v2524, %v639
        %v3761 = vmul.f32 %v2528, %v640
        %v3762 = vmul.f32 %v2532, %v641
        %v3763 = vmul.f32 %v2536, %v642
        %v3764 = vmul.f32 %v2540, %v643
        %v3765 = vmul.f32 %v2544, %v644
        %v3766 = vmul.f32 %v2548, %v645
        %v3767 = vmul.f32 %v2552, %v646
        %v3768 = vmul.f32 %v2556, %v647
        %v3769 = vmul.f32 %v2560, %v648
        %v3770 = vmul.f32 %v2564, %v649
        %v3771 = vmul.f32 %v2568, %v650
        %v3772 = vmul.f32 %v2572, %v651
        %v3773 = vmul.f32 %v2576, %v652
        %v3774 = vmul.f32 %v2580, %v653
        %v3775 = vmul.f32 %v2584, %v654
        %v3776 = vmul.f32 %v2588, %v655
        %v3777 = vmul.f32 %v2592, %v656
        %v3778 = vmul.f32 %v2596, %v657
        %v3779 = vmul.f32 %v2600, %v658
        %v3780 = vmul.f32 %v2604, %v659
        %v3781 = vmul.f32 %v2608, %v660
        %v3782 = vmul.f32 %v2612, %v661
        %v3783 = vmul.f32 %v2616, %v662
        %v3784 = vmul.f32 %v2620, %v663
        %v3785 = vmul.f32 %v2624, %v664
        %v3786 = vmul.f32 %v2628, %v665
        %v3787 = vmul.f32 %v2632, %v666
        %v3788 = vmul.f32 %v2636, %v667
        %v3789 = vadd.f32 %v3021, %v3022
        %v3790 = vadd.f32 %v3789, %v3023
        %v3791 = vadd.f32 %v3790, %v3024
        %v3792 = vadd.f32 %v3791, %v3025
        %v3793 = vadd.f32 %v3792, %v3026
        %v3794 = vadd.f32 %v3793, %v3027
        %v3795 = vadd.f32 %v3794, %v3028
        %v3796 = vadd.f32 %v3795, %v3029
        %v3797 = vadd.f32 %v3796, %v3030
        %v3798 = vadd.f32 %v3797, %v3031
        %v3799 = vadd.f32 %v3798, %v3032
        %v3800 = vadd.f32 %v3799, %v3033
        %v3801 = vadd.f32 %v3800, %v3034
        %v3802 = vadd.f32 %v3801, %v3035
        %v3803 = vadd.f32 %v3802, %v3036
        %v3804 = vadd.f32 %v3803, %v3037
        %v3805 = vadd.f32 %v3804, %v3038
        %v3806 = vadd.f32 %v3805, %v3039
        %v3807 = vadd.f32 %v3806, %v3040
        %v3808 = vadd.f32 %v3807, %v3041
        %v3809 = vadd.f32 %v3808, %v3042
        %v3810 = vadd.f32 %v3809, %v3043
        %v3811 = vadd.f32 %v3810, %v3044
        %v3812 = vadd.f32 %v3811, %v3045
        %v3813 = vadd.f32 %v3812, %v3046
        %v3814 = vadd.f32 %v3813, %v3047
        %v3815 = vadd.f32 %v3814, %v3048
        %v3816 = vadd.f32 %v3815, %v3049
        %v3817 = vadd.f32 %v3816, %v3050
        %v3818 = vadd.f32 %v3817, %v3051
        %v3819 = vadd.f32 %v3818, %v3052
        %v3820 = vadd.f32 %v3819, %v3053
        %v3821 = vadd.f32 %v3820, %v3054
        %v3822 = vadd.f32 %v3821, %v3055
        %v3823 = vadd.f32 %v3822, %v3056
        %v3824 = vadd.f32 %v3823, %v3057
        %v3825 = vadd.f32 %v3824, %v3058
        %v3826 = vadd.f32 %v3825, %v3059
        %v3827 = vadd.f32 %v3826, %v3060
        %v3828 = vadd.f32 %v3827, %v3061
        %v3829 = vadd.f32 %v3828, %v3062
        %v3830 = vadd.f32 %v3829, %v3063
        %v3831 = vadd.f32 %v3830, %v3064
        %v3832 = vadd.f32 %v3831, %v3065
        %v3833 = vadd.f32 %v3832, %v3066
        %v3834 = vadd.f32 %v3833, %v3067
        %v3835 = vadd.f32 %v3834, %v3068
        %v3836 = vadd.f32 %v3835, %v3069
        %v3837 = vadd.f32 %v3836, %v3070
        %v3838 = vadd.f32 %v3837, %v3071
        %v3839 = vadd.f32 %v3838, %v3072
        %v3840 = vadd.f32 %v3839, %v3073
        %v3841 = vadd.f32 %v3840, %v3074
        %v3842 = vadd.f32 %v3841, %v3075
        %v3843 = vadd.f32 %v3842, %v3076
        %v3844 = vadd.f32 %v3843, %v3077
        %v3845 = vadd.f32 %v3844, %v3078
        %v3846 = vadd.f32 %v3845, %v3079
        %v3847 = vadd.f32 %v3846, %v3080
        %v3848 = vadd.f32 %v3847, %v3081
        %v3849 = vadd.f32 %v3848, %v3082
        %v3850 = vadd.f32 %v3849, %v3083
        %v3851 = vadd.f32 %v3850, %v3084
        %v3852 = vadd.f32 %v3851, %v3085
        %v3853 = vadd.f32 %v3852, %v3086
        %v3854 = vadd.f32 %v3853, %v3087
        %v3855 = vadd.f32 %v3854, %v3088
        %v3856 = vadd.f32 %v3855, %v3089
        %v3857 = vadd.f32 %v3856, %v3090
        %v3858 = vadd.f32 %v3857, %v3091
        %v3859 = vadd.f32 %v3858, %v3092
        %v3860 = vadd.f32 %v3859, %v3093
        %v3861 = vadd.f32 %v3860, %v3094
        %v3862 = vadd.f32 %v3861, %v3095
        %v3863 = vadd.f32 %v3862, %v3096
        %v3864 = vadd.f32 %v3863, %v3097
        %v3865 = vadd.f32 %v3864, %v3098
        %v3866 = vadd.f32 %v3865, %v3099
        %v3867 = vadd.f32 %v3866, %v3100
        %v3868 = vadd.f32 %v3867, %v3101
        %v3869 = vadd.f32 %v3868, %v3102
        %v3870 = vadd.f32 %v3869, %v3103
        %v3871 = vadd.f32 %v3870, %v3104
        %v3872 = vadd.f32 %v3871, %v3105
        %v3873 = vadd.f32 %v3872, %v3106
        %v3874 = vadd.f32 %v3873, %v3107
        %v3875 = vadd.f32 %v3874, %v3108
        %v3876 = vadd.f32 %v3875, %v3109
        %v3877 = vadd.f32 %v3876, %v3110
        %v3878 = vadd.f32 %v3877, %v3111
        %v3879 = vadd.f32 %v3878, %v3112
        %v3880 = vadd.f32 %v3879, %v3113
        %v3881 = vadd.f32 %v3880, %v3114
        %v3882 = vadd.f32 %v3881, %v3115
        %v3883 = vadd.f32 %v3882, %v3116
        %v3884 = vadd.f32 %v3883, %v3117
        %v3885 = vadd.f32 %v3884, %v3118
        %v3886 = vadd.f32 %v3885, %v3119
        %v3887 = vadd.f32 %v3886, %v3120
        %v3888 = vadd.f32 %v3887, %v3121
        %v3889 = vadd.f32 %v3888, %v3122
        %v3890 = vadd.f32 %v3889, %v3123
        %v3891 = vadd.f32 %v3890, %v3124
        %v3892 = vadd.f32 %v3891, %v3125
        %v3893 = vadd.f32 %v3892, %v3126
        %v3894 = vadd.f32 %v3893, %v3127
        %v3895 = vadd.f32 %v3894, %v3128
        %v3896 = vadd.f32 %v3895, %v3129
        %v3897 = vadd.f32 %v3896, %v3130
        %v3898 = vadd.f32 %v3897, %v3131
        %v3899 = vadd.f32 %v3898, %v3132
        %v3900 = vadd.f32 %v3899, %v3133
        %v3901 = vadd.f32 %v3900, %v3134
        %v3902 = vadd.f32 %v3901, %v3135
        %v3903 = vadd.f32 %v3902, %v3136
        %v3904 = vadd.f32 %v3903, %v3137
        %v3905 = vadd.f32 %v3904, %v3138
        %v3906 = vadd.f32 %v3905, %v3139
        %v3907 = vadd.f32 %v3906, %v3140
        %v3908 = vadd.f32 %v3907, %v3141
        %v3909 = vadd.f32 %v3908, %v3142
        %v3910 = vadd.f32 %v3909, %v3143
        %v3911 = vadd.f32 %v3910, %v3144
        %v3912 = vadd.f32 %v3911, %v3145
        %v3913 = vadd.f32 %v3912, %v3146
        %v3914 = vadd.f32 %v3913, %v3147
        %v3915 = vadd.f32 %v3914, %v3148
        %v3916 = vadd.f32 %v3915, %v3149
        %v3917 = vadd.f32 %v3916, %v3150
        %v3918 = vadd.f32 %v3917, %v3151
        %v3919 = vadd.f32 %v3918, %v3152
        %v3920 = vadd.f32 %v3919, %v3153
        %v3921 = vadd.f32 %v3920, %v3154
        %v3922 = vadd.f32 %v3921, %v3155
        %v3923 = vadd.f32 %v3922, %v3156
        %v3924 = vadd.f32 %v3923, %v3157
        %v3925 = vadd.f32 %v3924, %v3158
        %v3926 = vadd.f32 %v3925, %v3159
        %v3927 = vadd.f32 %v3926, %v3160
        %v3928 = vadd.f32 %v3927, %v3161
        %v3929 = vadd.f32 %v3928, %v3162
        %v3930 = vadd.f32 %v3929, %v3163
        %v3931 = vadd.f32 %v3930, %v3164
        %v3932 = vadd.f32 %v3931, %v3165
        %v3933 = vadd.f32 %v3932, %v3166
        %v3934 = vadd.f32 %v3933, %v3167
        %v3935 = vadd.f32 %v3934, %v3168
        %v3936 = vadd.f32 %v3935, %v3169
        %v3937 = vadd.f32 %v3936, %v3170
        %v3938 = vadd.f32 %v3937, %v3171
        %v3939 = vadd.f32 %v3938, %v3172
        %v3940 = vadd.f32 %v3939, %v3173
        %v3941 = vadd.f32 %v3940, %v3174
        %v3942 = vadd.f32 %v3941, %v3175
        %v3943 = vadd.f32 %v3942, %v3176
        %v3944 = vadd.f32 %v3943, %v3177
        %v3945 = vadd.f32 %v3944, %v3178
        %v3946 = vadd.f32 %v3945, %v3179
        %v3947 = vadd.f32 %v3946, %v3180
        %v3948 = vadd.f32 %v3947, %v3181
        %v3949 = vadd.f32 %v3948, %v3182
        %v3950 = vadd.f32 %v3949, %v3183
        %v3951 = vadd.f32 %v3950, %v3184
        %v3952 = vadd.f32 %v3951, %v3185
        %v3953 = vadd.f32 %v3952, %v3186
        %v3954 = vadd.f32 %v3953, %v3187
        %v3955 = vadd.f32 %v3954, %v3188
        %v3956 = vadd.f32 %v3955, %v3189
        %v3957 = vadd.f32 %v3956, %v3190
        %v3958 = vadd.f32 %v3957, %v3191
        %v3959 = vadd.f32 %v3958, %v3192
        %v3960 = vadd.f32 %v3959, %v3193
        %v3961 = vadd.f32 %v3960, %v3194
        %v3962 = vadd.f32 %v3961, %v3195
        %v3963 = vadd.f32 %v3962, %v3196
        %v3964 = vadd.f32 %v3963, %v3197
        %v3965 = vadd.f32 %v3964, %v3198
        %v3966 = vadd.f32 %v3965, %v3199
        %v3967 = vadd.f32 %v3966, %v3200
        %v3968 = vadd.f32 %v3967, %v3201
        %v3969 = vadd.f32 %v3968, %v3202
        %v3970 = vadd.f32 %v3969, %v3203
        %v3971 = vadd.f32 %v3970, %v3204
        %v3972 = vadd.f32 %v3971, %v3205
        %v3973 = vadd.f32 %v3972, %v3206
        %v3974 = vadd.f32 %v3973, %v3207
        %v3975 = vadd.f32 %v3974, %v3208
        %v3976 = vadd.f32 %v3975, %v3209
        %v3977 = vadd.f32 %v3976, %v3210
        %v3978 = vadd.f32 %v3977, %v3211
        %v3979 = vadd.f32 %v3978, %v3212
        %3980 = vadd.xlane.f32.xlu0 %v3979
        %v3981 = vpop.xlane.xlu0 %3980
        %vm3982 = vcmask 1041408
        %v3983 = vsel %vm3982, %v3213, 0.0
        %v3984 = vsel %vm3982, %v3214, 0.0
        %v3985 = vadd.f32 %v3983, %v3984
        %v3986 = vsel %vm3982, %v3215, 0.0
        %v3987 = vadd.f32 %v3985, %v3986
        %v3988 = vsel %vm3982, %v3216, 0.0
        %v3989 = vadd.f32 %v3987, %v3988
        %v3990 = vsel %vm3982, %v3217, 0.0
        %v3991 = vadd.f32 %v3989, %v3990
        %v3992 = vsel %vm3982, %v3218, 0.0
        %v3993 = vadd.f32 %v3991, %v3992
        %v3994 = vsel %vm3982, %v3219, 0.0
        %v3995 = vadd.f32 %v3993, %v3994
        %v3996 = vsel %vm3982, %v3220, 0.0
        %v3997 = vadd.f32 %v3995, %v3996
        %v3998 = vsel %vm3982, %v3221, 0.0
        %v3999 = vadd.f32 %v3997, %v3998
        %v4000 = vsel %vm3982, %v3222, 0.0
        %v4001 = vadd.f32 %v3999, %v4000
        %v4002 = vsel %vm3982, %v3223, 0.0
        %v4003 = vadd.f32 %v4001, %v4002
        %v4004 = vsel %vm3982, %v3224, 0.0
        %v4005 = vadd.f32 %v4003, %v4004
        %v4006 = vsel %vm3982, %v3225, 0.0
        %v4007 = vadd.f32 %v4005, %v4006
        %v4008 = vsel %vm3982, %v3226, 0.0
        %v4009 = vadd.f32 %v4007, %v4008
        %v4010 = vsel %vm3982, %v3227, 0.0
        %v4011 = vadd.f32 %v4009, %v4010
        %v4012 = vsel %vm3982, %v3228, 0.0
        %v4013 = vadd.f32 %v4011, %v4012
        %v4014 = vsel %vm3982, %v3229, 0.0
        %v4015 = vadd.f32 %v4013, %v4014
        %v4016 = vsel %vm3982, %v3230, 0.0
        %v4017 = vadd.f32 %v4015, %v4016
        %v4018 = vsel %vm3982, %v3231, 0.0
        %v4019 = vadd.f32 %v4017, %v4018
        %v4020 = vsel %vm3982, %v3232, 0.0
        %v4021 = vadd.f32 %v4019, %v4020
        %v4022 = vsel %vm3982, %v3233, 0.0
        %v4023 = vadd.f32 %v4021, %v4022
        %v4024 = vsel %vm3982, %v3234, 0.0
        %v4025 = vadd.f32 %v4023, %v4024
        %v4026 = vsel %vm3982, %v3235, 0.0
        %v4027 = vadd.f32 %v4025, %v4026
        %v4028 = vsel %vm3982, %v3236, 0.0
        %v4029 = vadd.f32 %v4027, %v4028
        %v4030 = vsel %vm3982, %v3237, 0.0
        %v4031 = vadd.f32 %v4029, %v4030
        %v4032 = vsel %vm3982, %v3238, 0.0
        %v4033 = vadd.f32 %v4031, %v4032
        %v4034 = vsel %vm3982, %v3239, 0.0
        %v4035 = vadd.f32 %v4033, %v4034
        %v4036 = vsel %vm3982, %v3240, 0.0
        %v4037 = vadd.f32 %v4035, %v4036
        %v4038 = vsel %vm3982, %v3241, 0.0
        %v4039 = vadd.f32 %v4037, %v4038
        %v4040 = vsel %vm3982, %v3242, 0.0
        %v4041 = vadd.f32 %v4039, %v4040
        %v4042 = vsel %vm3982, %v3243, 0.0
        %v4043 = vadd.f32 %v4041, %v4042
        %v4044 = vsel %vm3982, %v3244, 0.0
        %v4045 = vadd.f32 %v4043, %v4044
        %v4046 = vsel %vm3982, %v3245, 0.0
        %v4047 = vadd.f32 %v4045, %v4046
        %v4048 = vsel %vm3982, %v3246, 0.0
        %v4049 = vadd.f32 %v4047, %v4048
        %v4050 = vsel %vm3982, %v3247, 0.0
        %v4051 = vadd.f32 %v4049, %v4050
        %v4052 = vsel %vm3982, %v3248, 0.0
        %v4053 = vadd.f32 %v4051, %v4052
        %v4054 = vsel %vm3982, %v3249, 0.0
        %v4055 = vadd.f32 %v4053, %v4054
        %v4056 = vsel %vm3982, %v3250, 0.0
        %v4057 = vadd.f32 %v4055, %v4056
        %v4058 = vsel %vm3982, %v3251, 0.0
        %v4059 = vadd.f32 %v4057, %v4058
        %v4060 = vsel %vm3982, %v3252, 0.0
        %v4061 = vadd.f32 %v4059, %v4060
        %v4062 = vsel %vm3982, %v3253, 0.0
        %v4063 = vadd.f32 %v4061, %v4062
        %v4064 = vsel %vm3982, %v3254, 0.0
        %v4065 = vadd.f32 %v4063, %v4064
        %v4066 = vsel %vm3982, %v3255, 0.0
        %v4067 = vadd.f32 %v4065, %v4066
        %v4068 = vsel %vm3982, %v3256, 0.0
        %v4069 = vadd.f32 %v4067, %v4068
        %v4070 = vsel %vm3982, %v3257, 0.0
        %v4071 = vadd.f32 %v4069, %v4070
        %v4072 = vsel %vm3982, %v3258, 0.0
        %v4073 = vadd.f32 %v4071, %v4072
        %v4074 = vsel %vm3982, %v3259, 0.0
        %v4075 = vadd.f32 %v4073, %v4074
        %v4076 = vsel %vm3982, %v3260, 0.0
        %v4077 = vadd.f32 %v4075, %v4076
        %v4078 = vsel %vm3982, %v3261, 0.0
        %v4079 = vadd.f32 %v4077, %v4078
        %v4080 = vsel %vm3982, %v3262, 0.0
        %v4081 = vadd.f32 %v4079, %v4080
        %v4082 = vsel %vm3982, %v3263, 0.0
        %v4083 = vadd.f32 %v4081, %v4082
        %v4084 = vsel %vm3982, %v3264, 0.0
        %v4085 = vadd.f32 %v4083, %v4084
        %v4086 = vsel %vm3982, %v3265, 0.0
        %v4087 = vadd.f32 %v4085, %v4086
        %v4088 = vsel %vm3982, %v3266, 0.0
        %v4089 = vadd.f32 %v4087, %v4088
        %v4090 = vsel %vm3982, %v3267, 0.0
        %v4091 = vadd.f32 %v4089, %v4090
        %v4092 = vsel %vm3982, %v3268, 0.0
        %v4093 = vadd.f32 %v4091, %v4092
        %v4094 = vsel %vm3982, %v3269, 0.0
        %v4095 = vadd.f32 %v4093, %v4094
        %v4096 = vsel %vm3982, %v3270, 0.0
        %v4097 = vadd.f32 %v4095, %v4096
        %v4098 = vsel %vm3982, %v3271, 0.0
        %v4099 = vadd.f32 %v4097, %v4098
        %v4100 = vsel %vm3982, %v3272, 0.0
        %v4101 = vadd.f32 %v4099, %v4100
        %v4102 = vsel %vm3982, %v3273, 0.0
        %v4103 = vadd.f32 %v4101, %v4102
        %v4104 = vsel %vm3982, %v3274, 0.0
        %v4105 = vadd.f32 %v4103, %v4104
        %v4106 = vsel %vm3982, %v3275, 0.0
        %v4107 = vadd.f32 %v4105, %v4106
        %v4108 = vsel %vm3982, %v3276, 0.0
        %v4109 = vadd.f32 %v4107, %v4108
        %v4110 = vsel %vm3982, %v3277, 0.0
        %v4111 = vadd.f32 %v4109, %v4110
        %v4112 = vsel %vm3982, %v3278, 0.0
        %v4113 = vadd.f32 %v4111, %v4112
        %v4114 = vsel %vm3982, %v3279, 0.0
        %v4115 = vadd.f32 %v4113, %v4114
        %v4116 = vsel %vm3982, %v3280, 0.0
        %v4117 = vadd.f32 %v4115, %v4116
        %v4118 = vsel %vm3982, %v3281, 0.0
        %v4119 = vadd.f32 %v4117, %v4118
        %v4120 = vsel %vm3982, %v3282, 0.0
        %v4121 = vadd.f32 %v4119, %v4120
        %v4122 = vsel %vm3982, %v3283, 0.0
        %v4123 = vadd.f32 %v4121, %v4122
        %v4124 = vsel %vm3982, %v3284, 0.0
        %v4125 = vadd.f32 %v4123, %v4124
        %v4126 = vsel %vm3982, %v3285, 0.0
        %v4127 = vadd.f32 %v4125, %v4126
        %v4128 = vsel %vm3982, %v3286, 0.0
        %v4129 = vadd.f32 %v4127, %v4128
        %v4130 = vsel %vm3982, %v3287, 0.0
        %v4131 = vadd.f32 %v4129, %v4130
        %v4132 = vsel %vm3982, %v3288, 0.0
        %v4133 = vadd.f32 %v4131, %v4132
        %v4134 = vsel %vm3982, %v3289, 0.0
        %v4135 = vadd.f32 %v4133, %v4134
        %v4136 = vsel %vm3982, %v3290, 0.0
        %v4137 = vadd.f32 %v4135, %v4136
        %v4138 = vsel %vm3982, %v3291, 0.0
        %v4139 = vadd.f32 %v4137, %v4138
        %v4140 = vsel %vm3982, %v3292, 0.0
        %v4141 = vadd.f32 %v4139, %v4140
        %v4142 = vsel %vm3982, %v3293, 0.0
        %v4143 = vadd.f32 %v4141, %v4142
        %v4144 = vsel %vm3982, %v3294, 0.0
        %v4145 = vadd.f32 %v4143, %v4144
        %v4146 = vsel %vm3982, %v3295, 0.0
        %v4147 = vadd.f32 %v4145, %v4146
        %v4148 = vsel %vm3982, %v3296, 0.0
        %v4149 = vadd.f32 %v4147, %v4148
        %v4150 = vsel %vm3982, %v3297, 0.0
        %v4151 = vadd.f32 %v4149, %v4150
        %v4152 = vsel %vm3982, %v3298, 0.0
        %v4153 = vadd.f32 %v4151, %v4152
        %v4154 = vsel %vm3982, %v3299, 0.0
        %v4155 = vadd.f32 %v4153, %v4154
        %v4156 = vsel %vm3982, %v3300, 0.0
        %v4157 = vadd.f32 %v4155, %v4156
        %v4158 = vsel %vm3982, %v3301, 0.0
        %v4159 = vadd.f32 %v4157, %v4158
        %v4160 = vsel %vm3982, %v3302, 0.0
        %v4161 = vadd.f32 %v4159, %v4160
        %v4162 = vsel %vm3982, %v3303, 0.0
        %v4163 = vadd.f32 %v4161, %v4162
        %v4164 = vsel %vm3982, %v3304, 0.0
        %v4165 = vadd.f32 %v4163, %v4164
        %v4166 = vsel %vm3982, %v3305, 0.0
        %v4167 = vadd.f32 %v4165, %v4166
        %v4168 = vsel %vm3982, %v3306, 0.0
        %v4169 = vadd.f32 %v4167, %v4168
        %v4170 = vsel %vm3982, %v3307, 0.0
        %v4171 = vadd.f32 %v4169, %v4170
        %v4172 = vsel %vm3982, %v3308, 0.0
        %v4173 = vadd.f32 %v4171, %v4172
        %v4174 = vsel %vm3982, %v3309, 0.0
        %v4175 = vadd.f32 %v4173, %v4174
        %v4176 = vsel %vm3982, %v3310, 0.0
        %v4177 = vadd.f32 %v4175, %v4176
        %v4178 = vsel %vm3982, %v3311, 0.0
        %v4179 = vadd.f32 %v4177, %v4178
        %v4180 = vsel %vm3982, %v3312, 0.0
        %v4181 = vadd.f32 %v4179, %v4180
        %v4182 = vsel %vm3982, %v3313, 0.0
        %v4183 = vadd.f32 %v4181, %v4182
        %v4184 = vsel %vm3982, %v3314, 0.0
        %v4185 = vadd.f32 %v4183, %v4184
        %v4186 = vsel %vm3982, %v3315, 0.0
        %v4187 = vadd.f32 %v4185, %v4186
        %v4188 = vsel %vm3982, %v3316, 0.0
        %v4189 = vadd.f32 %v4187, %v4188
        %v4190 = vsel %vm3982, %v3317, 0.0
        %v4191 = vadd.f32 %v4189, %v4190
        %v4192 = vsel %vm3982, %v3318, 0.0
        %v4193 = vadd.f32 %v4191, %v4192
        %v4194 = vsel %vm3982, %v3319, 0.0
        %v4195 = vadd.f32 %v4193, %v4194
        %v4196 = vsel %vm3982, %v3320, 0.0
        %v4197 = vadd.f32 %v4195, %v4196
        %v4198 = vsel %vm3982, %v3321, 0.0
        %v4199 = vadd.f32 %v4197, %v4198
        %v4200 = vsel %vm3982, %v3322, 0.0
        %v4201 = vadd.f32 %v4199, %v4200
        %v4202 = vsel %vm3982, %v3323, 0.0
        %v4203 = vadd.f32 %v4201, %v4202
        %v4204 = vsel %vm3982, %v3324, 0.0
        %v4205 = vadd.f32 %v4203, %v4204
        %v4206 = vsel %vm3982, %v3325, 0.0
        %v4207 = vadd.f32 %v4205, %v4206
        %v4208 = vsel %vm3982, %v3326, 0.0
        %v4209 = vadd.f32 %v4207, %v4208
        %v4210 = vsel %vm3982, %v3327, 0.0
        %v4211 = vadd.f32 %v4209, %v4210
        %v4212 = vsel %vm3982, %v3328, 0.0
        %v4213 = vadd.f32 %v4211, %v4212
        %v4214 = vsel %vm3982, %v3329, 0.0
        %v4215 = vadd.f32 %v4213, %v4214
        %v4216 = vsel %vm3982, %v3330, 0.0
        %v4217 = vadd.f32 %v4215, %v4216
        %v4218 = vsel %vm3982, %v3331, 0.0
        %v4219 = vadd.f32 %v4217, %v4218
        %v4220 = vsel %vm3982, %v3332, 0.0
        %v4221 = vadd.f32 %v4219, %v4220
        %v4222 = vsel %vm3982, %v3333, 0.0
        %v4223 = vadd.f32 %v4221, %v4222
        %v4224 = vsel %vm3982, %v3334, 0.0
        %v4225 = vadd.f32 %v4223, %v4224
        %v4226 = vsel %vm3982, %v3335, 0.0
        %v4227 = vadd.f32 %v4225, %v4226
        %v4228 = vsel %vm3982, %v3336, 0.0
        %v4229 = vadd.f32 %v4227, %v4228
        %v4230 = vsel %vm3982, %v3337, 0.0
        %v4231 = vadd.f32 %v4229, %v4230
        %v4232 = vsel %vm3982, %v3338, 0.0
        %v4233 = vadd.f32 %v4231, %v4232
        %v4234 = vsel %vm3982, %v3339, 0.0
        %v4235 = vadd.f32 %v4233, %v4234
        %v4236 = vsel %vm3982, %v3340, 0.0
        %v4237 = vadd.f32 %v4235, %v4236
        %v4238 = vsel %vm3982, %v3341, 0.0
        %v4239 = vadd.f32 %v4237, %v4238
        %v4240 = vsel %vm3982, %v3342, 0.0
        %v4241 = vadd.f32 %v4239, %v4240
        %v4242 = vsel %vm3982, %v3343, 0.0
        %v4243 = vadd.f32 %v4241, %v4242
        %v4244 = vsel %vm3982, %v3344, 0.0
        %v4245 = vadd.f32 %v4243, %v4244
        %v4246 = vsel %vm3982, %v3345, 0.0
        %v4247 = vadd.f32 %v4245, %v4246
        %v4248 = vsel %vm3982, %v3346, 0.0
        %v4249 = vadd.f32 %v4247, %v4248
        %v4250 = vsel %vm3982, %v3347, 0.0
        %v4251 = vadd.f32 %v4249, %v4250
        %v4252 = vsel %vm3982, %v3348, 0.0
        %v4253 = vadd.f32 %v4251, %v4252
        %v4254 = vsel %vm3982, %v3349, 0.0
        %v4255 = vadd.f32 %v4253, %v4254
        %v4256 = vsel %vm3982, %v3350, 0.0
        %v4257 = vadd.f32 %v4255, %v4256
        %v4258 = vsel %vm3982, %v3351, 0.0
        %v4259 = vadd.f32 %v4257, %v4258
        %v4260 = vsel %vm3982, %v3352, 0.0
        %v4261 = vadd.f32 %v4259, %v4260
        %v4262 = vsel %vm3982, %v3353, 0.0
        %v4263 = vadd.f32 %v4261, %v4262
        %v4264 = vsel %vm3982, %v3354, 0.0
        %v4265 = vadd.f32 %v4263, %v4264
        %v4266 = vsel %vm3982, %v3355, 0.0
        %v4267 = vadd.f32 %v4265, %v4266
        %v4268 = vsel %vm3982, %v3356, 0.0
        %v4269 = vadd.f32 %v4267, %v4268
        %v4270 = vsel %vm3982, %v3357, 0.0
        %v4271 = vadd.f32 %v4269, %v4270
        %v4272 = vsel %vm3982, %v3358, 0.0
        %v4273 = vadd.f32 %v4271, %v4272
        %v4274 = vsel %vm3982, %v3359, 0.0
        %v4275 = vadd.f32 %v4273, %v4274
        %v4276 = vsel %vm3982, %v3360, 0.0
        %v4277 = vadd.f32 %v4275, %v4276
        %v4278 = vsel %vm3982, %v3361, 0.0
        %v4279 = vadd.f32 %v4277, %v4278
        %v4280 = vsel %vm3982, %v3362, 0.0
        %v4281 = vadd.f32 %v4279, %v4280
        %v4282 = vsel %vm3982, %v3363, 0.0
        %v4283 = vadd.f32 %v4281, %v4282
        %v4284 = vsel %vm3982, %v3364, 0.0
        %v4285 = vadd.f32 %v4283, %v4284
        %v4286 = vsel %vm3982, %v3365, 0.0
        %v4287 = vadd.f32 %v4285, %v4286
        %v4288 = vsel %vm3982, %v3366, 0.0
        %v4289 = vadd.f32 %v4287, %v4288
        %v4290 = vsel %vm3982, %v3367, 0.0
        %v4291 = vadd.f32 %v4289, %v4290
        %v4292 = vsel %vm3982, %v3368, 0.0
        %v4293 = vadd.f32 %v4291, %v4292
        %v4294 = vsel %vm3982, %v3369, 0.0
        %v4295 = vadd.f32 %v4293, %v4294
        %v4296 = vsel %vm3982, %v3370, 0.0
        %v4297 = vadd.f32 %v4295, %v4296
        %v4298 = vsel %vm3982, %v3371, 0.0
        %v4299 = vadd.f32 %v4297, %v4298
        %v4300 = vsel %vm3982, %v3372, 0.0
        %v4301 = vadd.f32 %v4299, %v4300
        %v4302 = vsel %vm3982, %v3373, 0.0
        %v4303 = vadd.f32 %v4301, %v4302
        %v4304 = vsel %vm3982, %v3374, 0.0
        %v4305 = vadd.f32 %v4303, %v4304
        %v4306 = vsel %vm3982, %v3375, 0.0
        %v4307 = vadd.f32 %v4305, %v4306
        %v4308 = vsel %vm3982, %v3376, 0.0
        %v4309 = vadd.f32 %v4307, %v4308
        %v4310 = vsel %vm3982, %v3377, 0.0
        %v4311 = vadd.f32 %v4309, %v4310
        %v4312 = vsel %vm3982, %v3378, 0.0
        %v4313 = vadd.f32 %v4311, %v4312
        %v4314 = vsel %vm3982, %v3379, 0.0
        %v4315 = vadd.f32 %v4313, %v4314
        %v4316 = vsel %vm3982, %v3380, 0.0
        %v4317 = vadd.f32 %v4315, %v4316
        %v4318 = vsel %vm3982, %v3381, 0.0
        %v4319 = vadd.f32 %v4317, %v4318
        %v4320 = vsel %vm3982, %v3382, 0.0
        %v4321 = vadd.f32 %v4319, %v4320
        %v4322 = vsel %vm3982, %v3383, 0.0
        %v4323 = vadd.f32 %v4321, %v4322
        %v4324 = vsel %vm3982, %v3384, 0.0
        %v4325 = vadd.f32 %v4323, %v4324
        %v4326 = vsel %vm3982, %v3385, 0.0
        %v4327 = vadd.f32 %v4325, %v4326
        %v4328 = vsel %vm3982, %v3386, 0.0
        %v4329 = vadd.f32 %v4327, %v4328
        %v4330 = vsel %vm3982, %v3387, 0.0
        %v4331 = vadd.f32 %v4329, %v4330
        %v4332 = vsel %vm3982, %v3388, 0.0
        %v4333 = vadd.f32 %v4331, %v4332
        %v4334 = vsel %vm3982, %v3389, 0.0
        %v4335 = vadd.f32 %v4333, %v4334
        %v4336 = vsel %vm3982, %v3390, 0.0
        %v4337 = vadd.f32 %v4335, %v4336
        %v4338 = vsel %vm3982, %v3391, 0.0
        %v4339 = vadd.f32 %v4337, %v4338
        %v4340 = vsel %vm3982, %v3392, 0.0
        %v4341 = vadd.f32 %v4339, %v4340
        %v4342 = vsel %vm3982, %v3393, 0.0
        %v4343 = vadd.f32 %v4341, %v4342
        %v4344 = vsel %vm3982, %v3394, 0.0
        %v4345 = vadd.f32 %v4343, %v4344
        %v4346 = vsel %vm3982, %v3395, 0.0
        %v4347 = vadd.f32 %v4345, %v4346
        %v4348 = vsel %vm3982, %v3396, 0.0
        %v4349 = vadd.f32 %v4347, %v4348
        %v4350 = vsel %vm3982, %v3397, 0.0
        %v4351 = vadd.f32 %v4349, %v4350
        %v4352 = vsel %vm3982, %v3398, 0.0
        %v4353 = vadd.f32 %v4351, %v4352
        %v4354 = vsel %vm3982, %v3399, 0.0
        %v4355 = vadd.f32 %v4353, %v4354
        %v4356 = vsel %vm3982, %v3400, 0.0
        %v4357 = vadd.f32 %v4355, %v4356
        %v4358 = vsel %vm3982, %v3401, 0.0
        %v4359 = vadd.f32 %v4357, %v4358
        %v4360 = vsel %vm3982, %v3402, 0.0
        %v4361 = vadd.f32 %v4359, %v4360
        %v4362 = vsel %vm3982, %v3403, 0.0
        %v4363 = vadd.f32 %v4361, %v4362
        %v4364 = vsel %vm3982, %v3404, 0.0
        %v4365 = vadd.f32 %v4363, %v4364
        %4366 = vadd.xlane.f32.xlu0 %v4365
        %v4367 = vpop.xlane.xlu0 %4366
        %v4368 = vadd.f32 %v3405, %v3406
        %v4369 = vadd.f32 %v4368, %v3407
        %v4370 = vadd.f32 %v4369, %v3408
        %v4371 = vadd.f32 %v4370, %v3409
        %v4372 = vadd.f32 %v4371, %v3410
        %v4373 = vadd.f32 %v4372, %v3411
        %v4374 = vadd.f32 %v4373, %v3412
        %v4375 = vadd.f32 %v4374, %v3413
        %v4376 = vadd.f32 %v4375, %v3414
        %v4377 = vadd.f32 %v4376, %v3415
        %v4378 = vadd.f32 %v4377, %v3416
        %v4379 = vadd.f32 %v4378, %v3417
        %v4380 = vadd.f32 %v4379, %v3418
        %v4381 = vadd.f32 %v4380, %v3419
        %v4382 = vadd.f32 %v4381, %v3420
        %v4383 = vadd.f32 %v4382, %v3421
        %v4384 = vadd.f32 %v4383, %v3422
        %v4385 = vadd.f32 %v4384, %v3423
        %v4386 = vadd.f32 %v4385, %v3424
        %v4387 = vadd.f32 %v4386, %v3425
        %v4388 = vadd.f32 %v4387, %v3426
        %v4389 = vadd.f32 %v4388, %v3427
        %v4390 = vadd.f32 %v4389, %v3428
        %v4391 = vadd.f32 %v4390, %v3429
        %v4392 = vadd.f32 %v4391, %v3430
        %v4393 = vadd.f32 %v4392, %v3431
        %v4394 = vadd.f32 %v4393, %v3432
        %v4395 = vadd.f32 %v4394, %v3433
        %v4396 = vadd.f32 %v4395, %v3434
        %v4397 = vadd.f32 %v4396, %v3435
        %v4398 = vadd.f32 %v4397, %v3436
        %v4399 = vadd.f32 %v4398, %v3437
        %v4400 = vadd.f32 %v4399, %v3438
        %v4401 = vadd.f32 %v4400, %v3439
        %v4402 = vadd.f32 %v4401, %v3440
        %v4403 = vadd.f32 %v4402, %v3441
        %v4404 = vadd.f32 %v4403, %v3442
        %v4405 = vadd.f32 %v4404, %v3443
        %v4406 = vadd.f32 %v4405, %v3444
        %v4407 = vadd.f32 %v4406, %v3445
        %v4408 = vadd.f32 %v4407, %v3446
        %v4409 = vadd.f32 %v4408, %v3447
        %v4410 = vadd.f32 %v4409, %v3448
        %v4411 = vadd.f32 %v4410, %v3449
        %v4412 = vadd.f32 %v4411, %v3450
        %v4413 = vadd.f32 %v4412, %v3451
        %v4414 = vadd.f32 %v4413, %v3452
        %v4415 = vadd.f32 %v4414, %v3453
        %v4416 = vadd.f32 %v4415, %v3454
        %v4417 = vadd.f32 %v4416, %v3455
        %v4418 = vadd.f32 %v4417, %v3456
        %v4419 = vadd.f32 %v4418, %v3457
        %v4420 = vadd.f32 %v4419, %v3458
        %v4421 = vadd.f32 %v4420, %v3459
        %v4422 = vadd.f32 %v4421, %v3460
        %v4423 = vadd.f32 %v4422, %v3461
        %v4424 = vadd.f32 %v4423, %v3462
        %v4425 = vadd.f32 %v4424, %v3463
        %v4426 = vadd.f32 %v4425, %v3464
        %v4427 = vadd.f32 %v4426, %v3465
        %v4428 = vadd.f32 %v4427, %v3466
        %v4429 = vadd.f32 %v4428, %v3467
        %v4430 = vadd.f32 %v4429, %v3468
        %v4431 = vadd.f32 %v4430, %v3469
        %v4432 = vadd.f32 %v4431, %v3470
        %v4433 = vadd.f32 %v4432, %v3471
        %v4434 = vadd.f32 %v4433, %v3472
        %v4435 = vadd.f32 %v4434, %v3473
        %v4436 = vadd.f32 %v4435, %v3474
        %v4437 = vadd.f32 %v4436, %v3475
        %v4438 = vadd.f32 %v4437, %v3476
        %v4439 = vadd.f32 %v4438, %v3477
        %v4440 = vadd.f32 %v4439, %v3478
        %v4441 = vadd.f32 %v4440, %v3479
        %v4442 = vadd.f32 %v4441, %v3480
        %v4443 = vadd.f32 %v4442, %v3481
        %v4444 = vadd.f32 %v4443, %v3482
        %v4445 = vadd.f32 %v4444, %v3483
        %v4446 = vadd.f32 %v4445, %v3484
        %v4447 = vadd.f32 %v4446, %v3485
        %v4448 = vadd.f32 %v4447, %v3486
        %v4449 = vadd.f32 %v4448, %v3487
        %v4450 = vadd.f32 %v4449, %v3488
        %v4451 = vadd.f32 %v4450, %v3489
        %v4452 = vadd.f32 %v4451, %v3490
        %v4453 = vadd.f32 %v4452, %v3491
        %v4454 = vadd.f32 %v4453, %v3492
        %v4455 = vadd.f32 %v4454, %v3493
        %v4456 = vadd.f32 %v4455, %v3494
        %v4457 = vadd.f32 %v4456, %v3495
        %v4458 = vadd.f32 %v4457, %v3496
        %v4459 = vadd.f32 %v4458, %v3497
        %v4460 = vadd.f32 %v4459, %v3498
        %v4461 = vadd.f32 %v4460, %v3499
        %v4462 = vadd.f32 %v4461, %v3500
        %v4463 = vadd.f32 %v4462, %v3501
        %v4464 = vadd.f32 %v4463, %v3502
        %v4465 = vadd.f32 %v4464, %v3503
        %v4466 = vadd.f32 %v4465, %v3504
        %v4467 = vadd.f32 %v4466, %v3505
        %v4468 = vadd.f32 %v4467, %v3506
        %v4469 = vadd.f32 %v4468, %v3507
        %v4470 = vadd.f32 %v4469, %v3508
        %v4471 = vadd.f32 %v4470, %v3509
        %v4472 = vadd.f32 %v4471, %v3510
        %v4473 = vadd.f32 %v4472, %v3511
        %v4474 = vadd.f32 %v4473, %v3512
        %v4475 = vadd.f32 %v4474, %v3513
        %v4476 = vadd.f32 %v4475, %v3514
        %v4477 = vadd.f32 %v4476, %v3515
        %v4478 = vadd.f32 %v4477, %v3516
        %v4479 = vadd.f32 %v4478, %v3517
        %v4480 = vadd.f32 %v4479, %v3518
        %v4481 = vadd.f32 %v4480, %v3519
        %v4482 = vadd.f32 %v4481, %v3520
        %v4483 = vadd.f32 %v4482, %v3521
        %v4484 = vadd.f32 %v4483, %v3522
        %v4485 = vadd.f32 %v4484, %v3523
        %v4486 = vadd.f32 %v4485, %v3524
        %v4487 = vadd.f32 %v4486, %v3525
        %v4488 = vadd.f32 %v4487, %v3526
        %v4489 = vadd.f32 %v4488, %v3527
        %v4490 = vadd.f32 %v4489, %v3528
        %v4491 = vadd.f32 %v4490, %v3529
        %v4492 = vadd.f32 %v4491, %v3530
        %v4493 = vadd.f32 %v4492, %v3531
        %v4494 = vadd.f32 %v4493, %v3532
        %v4495 = vadd.f32 %v4494, %v3533
        %v4496 = vadd.f32 %v4495, %v3534
        %v4497 = vadd.f32 %v4496, %v3535
        %v4498 = vadd.f32 %v4497, %v3536
        %v4499 = vadd.f32 %v4498, %v3537
        %v4500 = vadd.f32 %v4499, %v3538
        %v4501 = vadd.f32 %v4500, %v3539
        %v4502 = vadd.f32 %v4501, %v3540
        %v4503 = vadd.f32 %v4502, %v3541
        %v4504 = vadd.f32 %v4503, %v3542
        %v4505 = vadd.f32 %v4504, %v3543
        %v4506 = vadd.f32 %v4505, %v3544
        %v4507 = vadd.f32 %v4506, %v3545
        %v4508 = vadd.f32 %v4507, %v3546
        %v4509 = vadd.f32 %v4508, %v3547
        %v4510 = vadd.f32 %v4509, %v3548
        %v4511 = vadd.f32 %v4510, %v3549
        %v4512 = vadd.f32 %v4511, %v3550
        %v4513 = vadd.f32 %v4512, %v3551
        %v4514 = vadd.f32 %v4513, %v3552
        %v4515 = vadd.f32 %v4514, %v3553
        %v4516 = vadd.f32 %v4515, %v3554
        %v4517 = vadd.f32 %v4516, %v3555
        %v4518 = vadd.f32 %v4517, %v3556
        %v4519 = vadd.f32 %v4518, %v3557
        %v4520 = vadd.f32 %v4519, %v3558
        %v4521 = vadd.f32 %v4520, %v3559
        %v4522 = vadd.f32 %v4521, %v3560
        %v4523 = vadd.f32 %v4522, %v3561
        %v4524 = vadd.f32 %v4523, %v3562
        %v4525 = vadd.f32 %v4524, %v3563
        %v4526 = vadd.f32 %v4525, %v3564
        %v4527 = vadd.f32 %v4526, %v3565
        %v4528 = vadd.f32 %v4527, %v3566
        %v4529 = vadd.f32 %v4528, %v3567
        %v4530 = vadd.f32 %v4529, %v3568
        %v4531 = vadd.f32 %v4530, %v3569
        %v4532 = vadd.f32 %v4531, %v3570
        %v4533 = vadd.f32 %v4532, %v3571
        %v4534 = vadd.f32 %v4533, %v3572
        %v4535 = vadd.f32 %v4534, %v3573
        %v4536 = vadd.f32 %v4535, %v3574
        %v4537 = vadd.f32 %v4536, %v3575
        %v4538 = vadd.f32 %v4537, %v3576
        %v4539 = vadd.f32 %v4538, %v3577
        %v4540 = vadd.f32 %v4539, %v3578
        %v4541 = vadd.f32 %v4540, %v3579
        %v4542 = vadd.f32 %v4541, %v3580
        %v4543 = vadd.f32 %v4542, %v3581
        %v4544 = vadd.f32 %v4543, %v3582
        %v4545 = vadd.f32 %v4544, %v3583
        %v4546 = vadd.f32 %v4545, %v3584
        %v4547 = vadd.f32 %v4546, %v3585
        %v4548 = vadd.f32 %v4547, %v3586
        %v4549 = vadd.f32 %v4548, %v3587
        %v4550 = vadd.f32 %v4549, %v3588
        %v4551 = vadd.f32 %v4550, %v3589
        %v4552 = vadd.f32 %v4551, %v3590
        %v4553 = vadd.f32 %v4552, %v3591
        %v4554 = vadd.f32 %v4553, %v3592
        %v4555 = vadd.f32 %v4554, %v3593
        %v4556 = vadd.f32 %v4555, %v3594
        %v4557 = vadd.f32 %v4556, %v3595
        %v4558 = vadd.f32 %v4557, %v3596
        %4559 = vadd.xlane.f32.xlu0 %v4558
        %v4560 = vpop.xlane.xlu0 %4559
        %v4561 = vsel %vm3982, %v3597, 0.0
        %v4562 = vsel %vm3982, %v3598, 0.0
        %v4563 = vadd.f32 %v4561, %v4562
        %v4564 = vsel %vm3982, %v3599, 0.0
        %v4565 = vadd.f32 %v4563, %v4564
        %v4566 = vsel %vm3982, %v3600, 0.0
        %v4567 = vadd.f32 %v4565, %v4566
        %v4568 = vsel %vm3982, %v3601, 0.0
        %v4569 = vadd.f32 %v4567, %v4568
        %v4570 = vsel %vm3982, %v3602, 0.0
        %v4571 = vadd.f32 %v4569, %v4570
        %v4572 = vsel %vm3982, %v3603, 0.0
        %v4573 = vadd.f32 %v4571, %v4572
        %v4574 = vsel %vm3982, %v3604, 0.0
        %v4575 = vadd.f32 %v4573, %v4574
        %v4576 = vsel %vm3982, %v3605, 0.0
        %v4577 = vadd.f32 %v4575, %v4576
        %v4578 = vsel %vm3982, %v3606, 0.0
        %v4579 = vadd.f32 %v4577, %v4578
        %v4580 = vsel %vm3982, %v3607, 0.0
        %v4581 = vadd.f32 %v4579, %v4580
        %v4582 = vsel %vm3982, %v3608, 0.0
        %v4583 = vadd.f32 %v4581, %v4582
        %v4584 = vsel %vm3982, %v3609, 0.0
        %v4585 = vadd.f32 %v4583, %v4584
        %v4586 = vsel %vm3982, %v3610, 0.0
        %v4587 = vadd.f32 %v4585, %v4586
        %v4588 = vsel %vm3982, %v3611, 0.0
        %v4589 = vadd.f32 %v4587, %v4588
        %v4590 = vsel %vm3982, %v3612, 0.0
        %v4591 = vadd.f32 %v4589, %v4590
        %v4592 = vsel %vm3982, %v3613, 0.0
        %v4593 = vadd.f32 %v4591, %v4592
        %v4594 = vsel %vm3982, %v3614, 0.0
        %v4595 = vadd.f32 %v4593, %v4594
        %v4596 = vsel %vm3982, %v3615, 0.0
        %v4597 = vadd.f32 %v4595, %v4596
        %v4598 = vsel %vm3982, %v3616, 0.0
        %v4599 = vadd.f32 %v4597, %v4598
        %v4600 = vsel %vm3982, %v3617, 0.0
        %v4601 = vadd.f32 %v4599, %v4600
        %v4602 = vsel %vm3982, %v3618, 0.0
        %v4603 = vadd.f32 %v4601, %v4602
        %v4604 = vsel %vm3982, %v3619, 0.0
        %v4605 = vadd.f32 %v4603, %v4604
        %v4606 = vsel %vm3982, %v3620, 0.0
        %v4607 = vadd.f32 %v4605, %v4606
        %v4608 = vsel %vm3982, %v3621, 0.0
        %v4609 = vadd.f32 %v4607, %v4608
        %v4610 = vsel %vm3982, %v3622, 0.0
        %v4611 = vadd.f32 %v4609, %v4610
        %v4612 = vsel %vm3982, %v3623, 0.0
        %v4613 = vadd.f32 %v4611, %v4612
        %v4614 = vsel %vm3982, %v3624, 0.0
        %v4615 = vadd.f32 %v4613, %v4614
        %v4616 = vsel %vm3982, %v3625, 0.0
        %v4617 = vadd.f32 %v4615, %v4616
        %v4618 = vsel %vm3982, %v3626, 0.0
        %v4619 = vadd.f32 %v4617, %v4618
        %v4620 = vsel %vm3982, %v3627, 0.0
        %v4621 = vadd.f32 %v4619, %v4620
        %v4622 = vsel %vm3982, %v3628, 0.0
        %v4623 = vadd.f32 %v4621, %v4622
        %v4624 = vsel %vm3982, %v3629, 0.0
        %v4625 = vadd.f32 %v4623, %v4624
        %v4626 = vsel %vm3982, %v3630, 0.0
        %v4627 = vadd.f32 %v4625, %v4626
        %v4628 = vsel %vm3982, %v3631, 0.0
        %v4629 = vadd.f32 %v4627, %v4628
        %v4630 = vsel %vm3982, %v3632, 0.0
        %v4631 = vadd.f32 %v4629, %v4630
        %v4632 = vsel %vm3982, %v3633, 0.0
        %v4633 = vadd.f32 %v4631, %v4632
        %v4634 = vsel %vm3982, %v3634, 0.0
        %v4635 = vadd.f32 %v4633, %v4634
        %v4636 = vsel %vm3982, %v3635, 0.0
        %v4637 = vadd.f32 %v4635, %v4636
        %v4638 = vsel %vm3982, %v3636, 0.0
        %v4639 = vadd.f32 %v4637, %v4638
        %v4640 = vsel %vm3982, %v3637, 0.0
        %v4641 = vadd.f32 %v4639, %v4640
        %v4642 = vsel %vm3982, %v3638, 0.0
        %v4643 = vadd.f32 %v4641, %v4642
        %v4644 = vsel %vm3982, %v3639, 0.0
        %v4645 = vadd.f32 %v4643, %v4644
        %v4646 = vsel %vm3982, %v3640, 0.0
        %v4647 = vadd.f32 %v4645, %v4646
        %v4648 = vsel %vm3982, %v3641, 0.0
        %v4649 = vadd.f32 %v4647, %v4648
        %v4650 = vsel %vm3982, %v3642, 0.0
        %v4651 = vadd.f32 %v4649, %v4650
        %v4652 = vsel %vm3982, %v3643, 0.0
        %v4653 = vadd.f32 %v4651, %v4652
        %v4654 = vsel %vm3982, %v3644, 0.0
        %v4655 = vadd.f32 %v4653, %v4654
        %v4656 = vsel %vm3982, %v3645, 0.0
        %v4657 = vadd.f32 %v4655, %v4656
        %v4658 = vsel %vm3982, %v3646, 0.0
        %v4659 = vadd.f32 %v4657, %v4658
        %v4660 = vsel %vm3982, %v3647, 0.0
        %v4661 = vadd.f32 %v4659, %v4660
        %v4662 = vsel %vm3982, %v3648, 0.0
        %v4663 = vadd.f32 %v4661, %v4662
        %v4664 = vsel %vm3982, %v3649, 0.0
        %v4665 = vadd.f32 %v4663, %v4664
        %v4666 = vsel %vm3982, %v3650, 0.0
        %v4667 = vadd.f32 %v4665, %v4666
        %v4668 = vsel %vm3982, %v3651, 0.0
        %v4669 = vadd.f32 %v4667, %v4668
        %v4670 = vsel %vm3982, %v3652, 0.0
        %v4671 = vadd.f32 %v4669, %v4670
        %v4672 = vsel %vm3982, %v3653, 0.0
        %v4673 = vadd.f32 %v4671, %v4672
        %v4674 = vsel %vm3982, %v3654, 0.0
        %v4675 = vadd.f32 %v4673, %v4674
        %v4676 = vsel %vm3982, %v3655, 0.0
        %v4677 = vadd.f32 %v4675, %v4676
        %v4678 = vsel %vm3982, %v3656, 0.0
        %v4679 = vadd.f32 %v4677, %v4678
        %v4680 = vsel %vm3982, %v3657, 0.0
        %v4681 = vadd.f32 %v4679, %v4680
        %v4682 = vsel %vm3982, %v3658, 0.0
        %v4683 = vadd.f32 %v4681, %v4682
        %v4684 = vsel %vm3982, %v3659, 0.0
        %v4685 = vadd.f32 %v4683, %v4684
        %v4686 = vsel %vm3982, %v3660, 0.0
        %v4687 = vadd.f32 %v4685, %v4686
        %v4688 = vsel %vm3982, %v3661, 0.0
        %v4689 = vadd.f32 %v4687, %v4688
        %v4690 = vsel %vm3982, %v3662, 0.0
        %v4691 = vadd.f32 %v4689, %v4690
        %v4692 = vsel %vm3982, %v3663, 0.0
        %v4693 = vadd.f32 %v4691, %v4692
        %v4694 = vsel %vm3982, %v3664, 0.0
        %v4695 = vadd.f32 %v4693, %v4694
        %v4696 = vsel %vm3982, %v3665, 0.0
        %v4697 = vadd.f32 %v4695, %v4696
        %v4698 = vsel %vm3982, %v3666, 0.0
        %v4699 = vadd.f32 %v4697, %v4698
        %v4700 = vsel %vm3982, %v3667, 0.0
        %v4701 = vadd.f32 %v4699, %v4700
        %v4702 = vsel %vm3982, %v3668, 0.0
        %v4703 = vadd.f32 %v4701, %v4702
        %v4704 = vsel %vm3982, %v3669, 0.0
        %v4705 = vadd.f32 %v4703, %v4704
        %v4706 = vsel %vm3982, %v3670, 0.0
        %v4707 = vadd.f32 %v4705, %v4706
        %v4708 = vsel %vm3982, %v3671, 0.0
        %v4709 = vadd.f32 %v4707, %v4708
        %v4710 = vsel %vm3982, %v3672, 0.0
        %v4711 = vadd.f32 %v4709, %v4710
        %v4712 = vsel %vm3982, %v3673, 0.0
        %v4713 = vadd.f32 %v4711, %v4712
        %v4714 = vsel %vm3982, %v3674, 0.0
        %v4715 = vadd.f32 %v4713, %v4714
        %v4716 = vsel %vm3982, %v3675, 0.0
        %v4717 = vadd.f32 %v4715, %v4716
        %v4718 = vsel %vm3982, %v3676, 0.0
        %v4719 = vadd.f32 %v4717, %v4718
        %v4720 = vsel %vm3982, %v3677, 0.0
        %v4721 = vadd.f32 %v4719, %v4720
        %v4722 = vsel %vm3982, %v3678, 0.0
        %v4723 = vadd.f32 %v4721, %v4722
        %v4724 = vsel %vm3982, %v3679, 0.0
        %v4725 = vadd.f32 %v4723, %v4724
        %v4726 = vsel %vm3982, %v3680, 0.0
        %v4727 = vadd.f32 %v4725, %v4726
        %v4728 = vsel %vm3982, %v3681, 0.0
        %v4729 = vadd.f32 %v4727, %v4728
        %v4730 = vsel %vm3982, %v3682, 0.0
        %v4731 = vadd.f32 %v4729, %v4730
        %v4732 = vsel %vm3982, %v3683, 0.0
        %v4733 = vadd.f32 %v4731, %v4732
        %v4734 = vsel %vm3982, %v3684, 0.0
        %v4735 = vadd.f32 %v4733, %v4734
        %v4736 = vsel %vm3982, %v3685, 0.0
        %v4737 = vadd.f32 %v4735, %v4736
        %v4738 = vsel %vm3982, %v3686, 0.0
        %v4739 = vadd.f32 %v4737, %v4738
        %v4740 = vsel %vm3982, %v3687, 0.0
        %v4741 = vadd.f32 %v4739, %v4740
        %v4742 = vsel %vm3982, %v3688, 0.0
        %v4743 = vadd.f32 %v4741, %v4742
        %v4744 = vsel %vm3982, %v3689, 0.0
        %v4745 = vadd.f32 %v4743, %v4744
        %v4746 = vsel %vm3982, %v3690, 0.0
        %v4747 = vadd.f32 %v4745, %v4746
        %v4748 = vsel %vm3982, %v3691, 0.0
        %v4749 = vadd.f32 %v4747, %v4748
        %v4750 = vsel %vm3982, %v3692, 0.0
        %v4751 = vadd.f32 %v4749, %v4750
        %v4752 = vsel %vm3982, %v3693, 0.0
        %v4753 = vadd.f32 %v4751, %v4752
        %v4754 = vsel %vm3982, %v3694, 0.0
        %v4755 = vadd.f32 %v4753, %v4754
        %v4756 = vsel %vm3982, %v3695, 0.0
        %v4757 = vadd.f32 %v4755, %v4756
        %v4758 = vsel %vm3982, %v3696, 0.0
        %v4759 = vadd.f32 %v4757, %v4758
        %v4760 = vsel %vm3982, %v3697, 0.0
        %v4761 = vadd.f32 %v4759, %v4760
        %v4762 = vsel %vm3982, %v3698, 0.0
        %v4763 = vadd.f32 %v4761, %v4762
        %v4764 = vsel %vm3982, %v3699, 0.0
        %v4765 = vadd.f32 %v4763, %v4764
        %v4766 = vsel %vm3982, %v3700, 0.0
        %v4767 = vadd.f32 %v4765, %v4766
        %v4768 = vsel %vm3982, %v3701, 0.0
        %v4769 = vadd.f32 %v4767, %v4768
        %v4770 = vsel %vm3982, %v3702, 0.0
        %v4771 = vadd.f32 %v4769, %v4770
        %v4772 = vsel %vm3982, %v3703, 0.0
        %v4773 = vadd.f32 %v4771, %v4772
        %v4774 = vsel %vm3982, %v3704, 0.0
        %v4775 = vadd.f32 %v4773, %v4774
        %v4776 = vsel %vm3982, %v3705, 0.0
        %v4777 = vadd.f32 %v4775, %v4776
        %v4778 = vsel %vm3982, %v3706, 0.0
        %v4779 = vadd.f32 %v4777, %v4778
        %v4780 = vsel %vm3982, %v3707, 0.0
        %v4781 = vadd.f32 %v4779, %v4780
        %v4782 = vsel %vm3982, %v3708, 0.0
        %v4783 = vadd.f32 %v4781, %v4782
        %v4784 = vsel %vm3982, %v3709, 0.0
        %v4785 = vadd.f32 %v4783, %v4784
        %v4786 = vsel %vm3982, %v3710, 0.0
        %v4787 = vadd.f32 %v4785, %v4786
        %v4788 = vsel %vm3982, %v3711, 0.0
        %v4789 = vadd.f32 %v4787, %v4788
        %v4790 = vsel %vm3982, %v3712, 0.0
        %v4791 = vadd.f32 %v4789, %v4790
        %v4792 = vsel %vm3982, %v3713, 0.0
        %v4793 = vadd.f32 %v4791, %v4792
        %v4794 = vsel %vm3982, %v3714, 0.0
        %v4795 = vadd.f32 %v4793, %v4794
        %v4796 = vsel %vm3982, %v3715, 0.0
        %v4797 = vadd.f32 %v4795, %v4796
        %v4798 = vsel %vm3982, %v3716, 0.0
        %v4799 = vadd.f32 %v4797, %v4798
        %v4800 = vsel %vm3982, %v3717, 0.0
        %v4801 = vadd.f32 %v4799, %v4800
        %v4802 = vsel %vm3982, %v3718, 0.0
        %v4803 = vadd.f32 %v4801, %v4802
        %v4804 = vsel %vm3982, %v3719, 0.0
        %v4805 = vadd.f32 %v4803, %v4804
        %v4806 = vsel %vm3982, %v3720, 0.0
        %v4807 = vadd.f32 %v4805, %v4806
        %v4808 = vsel %vm3982, %v3721, 0.0
        %v4809 = vadd.f32 %v4807, %v4808
        %v4810 = vsel %vm3982, %v3722, 0.0
        %v4811 = vadd.f32 %v4809, %v4810
        %v4812 = vsel %vm3982, %v3723, 0.0
        %v4813 = vadd.f32 %v4811, %v4812
        %v4814 = vsel %vm3982, %v3724, 0.0
        %v4815 = vadd.f32 %v4813, %v4814
        %v4816 = vsel %vm3982, %v3725, 0.0
        %v4817 = vadd.f32 %v4815, %v4816
        %v4818 = vsel %vm3982, %v3726, 0.0
        %v4819 = vadd.f32 %v4817, %v4818
        %v4820 = vsel %vm3982, %v3727, 0.0
        %v4821 = vadd.f32 %v4819, %v4820
        %v4822 = vsel %vm3982, %v3728, 0.0
        %v4823 = vadd.f32 %v4821, %v4822
        %v4824 = vsel %vm3982, %v3729, 0.0
        %v4825 = vadd.f32 %v4823, %v4824
        %v4826 = vsel %vm3982, %v3730, 0.0
        %v4827 = vadd.f32 %v4825, %v4826
        %v4828 = vsel %vm3982, %v3731, 0.0
        %v4829 = vadd.f32 %v4827, %v4828
        %v4830 = vsel %vm3982, %v3732, 0.0
        %v4831 = vadd.f32 %v4829, %v4830
        %v4832 = vsel %vm3982, %v3733, 0.0
        %v4833 = vadd.f32 %v4831, %v4832
        %v4834 = vsel %vm3982, %v3734, 0.0
        %v4835 = vadd.f32 %v4833, %v4834
        %v4836 = vsel %vm3982, %v3735, 0.0
        %v4837 = vadd.f32 %v4835, %v4836
        %v4838 = vsel %vm3982, %v3736, 0.0
        %v4839 = vadd.f32 %v4837, %v4838
        %v4840 = vsel %vm3982, %v3737, 0.0
        %v4841 = vadd.f32 %v4839, %v4840
        %v4842 = vsel %vm3982, %v3738, 0.0
        %v4843 = vadd.f32 %v4841, %v4842
        %v4844 = vsel %vm3982, %v3739, 0.0
        %v4845 = vadd.f32 %v4843, %v4844
        %v4846 = vsel %vm3982, %v3740, 0.0
        %v4847 = vadd.f32 %v4845, %v4846
        %v4848 = vsel %vm3982, %v3741, 0.0
        %v4849 = vadd.f32 %v4847, %v4848
        %v4850 = vsel %vm3982, %v3742, 0.0
        %v4851 = vadd.f32 %v4849, %v4850
        %v4852 = vsel %vm3982, %v3743, 0.0
        %v4853 = vadd.f32 %v4851, %v4852
        %v4854 = vsel %vm3982, %v3744, 0.0
        %v4855 = vadd.f32 %v4853, %v4854
        %v4856 = vsel %vm3982, %v3745, 0.0
        %v4857 = vadd.f32 %v4855, %v4856
        %v4858 = vsel %vm3982, %v3746, 0.0
        %v4859 = vadd.f32 %v4857, %v4858
        %v4860 = vsel %vm3982, %v3747, 0.0
        %v4861 = vadd.f32 %v4859, %v4860
        %v4862 = vsel %vm3982, %v3748, 0.0
        %v4863 = vadd.f32 %v4861, %v4862
        %v4864 = vsel %vm3982, %v3749, 0.0
        %v4865 = vadd.f32 %v4863, %v4864
        %v4866 = vsel %vm3982, %v3750, 0.0
        %v4867 = vadd.f32 %v4865, %v4866
        %v4868 = vsel %vm3982, %v3751, 0.0
        %v4869 = vadd.f32 %v4867, %v4868
        %v4870 = vsel %vm3982, %v3752, 0.0
        %v4871 = vadd.f32 %v4869, %v4870
        %v4872 = vsel %vm3982, %v3753, 0.0
        %v4873 = vadd.f32 %v4871, %v4872
        %v4874 = vsel %vm3982, %v3754, 0.0
        %v4875 = vadd.f32 %v4873, %v4874
        %v4876 = vsel %vm3982, %v3755, 0.0
        %v4877 = vadd.f32 %v4875, %v4876
        %v4878 = vsel %vm3982, %v3756, 0.0
        %v4879 = vadd.f32 %v4877, %v4878
        %v4880 = vsel %vm3982, %v3757, 0.0
        %v4881 = vadd.f32 %v4879, %v4880
        %v4882 = vsel %vm3982, %v3758, 0.0
        %v4883 = vadd.f32 %v4881, %v4882
        %v4884 = vsel %vm3982, %v3759, 0.0
        %v4885 = vadd.f32 %v4883, %v4884
        %v4886 = vsel %vm3982, %v3760, 0.0
        %v4887 = vadd.f32 %v4885, %v4886
        %v4888 = vsel %vm3982, %v3761, 0.0
        %v4889 = vadd.f32 %v4887, %v4888
        %v4890 = vsel %vm3982, %v3762, 0.0
        %v4891 = vadd.f32 %v4889, %v4890
        %v4892 = vsel %vm3982, %v3763, 0.0
        %v4893 = vadd.f32 %v4891, %v4892
        %v4894 = vsel %vm3982, %v3764, 0.0
        %v4895 = vadd.f32 %v4893, %v4894
        %v4896 = vsel %vm3982, %v3765, 0.0
        %v4897 = vadd.f32 %v4895, %v4896
        %v4898 = vsel %vm3982, %v3766, 0.0
        %v4899 = vadd.f32 %v4897, %v4898
        %v4900 = vsel %vm3982, %v3767, 0.0
        %v4901 = vadd.f32 %v4899, %v4900
        %v4902 = vsel %vm3982, %v3768, 0.0
        %v4903 = vadd.f32 %v4901, %v4902
        %v4904 = vsel %vm3982, %v3769, 0.0
        %v4905 = vadd.f32 %v4903, %v4904
        %v4906 = vsel %vm3982, %v3770, 0.0
        %v4907 = vadd.f32 %v4905, %v4906
        %v4908 = vsel %vm3982, %v3771, 0.0
        %v4909 = vadd.f32 %v4907, %v4908
        %v4910 = vsel %vm3982, %v3772, 0.0
        %v4911 = vadd.f32 %v4909, %v4910
        %v4912 = vsel %vm3982, %v3773, 0.0
        %v4913 = vadd.f32 %v4911, %v4912
        %v4914 = vsel %vm3982, %v3774, 0.0
        %v4915 = vadd.f32 %v4913, %v4914
        %v4916 = vsel %vm3982, %v3775, 0.0
        %v4917 = vadd.f32 %v4915, %v4916
        %v4918 = vsel %vm3982, %v3776, 0.0
        %v4919 = vadd.f32 %v4917, %v4918
        %v4920 = vsel %vm3982, %v3777, 0.0
        %v4921 = vadd.f32 %v4919, %v4920
        %v4922 = vsel %vm3982, %v3778, 0.0
        %v4923 = vadd.f32 %v4921, %v4922
        %v4924 = vsel %vm3982, %v3779, 0.0
        %v4925 = vadd.f32 %v4923, %v4924
        %v4926 = vsel %vm3982, %v3780, 0.0
        %v4927 = vadd.f32 %v4925, %v4926
        %v4928 = vsel %vm3982, %v3781, 0.0
        %v4929 = vadd.f32 %v4927, %v4928
        %v4930 = vsel %vm3982, %v3782, 0.0
        %v4931 = vadd.f32 %v4929, %v4930
        %v4932 = vsel %vm3982, %v3783, 0.0
        %v4933 = vadd.f32 %v4931, %v4932
        %v4934 = vsel %vm3982, %v3784, 0.0
        %v4935 = vadd.f32 %v4933, %v4934
        %v4936 = vsel %vm3982, %v3785, 0.0
        %v4937 = vadd.f32 %v4935, %v4936
        %v4938 = vsel %vm3982, %v3786, 0.0
        %v4939 = vadd.f32 %v4937, %v4938
        %v4940 = vsel %vm3982, %v3787, 0.0
        %v4941 = vadd.f32 %v4939, %v4940
        %v4942 = vsel %vm3982, %v3788, 0.0
        %v4943 = vadd.f32 %v4941, %v4942
        %4944 = vadd.xlane.f32.xlu0 %v4943
        %v4945 = vpop.xlane.xlu0 %4944
        %v4950 = vlaneseq
        %v4951 = vand.u32 %v4950, 127
        %v4952 = vlaneseq
        %v4953 = vshrl.u32 %v4952, 7
        %v4954 = vsub.s32 %v4951, %v4953
        %v4955 = vrot.slane %v3981, %v4954
        %v4956 = vadd.s32 %v4951, 4294967288
        %v4957 = vlaneseq
        %v4958 = vshrl.u32 %v4957, 7
        %v4959 = vsub.s32 %v4956, %v4958
        %v4960 = vrot.slane %v4367, %v4959
        %vm4961 = vcmask 130112
        %v4962 = vsel %vm4961, %v4960, %v4955
        %v4963 = vlaneseq
        %v4964 = vshrl.u32 %v4963, 7
        %v4965 = vsub.s32 %v4951, %v4964
        %v4966 = vrot.slane %v4560, %v4965
        %v4967 = vlaneseq
        %v4968 = vshrl.u32 %v4967, 7
        %v4969 = vsub.s32 %v4956, %v4968
        %v4970 = vrot.slane %v4945, %v4969
        %v4971 = vsel %vm4961, %v4970, %v4966
        %vm4972 = vcmask 1041409
        %v4973 = vsel %vm4972, %v4971, %v4962
        %v4975 = vadd.f32 %v668, %v4973
        %vm4976 = vcmask 74752
        %4977 = vst.msk [vmem:[%s229] sm:$0x3] %vm4976, %v4975
        %p4978 = scmp.lt.s32.totalorder %s23, 1
        %s4979 = scalar_select %p4978, %s23, 1
        %s4980 = smul.addr %s4979, 2
        %s4981 = scalar_lea.vmem %s2, %s4980
        // Predicated region
        $region41: #{mydata_forward.1} parent=27 // pred_check
          %p4982 = pneg %p109
        $region42: #{mydata_forward.1} parent=27 // pred_check_branch
          %4984 = sbr.rel (%p4982) target = $region44
        $region43: #{mydata_forward.1} parent=27 // pred_region
          _
        $region44: #{mydata_forward.1} parent=27 // pred_fallthru
          _
      $region28: #{mydata_forward.1} parent=5 // pred_fallthru
        _
      %p4985 = scmp.le.s32.totalorder 2, %s14
      // Predicated region
      $region45: #{mydata_forward.1} parent=5 // pred_check
        %p4986 = pneg %p4985
      $region46: #{mydata_forward.1} parent=5 // pred_check_branch
        %4988 = sbr.rel (%p4986) target = $region48
      $region47: #{mydata_forward.1} parent=5 // pred_region
        %s4989 = ssub.s32 %s14, 2
        // Predicated region
        $region49: #{mydata_forward.1} parent=47 // pred_check
          %p4990 = pneg %p115
        $region50: #{mydata_forward.1} parent=47 // pred_check_branch
          %4992 = sbr.rel (%p4990) target = $region52
        $region51: #{mydata_forward.1} parent=47 // pred_region
          %p4993 = scmp.lt.s32.totalorder %s25, 1
          %s4994 = scalar_select %p4993, %s25, 1
          %s4995 = smul.addr %s4994, 2
          %s4996 = scalar_lea.vmem %s2, %s4995
        $region52: #{mydata_forward.1} parent=47 // pred_fallthru
          _
      $region48: #{mydata_forward.1} parent=5 // pred_fallthru
        _
    $region6: #{mydata_forward.1} parent=1 // loop_footer
      %s18 = sadd.s32 1, %s14
    $region7: #{mydata_forward.1} parent=1 // loop_footer_branch
      %13 = sbr.rel target = $region3
    $region8: #{mydata_forward.1} parent=1 // loop_exit
      _
    %4997 = vsyncpa [#allocation3], 1
    %s4998 = scalar_lea.sflag [#allocation3], 1
    %4999 = vsyncpa %s4998, 1
    %5000 = vsyncpa [#allocation5], 1
    %s5001 = scalar_lea.sflag [#allocation5], 1
    %5002 = vsyncpa %s5001, 1

</llo_original>
